<compile_context>
chip_gen: v7x
topology: tpu7x:2x2x1
jax: 0.10.0
libtpu: 0.0.40
codegen_flags: <defaults>
</compile_context>

<pallas_src>
import functools
import math

import jax
import jax.numpy as jnp
from jax.experimental import pallas as pl
from jax.experimental.pallas import tpu as pltpu

EPS = 1e-5


# ----------------------------- helpers ---------------------------------------

def _choose_tile(n, cap):
    """Largest multiple of 8 that divides n and is <= cap (fallback: n)."""
    start = min(n, cap)
    start -= start % 8
    for t in range(start, 7, -8):
        if n % t == 0:
            return t
    return n


def _choose_window_batch(n_windows, cap=8):
    """Windows processed per grid step (amortizes per-step overhead)."""
    for wb in range(min(cap, n_windows), 0, -1):
        if n_windows % wb == 0:
            return wb
    return 1


# ----------------------------- kernels ---------------------------------------

def rln_stats_kernel(x_ref, mean_ref, std_ref, s_ref, ss_ref, *, inv_n):
    # Tiled reduction over the whole image: running sum / sumsq in VMEM scratch.
    t = pl.program_id(1)

    @pl.when(t == 0)
    def _():
        s_ref[...] = jnp.zeros_like(s_ref)
        ss_ref[...] = jnp.zeros_like(ss_ref)

    x = x_ref[0]                                       # (TM, C)
    s_ref[...] += jnp.sum(x, keepdims=True)            # (1, 1)
    ss_ref[...] += jnp.sum(x * x, keepdims=True)

    @pl.when(t == pl.num_programs(1) - 1)
    def _():
        mean = s_ref[...] * inv_n                      # (1, 1)
        var = ss_ref[...] * inv_n - mean * mean        # biased var (matches RLN)
        mean_ref[0] = mean
        std_ref[0] = jnp.sqrt(var + EPS)


def attn_kernel(x_ref, mean_ref, std_ref, rlnw_ref, rlnb_ref,
                wqkv_ref, bqkv_ref, bias_ref, o_ref,
                *, num_heads, head_dim, ws, wb):
    # Fused: RLN normalize -> QK/V 1x1 conv -> window attention.
    # x_ref / o_ref blocks are (1, ws, ws*wb, C) windows cut out of the image
    # by the BlockSpec index_map (no partition/reverse transposes needed).
    C = num_heads * head_dim
    N = ws * ws
    scale = head_dim ** -0.5

    mean = mean_ref[0]                                 # (1, 1)
    inv_std = 1.0 / std_ref[0]                         # (1, 1)
    rw = rlnw_ref[...]                                 # (1, C)
    rb = rlnb_ref[...]                                 # (1, C)
    wqkv = wqkv_ref[...].astype(jnp.bfloat16)          # (C, 3C), resident
    bqkv = bqkv_ref[...]                               # (1, 3C)

    xblk = x_ref[0]                                    # (ws, ws*wb, C)

    for w in range(wb):                                # static unroll: windows
        xw = xblk[:, w * ws:(w + 1) * ws, :].reshape(N, C)
        xn = (xw - mean) * inv_std * rw + rb           # RLN normalize
        qkv = jnp.dot(xn.astype(jnp.bfloat16), wqkv,
                      preferred_element_type=jnp.float32) + bqkv   # (N, 3C)
        for h in range(num_heads):                     # static unroll: heads
            q = qkv[:, h * head_dim:(h + 1) * head_dim] * scale
            k = qkv[:, C + h * head_dim:C + (h + 1) * head_dim]
            v = qkv[:, 2 * C + h * head_dim:2 * C + (h + 1) * head_dim]
            s = jax.lax.dot_general(
                q.astype(jnp.bfloat16), k.astype(jnp.bfloat16),
                (((1,), (1,)), ((), ())),
                preferred_element_type=jnp.float32) + bias_ref[h]  # (N, N)
            m = jnp.max(s, axis=-1, keepdims=True)
            p = jnp.exp(s - m)
            p = p * pl.reciprocal(jnp.sum(p, axis=-1, keepdims=True),
                                  approx=True)
            o = jnp.dot(p.astype(jnp.bfloat16), v.astype(jnp.bfloat16),
                        preferred_element_type=jnp.float32)        # (N, d)
            # write the head's output straight into image layout (no concat)
            o_ref[0, :, w * ws:(w + 1) * ws,
                  h * head_dim:(h + 1) * head_dim] = (
                      o.reshape(ws, ws, head_dim).astype(o_ref.dtype))


def tail_kernel(a_ref, id_ref, mean_ref, std_ref,
                m1w_ref, m1b_ref, m2w_ref, m2b_ref,
                wp_ref, bp_ref, w1_ref, b1_ref, w2_ref, b2_ref, o_ref):
    # Fused: proj 1x1 conv -> x*rescale + rebias -> residual -> MLP -> residual.
    a = a_ref[0]                                       # (TM, C) attention out
    xid = id_ref[0]                                    # (TM, C) block input
    mean = mean_ref[0]                                 # (1, 1)
    std = std_ref[0]                                   # (1, 1)

    rescale = m1w_ref[...] * std + m1b_ref[...]        # meta1(std)  -> (1, C)
    rebias = m2w_ref[...] * mean + m2b_ref[...]        # meta2(mean) -> (1, C)

    y = jnp.dot(a.astype(jnp.bfloat16), wp_ref[...].astype(jnp.bfloat16),
                preferred_element_type=jnp.float32) + bp_ref[...]
    x1 = y * rescale + rebias + xid                    # first residual

    h = jnp.dot(x1.astype(jnp.bfloat16), w1_ref[...].astype(jnp.bfloat16),
                preferred_element_type=jnp.float32) + b1_ref[...]
    h = jnp.maximum(h, 0.0)
    out = jnp.dot(h.astype(jnp.bfloat16), w2_ref[...].astype(jnp.bfloat16),
                  preferred_element_type=jnp.float32) + b2_ref[...] + x1
    o_ref[0] = out


# ----------------------------- wrappers --------------------------------------

def rln_stats(x_tok, tile):
    B, HW, C = x_tok.shape
    kern = functools.partial(rln_stats_kernel, inv_n=1.0 / float(HW * C))
    return pl.pallas_call(
        kern,
        out_shape=(jax.ShapeDtypeStruct((B, 1, 1), jnp.float32),
                   jax.ShapeDtypeStruct((B, 1, 1), jnp.float32)),
        grid=(B, HW // tile),
        in_specs=[pl.BlockSpec((1, tile, C), lambda b, t: (b, t, 0))],
        out_specs=(pl.BlockSpec((1, 1, 1), lambda b, t: (b, 0, 0)),
                   pl.BlockSpec((1, 1, 1), lambda b, t: (b, 0, 0))),
        scratch_shapes=[pltpu.VMEM((1, 1), jnp.float32),
                        pltpu.VMEM((1, 1), jnp.float32)],
        compiler_params=pltpu.CompilerParams(
            dimension_semantics=("parallel", "arbitrary")),
    )(x_tok)


def fused_qkv_window_attention(x_img, mean, std, rln_w, rln_b,
                               w_qkv, b_qkv, rel_bias, *,
                               num_heads, window_size):
    B, H, W, C = x_img.shape
    ws = window_size
    nWh, nWw = H // ws, W // ws
    wb = _choose_window_batch(nWw)
    head_dim = C // num_heads
    N = ws * ws
    blk = (1, ws, ws * wb, C)
    kern = functools.partial(attn_kernel, num_heads=num_heads,
                             head_dim=head_dim, ws=ws, wb=wb)
    return pl.pallas_call(
        kern,
        out_shape=jax.ShapeDtypeStruct((B, H, W, C), jnp.float32),
        grid=(B, nWh, nWw // wb),
        in_specs=[
            pl.BlockSpec(blk, lambda b, i, j: (b, i, j, 0)),          # x image
            pl.BlockSpec((1, 1, 1), lambda b, i, j: (b, 0, 0)),       # mean
            pl.BlockSpec((1, 1, 1), lambda b, i, j: (b, 0, 0)),       # std
            pl.BlockSpec((1, C), lambda b, i, j: (0, 0)),             # rln_w
            pl.BlockSpec((1, C), lambda b, i, j: (0, 0)),             # rln_b
            pl.BlockSpec((C, 3 * C), lambda b, i, j: (0, 0)),         # w_qkv
            pl.BlockSpec((1, 3 * C), lambda b, i, j: (0, 0)),         # b_qkv
            pl.BlockSpec((num_heads, N, N), lambda b, i, j: (0, 0, 0)),
        ],
        out_specs=pl.BlockSpec(blk, lambda b, i, j: (b, i, j, 0)),
        compiler_params=pltpu.CompilerParams(
            dimension_semantics=("parallel", "parallel", "parallel")),
    )(x_img, mean, std, rln_w, rln_b, w_qkv, b_qkv, rel_bias)


def fused_proj_mod_mlp(attn_tok, x_tok, mean, std, p, tile):
    B, HW, C = x_tok.shape
    Hd = p['mlp_w1'].shape[1]
    cc = lambda b, t: (0, 0)          # resident weights
    bb = lambda b, t: (b, t, 0)       # token tiles
    ss = lambda b, t: (b, 0, 0)       # per-batch scalars
    return pl.pallas_call(
        tail_kernel,
        out_shape=jax.ShapeDtypeStruct((B, HW, C), jnp.float32),
        grid=(B, HW // tile),
        in_specs=[
            pl.BlockSpec((1, tile, C), bb),      # attention output
            pl.BlockSpec((1, tile, C), bb),      # identity (block input)
            pl.BlockSpec((1, 1, 1), ss),         # mean
            pl.BlockSpec((1, 1, 1), ss),         # std
            pl.BlockSpec((1, C), cc),            # meta1 w
            pl.BlockSpec((1, C), cc),            # meta1 b
            pl.BlockSpec((1, C), cc),            # meta2 w
            pl.BlockSpec((1, C), cc),            # meta2 b
            pl.BlockSpec((C, C), cc),            # proj w
            pl.BlockSpec((1, C), cc),            # proj b
            pl.BlockSpec((C, Hd), cc),           # mlp w1
            pl.BlockSpec((1, Hd), cc),           # mlp b1
            pl.BlockSpec((Hd, C), cc),           # mlp w2
            pl.BlockSpec((1, C), cc),            # mlp b2
        ],
        out_specs=pl.BlockSpec((1, tile, C), bb),
        compiler_params=pltpu.CompilerParams(
            dimension_semantics=("parallel", "parallel")),
    )(attn_tok, x_tok, mean, std,
      p['m1_w'], p['m1_b'], p['m2_w'], p['m2_b'],
      p['proj_w'], p['proj_b'],
      p['mlp_w1'], p['mlp_b1'], p['mlp_w2'], p['mlp_b2'])


# ----------------------------- JAX glue --------------------------------------

def relative_position_bias(meta_w1, meta_b1, meta_w2, meta_b2, ws):
    # Tiny parameter-only MLP on the static relative-position table
    # (precomputed once outside the hot path).
    coords = jnp.stack(jnp.meshgrid(jnp.arange(ws), jnp.arange(ws),
                                    indexing="ij"))                  # (2, ws, ws)
    flat = coords.reshape(2, -1)
    rel = flat[:, :, None] - flat[:, None, :]                        # (2, N, N)
    rel = rel.transpose(1, 2, 0).astype(jnp.float32)                 # (N, N, 2)
    rel_log = jnp.sign(rel) * jnp.log1p(jnp.abs(rel))
    h = jnp.maximum(rel_log @ meta_w1.T + meta_b1, 0.0)              # (N, N, 256)
    bias = h @ meta_w2.T + meta_b2                                   # (N, N, nH)
    return bias.transpose(2, 0, 1)                                   # (nH, N, N)


def prepare_inference_params(p, *, window_size):
    """Precompute fused QKV weights and the relative-position bias once."""
    q = dict(p)
    q['w_qkv'] = jnp.concatenate([p['qk_w'], p['v_w']], axis=1)      # (C, 3C)
    q['b_qkv'] = jnp.concatenate([p['qk_b'], p['v_b']], axis=1)      # (1, 3C)
    q['rel_bias'] = relative_position_bias(p['meta_w1'], p['meta_b1'],
                                           p['meta_w2'], p['meta_b2'],
                                           window_size)
    return q


def transformer_block_forward(x_nchw, p, *, num_heads, window_size,
                              stats_tile=128, token_tile=128):
    # stats_tile / token_tile: sweep 512-2048 at production resolutions
    # (keep 2x double-buffered tiles within the v7x 32 MiB scoped VMEM budget).
    B, C, H, W = x_nchw.shape
    assert H % window_size == 0 and W % window_size == 0
    # TODO(synk): shift_size > 0 (reflect padding + cyclic shift) path not implemented.
    # TODO(synk): C=32 lane padding / token-major lane-dense layout not applied.

    x_img = jnp.transpose(x_nchw, (0, 2, 3, 1))                      # (B, H, W, C)
    x_tok = x_img.reshape(B, H * W, C)

    st = _choose_tile(H * W, stats_tile)
    tt = _choose_tile(H * W, token_tile)

    # RLN statistics (tiled reduction): per-image mean / std scalars only.
    mean, std = rln_stats(x_tok, st)

    # Fused RLN-normalize + QK/V 1x1 conv + window attention (windows via BlockSpec).
    attn_img = fused_qkv_window_attention(
        x_img, mean, std, p['rln_w'], p['rln_b'],
        p['w_qkv'], p['b_qkv'], p['rel_bias'],
        num_heads=num_heads, window_size=window_size)

    # Fused proj + modulation + residual + MLP + residual over token tiles.
    y_tok = fused_proj_mod_mlp(attn_img.reshape(B, H * W, C), x_tok,
                               mean, std, p, tt)
    return jnp.transpose(y_tok.reshape(B, H, W, C), (0, 3, 1, 2))    # NCHW


# ----------------------------- params ----------------------------------------

def init_params(key, dim, num_heads, hidden, network_depth=4):
    ks = list(jax.random.split(key, 16))

    def nrm(k, shape, std):
        return (std * jax.random.normal(k, shape)).astype(jnp.float32)

    gain = (8 * network_depth) ** (-0.25)
    std_qk = math.sqrt(2.0 / (dim + 2 * dim))
    std_vp = gain * math.sqrt(2.0 / (dim + dim))
    std_mlp = gain * math.sqrt(2.0 / (dim + hidden))

    return dict(
        rln_w=jnp.ones((1, dim), jnp.float32),
        rln_b=jnp.zeros((1, dim), jnp.float32),
        m1_w=nrm(ks[0], (1, dim), 0.02),
        m1_b=jnp.ones((1, dim), jnp.float32),     # meta1 bias init = 1
        m2_w=nrm(ks[1], (1, dim), 0.02),
        m2_b=jnp.zeros((1, dim), jnp.float32),    # meta2 bias init = 0
        qk_w=nrm(ks[2], (dim, 2 * dim), std_qk),
        qk_b=jnp.zeros((1, 2 * dim), jnp.float32),
        v_w=nrm(ks[3], (dim, dim), std_vp),
        v_b=jnp.zeros((1, dim), jnp.float32),
        proj_w=nrm(ks[4], (dim, dim), std_vp),
        proj_b=jnp.zeros((1, dim), jnp.float32),
        meta_w1=nrm(ks[5], (256, 2), 0.02),
        meta_b1=jnp.zeros((256,), jnp.float32),
        meta_w2=nrm(ks[6], (num_heads, 256), 0.02),
        meta_b2=jnp.zeros((num_heads,), jnp.float32),
        mlp_w1=nrm(ks[7], (dim, hidden), std_mlp),
        mlp_b1=jnp.zeros((1, hidden), jnp.float32),
        mlp_w2=nrm(ks[8], (hidden, dim), std_mlp),
        mlp_b2=jnp.zeros((1, dim), jnp.float32),
    )


# ----------------------------- main -------------------------------------------

if __name__ == "__main__":
    B, dim, H, W = 2, 32, 16, 16
    num_heads, window_size, mlp_ratio = 2, 8, 4.0
    hidden = int(dim * mlp_ratio)

    key = jax.random.PRNGKey(0)
    kx, kp = jax.random.split(key)
    x = jax.random.normal(kx, (B, dim, H, W), dtype=jnp.float32)     # NCHW input
    raw_params = init_params(kp, dim, num_heads, hidden, network_depth=4)
    params = prepare_inference_params(raw_params, window_size=window_size)

    fwd = jax.jit(functools.partial(transformer_block_forward,
                                    num_heads=num_heads,
                                    window_size=window_size))
    out = jax.block_until_ready(fwd(x, params))
    assert out.shape == (B, dim, H, W)
    assert bool(jnp.all(jnp.isfinite(out)))
    print("KERNEL_OK")
</pallas_src>

<mosaic_0001>
module attributes {stable_mosaic.version = 11 : i64} {
  func.func @tail_kernel(%arg0: i32, %arg1: i32, %arg2: memref<1x128x32xf32, #tpu.memory_space<vmem>>, %arg3: memref<1x128x32xf32, #tpu.memory_space<vmem>>, %arg4: memref<1x1x1xf32, #tpu.memory_space<vmem>>, %arg5: memref<1x1x1xf32, #tpu.memory_space<vmem>>, %arg6: memref<1x32xf32, #tpu.memory_space<vmem>>, %arg7: memref<1x32xf32, #tpu.memory_space<vmem>>, %arg8: memref<1x32xf32, #tpu.memory_space<vmem>>, %arg9: memref<1x32xf32, #tpu.memory_space<vmem>>, %arg10: memref<32x32xf32, #tpu.memory_space<vmem>>, %arg11: memref<1x32xf32, #tpu.memory_space<vmem>>, %arg12: memref<32x128xf32, #tpu.memory_space<vmem>>, %arg13: memref<1x128xf32, #tpu.memory_space<vmem>>, %arg14: memref<128x32xf32, #tpu.memory_space<vmem>>, %arg15: memref<1x32xf32, #tpu.memory_space<vmem>>, %arg16: memref<1x128x32xf32, #tpu.memory_space<vmem>>) attributes {dimension_semantics = [#tpu.dimension_semantics<parallel>, #tpu.dimension_semantics<parallel>], iteration_bounds = array<i64: 2, 2>, scalar_prefetch = 0 : i64, scratch_operands = 0 : i64, tpu.core_type = #tpu.core_type<tc>, window_params = [{transform_indices = @transform_0, window_bounds = array<i64: 1, 128, 32>}, {transform_indices = @transform_1, window_bounds = array<i64: 1, 128, 32>}, {transform_indices = @transform_2, window_bounds = array<i64: 1, 1, 1>}, {transform_indices = @transform_3, window_bounds = array<i64: 1, 1, 1>}, {pipeline_mode = #tpu.pipeline_mode<synchronous>, transform_indices = @transform_4, window_bounds = array<i64: 1, 32>}, {pipeline_mode = #tpu.pipeline_mode<synchronous>, transform_indices = @transform_5, window_bounds = array<i64: 1, 32>}, {pipeline_mode = #tpu.pipeline_mode<synchronous>, transform_indices = @transform_6, window_bounds = array<i64: 1, 32>}, {pipeline_mode = #tpu.pipeline_mode<synchronous>, transform_indices = @transform_7, window_bounds = array<i64: 1, 32>}, {pipeline_mode = #tpu.pipeline_mode<synchronous>, transform_indices = @transform_8, window_bounds = array<i64: 32, 32>}, {pipeline_mode = #tpu.pipeline_mode<synchronous>, transform_indices = @transform_9, window_bounds = array<i64: 1, 32>}, {pipeline_mode = #tpu.pipeline_mode<synchronous>, transform_indices = @transform_10, window_bounds = array<i64: 32, 128>}, {pipeline_mode = #tpu.pipeline_mode<synchronous>, transform_indices = @transform_11, window_bounds = array<i64: 1, 128>}, {pipeline_mode = #tpu.pipeline_mode<synchronous>, transform_indices = @transform_12, window_bounds = array<i64: 128, 32>}, {pipeline_mode = #tpu.pipeline_mode<synchronous>, transform_indices = @transform_13, window_bounds = array<i64: 1, 32>}, {transform_indices = @transform_14, window_bounds = array<i64: 1, 128, 32>}]} {
    %c0 = arith.constant 0 : index
    %c0_0 = arith.constant 0 : index
    %c0_1 = arith.constant 0 : index
    %0 = vector.load %arg2[%c0, %c0_0, %c0_1] : memref<1x128x32xf32, #tpu.memory_space<vmem>>, vector<1x128x32xf32>
    %1 = vector.shape_cast %0 : vector<1x128x32xf32> to vector<128x32xf32>
    %c0_2 = arith.constant 0 : index
    %c0_3 = arith.constant 0 : index
    %c0_4 = arith.constant 0 : index
    %2 = vector.load %arg3[%c0_2, %c0_3, %c0_4] : memref<1x128x32xf32, #tpu.memory_space<vmem>>, vector<1x128x32xf32>
    %3 = vector.shape_cast %2 : vector<1x128x32xf32> to vector<128x32xf32>
    %c0_5 = arith.constant 0 : index
    %c0_6 = arith.constant 0 : index
    %c0_7 = arith.constant 0 : index
    %4 = vector.load %arg4[%c0_5, %c0_6, %c0_7] : memref<1x1x1xf32, #tpu.memory_space<vmem>>, vector<1x1x1xf32>
    %5 = vector.shape_cast %4 : vector<1x1x1xf32> to vector<1x1xf32>
    %c0_8 = arith.constant 0 : index
    %c0_9 = arith.constant 0 : index
    %c0_10 = arith.constant 0 : index
    %6 = vector.load %arg5[%c0_8, %c0_9, %c0_10] : memref<1x1x1xf32, #tpu.memory_space<vmem>>, vector<1x1x1xf32>
    %7 = vector.shape_cast %6 : vector<1x1x1xf32> to vector<1x1xf32>
    %c0_11 = arith.constant 0 : index
    %c0_12 = arith.constant 0 : index
    %8 = vector.load %arg6[%c0_11, %c0_12] : memref<1x32xf32, #tpu.memory_space<vmem>>, vector<1x32xf32>
    %9 = vector.broadcast %7 : vector<1x1xf32> to vector<1x32xf32>
    %10 = arith.mulf %8, %9 : vector<1x32xf32>
    %c0_13 = arith.constant 0 : index
    %c0_14 = arith.constant 0 : index
    %11 = vector.load %arg7[%c0_13, %c0_14] : memref<1x32xf32, #tpu.memory_space<vmem>>, vector<1x32xf32>
    %12 = arith.addf %10, %11 : vector<1x32xf32>
    %c0_15 = arith.constant 0 : index
    %c0_16 = arith.constant 0 : index
    %13 = vector.load %arg8[%c0_15, %c0_16] : memref<1x32xf32, #tpu.memory_space<vmem>>, vector<1x32xf32>
    %14 = vector.broadcast %5 : vector<1x1xf32> to vector<1x32xf32>
    %15 = arith.mulf %13, %14 : vector<1x32xf32>
    %c0_17 = arith.constant 0 : index
    %c0_18 = arith.constant 0 : index
    %16 = vector.load %arg9[%c0_17, %c0_18] : memref<1x32xf32, #tpu.memory_space<vmem>>, vector<1x32xf32>
    %17 = arith.addf %15, %16 : vector<1x32xf32>
    %18 = arith.truncf %1 : vector<128x32xf32> to vector<128x32xbf16>
    %c0_19 = arith.constant 0 : index
    %c0_20 = arith.constant 0 : index
    %19 = vector.load %arg10[%c0_19, %c0_20] : memref<32x32xf32, #tpu.memory_space<vmem>>, vector<32x32xf32>
    %20 = arith.truncf %19 : vector<32x32xf32> to vector<32x32xbf16>
    %cst = arith.constant dense<0.000000e+00> : vector<128x32xf32>
    %21 = tpu.matmul %18, %20, %cst {dimension_numbers = #tpu.dot_dimension_numbers<[1], [0], [0], [1], [0, 0, 1, 1], [], []>} : vector<128x32xbf16>, vector<32x32xbf16>, vector<128x32xf32> -> vector<128x32xf32>
    %c0_21 = arith.constant 0 : index
    %c0_22 = arith.constant 0 : index
    %22 = vector.load %arg11[%c0_21, %c0_22] : memref<1x32xf32, #tpu.memory_space<vmem>>, vector<1x32xf32>
    %23 = vector.broadcast %22 : vector<1x32xf32> to vector<128x32xf32>
    %24 = arith.addf %21, %23 : vector<128x32xf32>
    %25 = vector.broadcast %12 : vector<1x32xf32> to vector<128x32xf32>
    %26 = arith.mulf %24, %25 : vector<128x32xf32>
    %27 = vector.broadcast %17 : vector<1x32xf32> to vector<128x32xf32>
    %28 = arith.addf %26, %27 : vector<128x32xf32>
    %29 = arith.addf %28, %3 : vector<128x32xf32>
    %30 = arith.truncf %29 : vector<128x32xf32> to vector<128x32xbf16>
    %c0_23 = arith.constant 0 : index
    %c0_24 = arith.constant 0 : index
    %31 = vector.load %arg12[%c0_23, %c0_24] : memref<32x128xf32, #tpu.memory_space<vmem>>, vector<32x128xf32>
    %32 = arith.truncf %31 : vector<32x128xf32> to vector<32x128xbf16>
    %cst_25 = arith.constant dense<0.000000e+00> : vector<128x128xf32>
    %33 = tpu.matmul %30, %32, %cst_25 {dimension_numbers = #tpu.dot_dimension_numbers<[1], [0], [0], [1], [0, 0, 1, 1], [], []>} : vector<128x32xbf16>, vector<32x128xbf16>, vector<128x128xf32> -> vector<128x128xf32>
    %c0_26 = arith.constant 0 : index
    %c0_27 = arith.constant 0 : index
    %34 = vector.load %arg13[%c0_26, %c0_27] : memref<1x128xf32, #tpu.memory_space<vmem>>, vector<1x128xf32>
    %35 = vector.broadcast %34 : vector<1x128xf32> to vector<128x128xf32>
    %36 = arith.addf %33, %35 : vector<128x128xf32>
    %cst_28 = arith.constant 0.000000e+00 : f32
    %37 = vector.broadcast %cst_28 : f32 to vector<128x128xf32>
    %38 = arith.maximumf %36, %37 : vector<128x128xf32>
    %39 = arith.truncf %38 : vector<128x128xf32> to vector<128x128xbf16>
    %c0_29 = arith.constant 0 : index
    %c0_30 = arith.constant 0 : index
    %40 = vector.load %arg14[%c0_29, %c0_30] : memref<128x32xf32, #tpu.memory_space<vmem>>, vector<128x32xf32>
    %41 = arith.truncf %40 : vector<128x32xf32> to vector<128x32xbf16>
    %cst_31 = arith.constant dense<0.000000e+00> : vector<128x32xf32>
    %42 = tpu.matmul %39, %41, %cst_31 {dimension_numbers = #tpu.dot_dimension_numbers<[1], [0], [0], [1], [0, 0, 1, 1], [], []>} : vector<128x128xbf16>, vector<128x32xbf16>, vector<128x32xf32> -> vector<128x32xf32>
    %c0_32 = arith.constant 0 : index
    %c0_33 = arith.constant 0 : index
    %43 = vector.load %arg15[%c0_32, %c0_33] : memref<1x32xf32, #tpu.memory_space<vmem>>, vector<1x32xf32>
    %44 = vector.broadcast %43 : vector<1x32xf32> to vector<128x32xf32>
    %45 = arith.addf %42, %44 : vector<128x32xf32>
    %46 = arith.addf %45, %29 : vector<128x32xf32>
    %c0_34 = arith.constant 0 : index
    %c0_35 = arith.constant 0 : index
    %c0_36 = arith.constant 0 : index
    %47 = vector.load %arg16[%c0_34, %c0_35, %c0_36] : memref<1x128x32xf32, #tpu.memory_space<vmem>>, vector<1x128x32xf32>
    %48 = vector.shape_cast %47 : vector<1x128x32xf32> to vector<128x32xf32>
    %49 = vector.shape_cast %46 : vector<128x32xf32> to vector<1x128x32xf32>
    tpu.vector_store %arg16[%c0_34, %c0_35, %c0_36], %49 {strides = array<i32>} : memref<1x128x32xf32, #tpu.memory_space<vmem>>, vector<1x128x32xf32>,
    return
  }
  func.func @transform_0(%arg0: i32, %arg1: i32) -> (i32, i32, i32) {
    %c0_i32 = arith.constant 0 : i32
    %c0_i32_0 = arith.constant 0 : i32
    return %arg0, %arg1, %c0_i32 : i32, i32, i32
  }
  func.func @transform_1(%arg0: i32, %arg1: i32) -> (i32, i32, i32) {
    %c0_i32 = arith.constant 0 : i32
    %c0_i32_0 = arith.constant 0 : i32
    return %arg0, %arg1, %c0_i32 : i32, i32, i32
  }
  func.func @transform_2(%arg0: i32, %arg1: i32) -> (i32, i32, i32) {
    %c0_i32 = arith.constant 0 : i32
    %c0_i32_0 = arith.constant 0 : i32
    %c0_i32_1 = arith.constant 0 : i32
    return %arg0, %c0_i32, %c0_i32_0 : i32, i32, i32
  }
  func.func @transform_3(%arg0: i32, %arg1: i32) -> (i32, i32, i32) {
    %c0_i32 = arith.constant 0 : i32
    %c0_i32_0 = arith.constant 0 : i32
    %c0_i32_1 = arith.constant 0 : i32
    return %arg0, %c0_i32, %c0_i32_0 : i32, i32, i32
  }
  func.func @transform_4(%arg0: i32, %arg1: i32) -> (i32, i32) {
    %c0_i32 = arith.constant 0 : i32
    %c0_i32_0 = arith.constant 0 : i32
    %c0_i32_1 = arith.constant 0 : i32
    return %c0_i32, %c0_i32_0 : i32, i32
  }
  func.func @transform_5(%arg0: i32, %arg1: i32) -> (i32, i32) {
    %c0_i32 = arith.constant 0 : i32
    %c0_i32_0 = arith.constant 0 : i32
    %c0_i32_1 = arith.constant 0 : i32
    return %c0_i32, %c0_i32_0 : i32, i32
  }
  func.func @transform_6(%arg0: i32, %arg1: i32) -> (i32, i32) {
    %c0_i32 = arith.constant 0 : i32
    %c0_i32_0 = arith.constant 0 : i32
    %c0_i32_1 = arith.constant 0 : i32
    return %c0_i32, %c0_i32_0 : i32, i32
  }
  func.func @transform_7(%arg0: i32, %arg1: i32) -> (i32, i32) {
    %c0_i32 = arith.constant 0 : i32
    %c0_i32_0 = arith.constant 0 : i32
    %c0_i32_1 = arith.constant 0 : i32
    return %c0_i32, %c0_i32_0 : i32, i32
  }
  func.func @transform_8(%arg0: i32, %arg1: i32) -> (i32, i32) {
    %c0_i32 = arith.constant 0 : i32
    %c0_i32_0 = arith.constant 0 : i32
    %c0_i32_1 = arith.constant 0 : i32
    return %c0_i32, %c0_i32_0 : i32, i32
  }
  func.func @transform_9(%arg0: i32, %arg1: i32) -> (i32, i32) {
    %c0_i32 = arith.constant 0 : i32
    %c0_i32_0 = arith.constant 0 : i32
    %c0_i32_1 = arith.constant 0 : i32
    return %c0_i32, %c0_i32_0 : i32, i32
  }
  func.func @transform_10(%arg0: i32, %arg1: i32) -> (i32, i32) {
    %c0_i32 = arith.constant 0 : i32
    %c0_i32_0 = arith.constant 0 : i32
    %c0_i32_1 = arith.constant 0 : i32
    return %c0_i32, %c0_i32_0 : i32, i32
  }
  func.func @transform_11(%arg0: i32, %arg1: i32) -> (i32, i32) {
    %c0_i32 = arith.constant 0 : i32
    %c0_i32_0 = arith.constant 0 : i32
    %c0_i32_1 = arith.constant 0 : i32
    return %c0_i32, %c0_i32_0 : i32, i32
  }
  func.func @transform_12(%arg0: i32, %arg1: i32) -> (i32, i32) {
    %c0_i32 = arith.constant 0 : i32
    %c0_i32_0 = arith.constant 0 : i32
    %c0_i32_1 = arith.constant 0 : i32
    return %c0_i32, %c0_i32_0 : i32, i32
  }
  func.func @transform_13(%arg0: i32, %arg1: i32) -> (i32, i32) {
    %c0_i32 = arith.constant 0 : i32
    %c0_i32_0 = arith.constant 0 : i32
    %c0_i32_1 = arith.constant 0 : i32
    return %c0_i32, %c0_i32_0 : i32, i32
  }
  func.func @transform_14(%arg0: i32, %arg1: i32) -> (i32, i32, i32) {
    %c0_i32 = arith.constant 0 : i32
    %c0_i32_0 = arith.constant 0 : i32
    return %arg0, %arg1, %c0_i32 : i32, i32, i32
  }
}

module attributes {stable_mosaic.version = 11 : i64} {
  func.func @attn_kernel(%arg0: i32, %arg1: i32, %arg2: i32, %arg3: memref<1x8x16x32xf32, #tpu.memory_space<vmem>>, %arg4: memref<1x1x1xf32, #tpu.memory_space<vmem>>, %arg5: memref<1x1x1xf32, #tpu.memory_space<vmem>>, %arg6: memref<1x32xf32, #tpu.memory_space<vmem>>, %arg7: memref<1x32xf32, #tpu.memory_space<vmem>>, %arg8: memref<32x96xf32, #tpu.memory_space<vmem>>, %arg9: memref<1x96xf32, #tpu.memory_space<vmem>>, %arg10: memref<2x64x64xf32, #tpu.memory_space<vmem>>, %arg11: memref<1x8x16x32xf32, #tpu.memory_space<vmem>>) attributes {dimension_semantics = [#tpu.dimension_semantics<parallel>, #tpu.dimension_semantics<parallel>, #tpu.dimension_semantics<parallel>], iteration_bounds = array<i64: 2, 2, 1>, scalar_prefetch = 0 : i64, scratch_operands = 0 : i64, tpu.core_type = #tpu.core_type<tc>, window_params = [{transform_indices = @transform_0, window_bounds = array<i64: 1, 8, 16, 32>}, {transform_indices = @transform_1, window_bounds = array<i64: 1, 1, 1>}, {transform_indices = @transform_2, window_bounds = array<i64: 1, 1, 1>}, {pipeline_mode = #tpu.pipeline_mode<synchronous>, transform_indices = @transform_3, window_bounds = array<i64: 1, 32>}, {pipeline_mode = #tpu.pipeline_mode<synchronous>, transform_indices = @transform_4, window_bounds = array<i64: 1, 32>}, {pipeline_mode = #tpu.pipeline_mode<synchronous>, transform_indices = @transform_5, window_bounds = array<i64: 32, 96>}, {pipeline_mode = #tpu.pipeline_mode<synchronous>, transform_indices = @transform_6, window_bounds = array<i64: 1, 96>}, {pipeline_mode = #tpu.pipeline_mode<synchronous>, transform_indices = @transform_7, window_bounds = array<i64: 2, 64, 64>}, {transform_indices = @transform_8, window_bounds = array<i64: 1, 8, 16, 32>}]} {
    %c0 = arith.constant 0 : index
    %c0_0 = arith.constant 0 : index
    %c0_1 = arith.constant 0 : index
    %0 = vector.load %arg4[%c0, %c0_0, %c0_1] : memref<1x1x1xf32, #tpu.memory_space<vmem>>, vector<1x1x1xf32>
    %1 = vector.shape_cast %0 : vector<1x1x1xf32> to vector<1x1xf32>
    %c0_2 = arith.constant 0 : index
    %c0_3 = arith.constant 0 : index
    %c0_4 = arith.constant 0 : index
    %2 = vector.load %arg5[%c0_2, %c0_3, %c0_4] : memref<1x1x1xf32, #tpu.memory_space<vmem>>, vector<1x1x1xf32>
    %3 = vector.shape_cast %2 : vector<1x1x1xf32> to vector<1x1xf32>
    %cst = arith.constant 1.000000e+00 : f32
    %4 = vector.broadcast %cst : f32 to vector<1x1xf32>
    %5 = arith.divf %4, %3 : vector<1x1xf32>
    %c0_5 = arith.constant 0 : index
    %c0_6 = arith.constant 0 : index
    %6 = vector.load %arg6[%c0_5, %c0_6] : memref<1x32xf32, #tpu.memory_space<vmem>>, vector<1x32xf32>
    %c0_7 = arith.constant 0 : index
    %c0_8 = arith.constant 0 : index
    %7 = vector.load %arg7[%c0_7, %c0_8] : memref<1x32xf32, #tpu.memory_space<vmem>>, vector<1x32xf32>
    %c0_9 = arith.constant 0 : index
    %c0_10 = arith.constant 0 : index
    %8 = vector.load %arg8[%c0_9, %c0_10] : memref<32x96xf32, #tpu.memory_space<vmem>>, vector<32x96xf32>
    %9 = arith.truncf %8 : vector<32x96xf32> to vector<32x96xbf16>
    %c0_11 = arith.constant 0 : index
    %c0_12 = arith.constant 0 : index
    %10 = vector.load %arg9[%c0_11, %c0_12] : memref<1x96xf32, #tpu.memory_space<vmem>>, vector<1x96xf32>
    %c0_13 = arith.constant 0 : index
    %c0_14 = arith.constant 0 : index
    %c0_15 = arith.constant 0 : index
    %c0_16 = arith.constant 0 : index
    %11 = vector.load %arg3[%c0_13, %c0_14, %c0_15, %c0_16] : memref<1x8x16x32xf32, #tpu.memory_space<vmem>>, vector<1x8x16x32xf32>
    %12 = vector.shape_cast %11 : vector<1x8x16x32xf32> to vector<8x16x32xf32>
    %13 = vector.extract_strided_slice %12 {offsets = [0, 0, 0], sizes = [8, 8, 32], strides = [1, 1, 1]} : vector<8x16x32xf32> to vector<8x8x32xf32>
    %14 = vector.shape_cast %13 : vector<8x8x32xf32> to vector<64x32xf32>
    %15 = vector.broadcast %1 : vector<1x1xf32> to vector<64x32xf32>
    %16 = arith.subf %14, %15 : vector<64x32xf32>
    %17 = vector.broadcast %5 : vector<1x1xf32> to vector<64x32xf32>
    %18 = arith.mulf %16, %17 : vector<64x32xf32>
    %19 = vector.broadcast %6 : vector<1x32xf32> to vector<64x32xf32>
    %20 = arith.mulf %18, %19 : vector<64x32xf32>
    %21 = vector.broadcast %7 : vector<1x32xf32> to vector<64x32xf32>
    %22 = arith.addf %20, %21 : vector<64x32xf32>
    %23 = arith.truncf %22 : vector<64x32xf32> to vector<64x32xbf16>
    %cst_17 = arith.constant dense<0.000000e+00> : vector<64x96xf32>
    %24 = tpu.matmul %23, %9, %cst_17 {dimension_numbers = #tpu.dot_dimension_numbers<[1], [0], [0], [1], [0, 0, 1, 1], [], []>} : vector<64x32xbf16>, vector<32x96xbf16>, vector<64x96xf32> -> vector<64x96xf32>
    %25 = vector.broadcast %10 : vector<1x96xf32> to vector<64x96xf32>
    %26 = arith.addf %24, %25 : vector<64x96xf32>
    %27 = vector.extract_strided_slice %26 {offsets = [0, 0], sizes = [64, 16], strides = [1, 1]} : vector<64x96xf32> to vector<64x16xf32>
    %cst_18 = arith.constant 2.500000e-01 : f32
    %28 = vector.broadcast %cst_18 : f32 to vector<64x16xf32>
    %29 = arith.mulf %27, %28 : vector<64x16xf32>
    %30 = vector.extract_strided_slice %26 {offsets = [0, 32], sizes = [64, 16], strides = [1, 1]} : vector<64x96xf32> to vector<64x16xf32>
    %31 = vector.extract_strided_slice %26 {offsets = [0, 64], sizes = [64, 16], strides = [1, 1]} : vector<64x96xf32> to vector<64x16xf32>
    %32 = arith.truncf %29 : vector<64x16xf32> to vector<64x16xbf16>
    %33 = arith.truncf %30 : vector<64x16xf32> to vector<64x16xbf16>
    %cst_19 = arith.constant dense<0.000000e+00> : vector<64x64xf32>
    %34 = tpu.matmul %32, %33, %cst_19 {dimension_numbers = #tpu.dot_dimension_numbers<[1], [1], [0], [0], [0, 0, 1, 0], [], []>} : vector<64x16xbf16>, vector<64x16xbf16>, vector<64x64xf32> -> vector<64x64xf32>
    %c0_20 = arith.constant 0 : index
    %c0_21 = arith.constant 0 : index
    %c0_22 = arith.constant 0 : index
    %35 = vector.load %arg10[%c0_20, %c0_21, %c0_22] : memref<2x64x64xf32, #tpu.memory_space<vmem>>, vector<1x64x64xf32>
    %36 = vector.shape_cast %35 : vector<1x64x64xf32> to vector<64x64xf32>
    %37 = arith.addf %34, %36 : vector<64x64xf32>
    %cst_23 = arith.constant dense<0xFF800000> : vector<64xf32>
    %38 = vector.multi_reduction <maximumf>, %37, %cst_23 [1] : vector<64x64xf32> to vector<64xf32>
    %39 = vector.shape_cast %38 : vector<64xf32> to vector<64x1xf32>
    %40 = vector.broadcast %39 : vector<64x1xf32> to vector<64x64xf32>
    %41 = arith.subf %37, %40 : vector<64x64xf32>
    %42 = math.exp %41 : vector<64x64xf32>
    %cst_24 = arith.constant dense<0.000000e+00> : vector<64xf32>
    %43 = vector.multi_reduction <add>, %42, %cst_24 [1] : vector<64x64xf32> to vector<64xf32>
    %44 = vector.shape_cast %43 : vector<64xf32> to vector<64x1xf32>
    %45 = tpu.reciprocal %44 {approx = true} : vector<64x1xf32> -> vector<64x1xf32>
    %46 = vector.broadcast %45 : vector<64x1xf32> to vector<64x64xf32>
    %47 = arith.mulf %42, %46 : vector<64x64xf32>
    %48 = arith.truncf %47 : vector<64x64xf32> to vector<64x64xbf16>
    %49 = arith.truncf %31 : vector<64x16xf32> to vector<64x16xbf16>
    %cst_25 = arith.constant dense<0.000000e+00> : vector<64x16xf32>
    %50 = tpu.matmul %48, %49, %cst_25 {dimension_numbers = #tpu.dot_dimension_numbers<[1], [0], [0], [1], [0, 0, 1, 1], [], []>} : vector<64x64xbf16>, vector<64x16xbf16>, vector<64x16xf32> -> vector<64x16xf32>
    %51 = vector.shape_cast %50 : vector<64x16xf32> to vector<8x8x16xf32>
    %c0_26 = arith.constant 0 : index
    %c0_27 = arith.constant 0 : index
    %c0_28 = arith.constant 0 : index
    %c0_29 = arith.constant 0 : index
    %52 = vector.load %arg11[%c0_26, %c0_27, %c0_28, %c0_29] : memref<1x8x16x32xf32, #tpu.memory_space<vmem>>, vector<1x8x8x16xf32>
    %53 = vector.shape_cast %52 : vector<1x8x8x16xf32> to vector<8x8x16xf32>
    %54 = vector.shape_cast %51 : vector<8x8x16xf32> to vector<1x8x8x16xf32>
    tpu.vector_store %arg11[%c0_26, %c0_27, %c0_28, %c0_29], %54 {strides = array<i32>} : memref<1x8x16x32xf32, #tpu.memory_space<vmem>>, vector<1x8x8x16xf32>,
    %55 = vector.extract_strided_slice %26 {offsets = [0, 16], sizes = [64, 16], strides = [1, 1]} : vector<64x96xf32> to vector<64x16xf32>
    %cst_30 = arith.constant 2.500000e-01 : f32
    %56 = vector.broadcast %cst_30 : f32 to vector<64x16xf32>
    %57 = arith.mulf %55, %56 : vector<64x16xf32>
    %58 = vector.extract_strided_slice %26 {offsets = [0, 48], sizes = [64, 16], strides = [1, 1]} : vector<64x96xf32> to vector<64x16xf32>
    %59 = vector.extract_strided_slice %26 {offsets = [0, 80], sizes = [64, 16], strides = [1, 1]} : vector<64x96xf32> to vector<64x16xf32>
    %60 = arith.truncf %57 : vector<64x16xf32> to vector<64x16xbf16>
    %61 = arith.truncf %58 : vector<64x16xf32> to vector<64x16xbf16>
    %cst_31 = arith.constant dense<0.000000e+00> : vector<64x64xf32>
    %62 = tpu.matmul %60, %61, %cst_31 {dimension_numbers = #tpu.dot_dimension_numbers<[1], [1], [0], [0], [0, 0, 1, 0], [], []>} : vector<64x16xbf16>, vector<64x16xbf16>, vector<64x64xf32> -> vector<64x64xf32>
    %c1 = arith.constant 1 : index
    %c0_32 = arith.constant 0 : index
    %c0_33 = arith.constant 0 : index
    %63 = vector.load %arg10[%c1, %c0_32, %c0_33] : memref<2x64x64xf32, #tpu.memory_space<vmem>>, vector<1x64x64xf32>
    %64 = vector.shape_cast %63 : vector<1x64x64xf32> to vector<64x64xf32>
    %65 = arith.addf %62, %64 : vector<64x64xf32>
    %cst_34 = arith.constant dense<0xFF800000> : vector<64xf32>
    %66 = vector.multi_reduction <maximumf>, %65, %cst_34 [1] : vector<64x64xf32> to vector<64xf32>
    %67 = vector.shape_cast %66 : vector<64xf32> to vector<64x1xf32>
    %68 = vector.broadcast %67 : vector<64x1xf32> to vector<64x64xf32>
    %69 = arith.subf %65, %68 : vector<64x64xf32>
    %70 = math.exp %69 : vector<64x64xf32>
    %cst_35 = arith.constant dense<0.000000e+00> : vector<64xf32>
    %71 = vector.multi_reduction <add>, %70, %cst_35 [1] : vector<64x64xf32> to vector<64xf32>
    %72 = vector.shape_cast %71 : vector<64xf32> to vector<64x1xf32>
    %73 = tpu.reciprocal %72 {approx = true} : vector<64x1xf32> -> vector<64x1xf32>
    %74 = vector.broadcast %73 : vector<64x1xf32> to vector<64x64xf32>
    %75 = arith.mulf %70, %74 : vector<64x64xf32>
    %76 = arith.truncf %75 : vector<64x64xf32> to vector<64x64xbf16>
    %77 = arith.truncf %59 : vector<64x16xf32> to vector<64x16xbf16>
    %cst_36 = arith.constant dense<0.000000e+00> : vector<64x16xf32>
    %78 = tpu.matmul %76, %77, %cst_36 {dimension_numbers = #tpu.dot_dimension_numbers<[1], [0], [0], [1], [0, 0, 1, 1], [], []>} : vector<64x64xbf16>, vector<64x16xbf16>, vector<64x16xf32> -> vector<64x16xf32>
    %79 = vector.shape_cast %78 : vector<64x16xf32> to vector<8x8x16xf32>
    %c0_37 = arith.constant 0 : index
    %c0_38 = arith.constant 0 : index
    %c0_39 = arith.constant 0 : index
    %c16 = arith.constant 16 : index
    %80 = vector.load %arg11[%c0_37, %c0_38, %c0_39, %c16] : memref<1x8x16x32xf32, #tpu.memory_space<vmem>>, vector<1x8x8x16xf32>
    %81 = vector.shape_cast %80 : vector<1x8x8x16xf32> to vector<8x8x16xf32>
    %82 = vector.shape_cast %79 : vector<8x8x16xf32> to vector<1x8x8x16xf32>
    tpu.vector_store %arg11[%c0_37, %c0_38, %c0_39, %c16], %82 {strides = array<i32>} : memref<1x8x16x32xf32, #tpu.memory_space<vmem>>, vector<1x8x8x16xf32>,
    %83 = vector.extract_strided_slice %12 {offsets = [0, 8, 0], sizes = [8, 8, 32], strides = [1, 1, 1]} : vector<8x16x32xf32> to vector<8x8x32xf32>
    %84 = vector.shape_cast %83 : vector<8x8x32xf32> to vector<64x32xf32>
    %85 = vector.broadcast %1 : vector<1x1xf32> to vector<64x32xf32>
    %86 = arith.subf %84, %85 : vector<64x32xf32>
    %87 = vector.broadcast %5 : vector<1x1xf32> to vector<64x32xf32>
    %88 = arith.mulf %86, %87 : vector<64x32xf32>
    %89 = vector.broadcast %6 : vector<1x32xf32> to vector<64x32xf32>
    %90 = arith.mulf %88, %89 : vector<64x32xf32>
    %91 = vector.broadcast %7 : vector<1x32xf32> to vector<64x32xf32>
    %92 = arith.addf %90, %91 : vector<64x32xf32>
    %93 = arith.truncf %92 : vector<64x32xf32> to vector<64x32xbf16>
    %cst_40 = arith.constant dense<0.000000e+00> : vector<64x96xf32>
    %94 = tpu.matmul %93, %9, %cst_40 {dimension_numbers = #tpu.dot_dimension_numbers<[1], [0], [0], [1], [0, 0, 1, 1], [], []>} : vector<64x32xbf16>, vector<32x96xbf16>, vector<64x96xf32> -> vector<64x96xf32>
    %95 = vector.broadcast %10 : vector<1x96xf32> to vector<64x96xf32>
    %96 = arith.addf %94, %95 : vector<64x96xf32>
    %97 = vector.extract_strided_slice %96 {offsets = [0, 0], sizes = [64, 16], strides = [1, 1]} : vector<64x96xf32> to vector<64x16xf32>
    %cst_41 = arith.constant 2.500000e-01 : f32
    %98 = vector.broadcast %cst_41 : f32 to vector<64x16xf32>
    %99 = arith.mulf %97, %98 : vector<64x16xf32>
    %100 = vector.extract_strided_slice %96 {offsets = [0, 32], sizes = [64, 16], strides = [1, 1]} : vector<64x96xf32> to vector<64x16xf32>
    %101 = vector.extract_strided_slice %96 {offsets = [0, 64], sizes = [64, 16], strides = [1, 1]} : vector<64x96xf32> to vector<64x16xf32>
    %102 = arith.truncf %99 : vector<64x16xf32> to vector<64x16xbf16>
    %103 = arith.truncf %100 : vector<64x16xf32> to vector<64x16xbf16>
    %cst_42 = arith.constant dense<0.000000e+00> : vector<64x64xf32>
    %104 = tpu.matmul %102, %103, %cst_42 {dimension_numbers = #tpu.dot_dimension_numbers<[1], [1], [0], [0], [0, 0, 1, 0], [], []>} : vector<64x16xbf16>, vector<64x16xbf16>, vector<64x64xf32> -> vector<64x64xf32>
    %c0_43 = arith.constant 0 : index
    %c0_44 = arith.constant 0 : index
    %c0_45 = arith.constant 0 : index
    %105 = vector.load %arg10[%c0_43, %c0_44, %c0_45] : memref<2x64x64xf32, #tpu.memory_space<vmem>>, vector<1x64x64xf32>
    %106 = vector.shape_cast %105 : vector<1x64x64xf32> to vector<64x64xf32>
    %107 = arith.addf %104, %106 : vector<64x64xf32>
    %cst_46 = arith.constant dense<0xFF800000> : vector<64xf32>
    %108 = vector.multi_reduction <maximumf>, %107, %cst_46 [1] : vector<64x64xf32> to vector<64xf32>
    %109 = vector.shape_cast %108 : vector<64xf32> to vector<64x1xf32>
    %110 = vector.broadcast %109 : vector<64x1xf32> to vector<64x64xf32>
    %111 = arith.subf %107, %110 : vector<64x64xf32>
    %112 = math.exp %111 : vector<64x64xf32>
    %cst_47 = arith.constant dense<0.000000e+00> : vector<64xf32>
    %113 = vector.multi_reduction <add>, %112, %cst_47 [1] : vector<64x64xf32> to vector<64xf32>
    %114 = vector.shape_cast %113 : vector<64xf32> to vector<64x1xf32>
    %115 = tpu.reciprocal %114 {approx = true} : vector<64x1xf32> -> vector<64x1xf32>
    %116 = vector.broadcast %115 : vector<64x1xf32> to vector<64x64xf32>
    %117 = arith.mulf %112, %116 : vector<64x64xf32>
    %118 = arith.truncf %117 : vector<64x64xf32> to vector<64x64xbf16>
    %119 = arith.truncf %101 : vector<64x16xf32> to vector<64x16xbf16>
    %cst_48 = arith.constant dense<0.000000e+00> : vector<64x16xf32>
    %120 = tpu.matmul %118, %119, %cst_48 {dimension_numbers = #tpu.dot_dimension_numbers<[1], [0], [0], [1], [0, 0, 1, 1], [], []>} : vector<64x64xbf16>, vector<64x16xbf16>, vector<64x16xf32> -> vector<64x16xf32>
    %121 = vector.shape_cast %120 : vector<64x16xf32> to vector<8x8x16xf32>
    %c0_49 = arith.constant 0 : index
    %c0_50 = arith.constant 0 : index
    %c8 = arith.constant 8 : index
    %c0_51 = arith.constant 0 : index
    %122 = vector.load %arg11[%c0_49, %c0_50, %c8, %c0_51] : memref<1x8x16x32xf32, #tpu.memory_space<vmem>>, vector<1x8x8x16xf32>
    %123 = vector.shape_cast %122 : vector<1x8x8x16xf32> to vector<8x8x16xf32>
    %124 = vector.shape_cast %121 : vector<8x8x16xf32> to vector<1x8x8x16xf32>
    tpu.vector_store %arg11[%c0_49, %c0_50, %c8, %c0_51], %124 {strides = array<i32>} : memref<1x8x16x32xf32, #tpu.memory_space<vmem>>, vector<1x8x8x16xf32>,
    %125 = vector.extract_strided_slice %96 {offsets = [0, 16], sizes = [64, 16], strides = [1, 1]} : vector<64x96xf32> to vector<64x16xf32>
    %cst_52 = arith.constant 2.500000e-01 : f32
    %126 = vector.broadcast %cst_52 : f32 to vector<64x16xf32>
    %127 = arith.mulf %125, %126 : vector<64x16xf32>
    %128 = vector.extract_strided_slice %96 {offsets = [0, 48], sizes = [64, 16], strides = [1, 1]} : vector<64x96xf32> to vector<64x16xf32>
    %129 = vector.extract_strided_slice %96 {offsets = [0, 80], sizes = [64, 16], strides = [1, 1]} : vector<64x96xf32> to vector<64x16xf32>
    %130 = arith.truncf %127 : vector<64x16xf32> to vector<64x16xbf16>
    %131 = arith.truncf %128 : vector<64x16xf32> to vector<64x16xbf16>
    %cst_53 = arith.constant dense<0.000000e+00> : vector<64x64xf32>
    %132 = tpu.matmul %130, %131, %cst_53 {dimension_numbers = #tpu.dot_dimension_numbers<[1], [1], [0], [0], [0, 0, 1, 0], [], []>} : vector<64x16xbf16>, vector<64x16xbf16>, vector<64x64xf32> -> vector<64x64xf32>
    %c1_54 = arith.constant 1 : index
    %c0_55 = arith.constant 0 : index
    %c0_56 = arith.constant 0 : index
    %133 = vector.load %arg10[%c1_54, %c0_55, %c0_56] : memref<2x64x64xf32, #tpu.memory_space<vmem>>, vector<1x64x64xf32>
    %134 = vector.shape_cast %133 : vector<1x64x64xf32> to vector<64x64xf32>
    %135 = arith.addf %132, %134 : vector<64x64xf32>
    %cst_57 = arith.constant dense<0xFF800000> : vector<64xf32>
    %136 = vector.multi_reduction <maximumf>, %135, %cst_57 [1] : vector<64x64xf32> to vector<64xf32>
    %137 = vector.shape_cast %136 : vector<64xf32> to vector<64x1xf32>
    %138 = vector.broadcast %137 : vector<64x1xf32> to vector<64x64xf32>
    %139 = arith.subf %135, %138 : vector<64x64xf32>
    %140 = math.exp %139 : vector<64x64xf32>
    %cst_58 = arith.constant dense<0.000000e+00> : vector<64xf32>
    %141 = vector.multi_reduction <add>, %140, %cst_58 [1] : vector<64x64xf32> to vector<64xf32>
    %142 = vector.shape_cast %141 : vector<64xf32> to vector<64x1xf32>
    %143 = tpu.reciprocal %142 {approx = true} : vector<64x1xf32> -> vector<64x1xf32>
    %144 = vector.broadcast %143 : vector<64x1xf32> to vector<64x64xf32>
    %145 = arith.mulf %140, %144 : vector<64x64xf32>
    %146 = arith.truncf %145 : vector<64x64xf32> to vector<64x64xbf16>
    %147 = arith.truncf %129 : vector<64x16xf32> to vector<64x16xbf16>
    %cst_59 = arith.constant dense<0.000000e+00> : vector<64x16xf32>
    %148 = tpu.matmul %146, %147, %cst_59 {dimension_numbers = #tpu.dot_dimension_numbers<[1], [0], [0], [1], [0, 0, 1, 1], [], []>} : vector<64x64xbf16>, vector<64x16xbf16>, vector<64x16xf32> -> vector<64x16xf32>
    %149 = vector.shape_cast %148 : vector<64x16xf32> to vector<8x8x16xf32>
    %c0_60 = arith.constant 0 : index
    %c0_61 = arith.constant 0 : index
    %c8_62 = arith.constant 8 : index
    %c16_63 = arith.constant 16 : index
    %150 = vector.load %arg11[%c0_60, %c0_61, %c8_62, %c16_63] : memref<1x8x16x32xf32, #tpu.memory_space<vmem>>, vector<1x8x8x16xf32>
    %151 = vector.shape_cast %150 : vector<1x8x8x16xf32> to vector<8x8x16xf32>
    %152 = vector.shape_cast %149 : vector<8x8x16xf32> to vector<1x8x8x16xf32>
    tpu.vector_store %arg11[%c0_60, %c0_61, %c8_62, %c16_63], %152 {strides = array<i32>} : memref<1x8x16x32xf32, #tpu.memory_space<vmem>>, vector<1x8x8x16xf32>,
    return
  }
  func.func @transform_0(%arg0: i32, %arg1: i32, %arg2: i32) -> (i32, i32, i32, i32) {
    %c0_i32 = arith.constant 0 : i32
    %c0_i32_0 = arith.constant 0 : i32
    return %arg0, %arg1, %arg2, %c0_i32 : i32, i32, i32, i32
  }
  func.func @transform_1(%arg0: i32, %arg1: i32, %arg2: i32) -> (i32, i32, i32) {
    %c0_i32 = arith.constant 0 : i32
    %c0_i32_0 = arith.constant 0 : i32
    %c0_i32_1 = arith.constant 0 : i32
    return %arg0, %c0_i32, %c0_i32_0 : i32, i32, i32
  }
  func.func @transform_2(%arg0: i32, %arg1: i32, %arg2: i32) -> (i32, i32, i32) {
    %c0_i32 = arith.constant 0 : i32
    %c0_i32_0 = arith.constant 0 : i32
    %c0_i32_1 = arith.constant 0 : i32
    return %arg0, %c0_i32, %c0_i32_0 : i32, i32, i32
  }
  func.func @transform_3(%arg0: i32, %arg1: i32, %arg2: i32) -> (i32, i32) {
    %c0_i32 = arith.constant 0 : i32
    %c0_i32_0 = arith.constant 0 : i32
    %c0_i32_1 = arith.constant 0 : i32
    return %c0_i32, %c0_i32_0 : i32, i32
  }
  func.func @transform_4(%arg0: i32, %arg1: i32, %arg2: i32) -> (i32, i32) {
    %c0_i32 = arith.constant 0 : i32
    %c0_i32_0 = arith.constant 0 : i32
    %c0_i32_1 = arith.constant 0 : i32
    return %c0_i32, %c0_i32_0 : i32, i32
  }
  func.func @transform_5(%arg0: i32, %arg1: i32, %arg2: i32) -> (i32, i32) {
    %c0_i32 = arith.constant 0 : i32
    %c0_i32_0 = arith.constant 0 : i32
    %c0_i32_1 = arith.constant 0 : i32
    return %c0_i32, %c0_i32_0 : i32, i32
  }
  func.func @transform_6(%arg0: i32, %arg1: i32, %arg2: i32) -> (i32, i32) {
    %c0_i32 = arith.constant 0 : i32
    %c0_i32_0 = arith.constant 0 : i32
    %c0_i32_1 = arith.constant 0 : i32
    return %c0_i32, %c0_i32_0 : i32, i32
  }
  func.func @transform_7(%arg0: i32, %arg1: i32, %arg2: i32) -> (i32, i32, i32) {
    %c0_i32 = arith.constant 0 : i32
    %c0_i32_0 = arith.constant 0 : i32
    %c0_i32_1 = arith.constant 0 : i32
    %c0_i32_2 = arith.constant 0 : i32
    return %c0_i32, %c0_i32_0, %c0_i32_1 : i32, i32, i32
  }
  func.func @transform_8(%arg0: i32, %arg1: i32, %arg2: i32) -> (i32, i32, i32, i32) {
    %c0_i32 = arith.constant 0 : i32
    %c0_i32_0 = arith.constant 0 : i32
    return %arg0, %arg1, %arg2, %c0_i32 : i32, i32, i32, i32
  }
}

module attributes {stable_mosaic.version = 11 : i64} {
  func.func @rln_stats_kernel(%arg0: i32, %arg1: i32, %arg2: memref<1x128x32xf32, #tpu.memory_space<vmem>>, %arg3: memref<1x1x1xf32, #tpu.memory_space<vmem>>, %arg4: memref<1x1x1xf32, #tpu.memory_space<vmem>>, %arg5: memref<1x1xf32, #tpu.memory_space<vmem>>, %arg6: memref<1x1xf32, #tpu.memory_space<vmem>>) attributes {dimension_semantics = [#tpu.dimension_semantics<parallel>, #tpu.dimension_semantics<arbitrary>], iteration_bounds = array<i64: 2, 2>, scalar_prefetch = 0 : i64, scratch_operands = 2 : i64, tpu.core_type = #tpu.core_type<tc>, window_params = [{transform_indices = @transform_0, window_bounds = array<i64: 1, 128, 32>}, {transform_indices = @transform_1, window_bounds = array<i64: 1, 1, 1>}, {transform_indices = @transform_2, window_bounds = array<i64: 1, 1, 1>}]} {
    %c0_i32 = arith.constant 0 : i32
    %0 = arith.cmpi eq, %arg1, %c0_i32 : i32
    %1 = arith.extui %0 : i1 to i32
    %c0_i32_0 = arith.constant 0 : i32
    %2 = arith.cmpi ne, %1, %c0_i32_0 : i32
    scf.if %2 {
      %cst_13 = arith.constant 0.000000e+00 : f32
      %25 = vector.broadcast %cst_13 : f32 to vector<1x1xf32>
      %c0_14 = arith.constant 0 : index
      %c0_15 = arith.constant 0 : index
      %26 = vector.load %arg5[%c0_14, %c0_15] : memref<1x1xf32, #tpu.memory_space<vmem>>, vector<1x1xf32>
      tpu.vector_store %arg5[%c0_14, %c0_15], %25 {strides = array<i32>} : memref<1x1xf32, #tpu.memory_space<vmem>>, vector<1x1xf32>,
      %cst_16 = arith.constant 0.000000e+00 : f32
      %27 = vector.broadcast %cst_16 : f32 to vector<1x1xf32>
      %c0_17 = arith.constant 0 : index
      %c0_18 = arith.constant 0 : index
      %28 = vector.load %arg6[%c0_17, %c0_18] : memref<1x1xf32, #tpu.memory_space<vmem>>, vector<1x1xf32>
      tpu.vector_store %arg6[%c0_17, %c0_18], %27 {strides = array<i32>} : memref<1x1xf32, #tpu.memory_space<vmem>>, vector<1x1xf32>,
    } else {
    }
    %c0 = arith.constant 0 : index
    %c0_1 = arith.constant 0 : index
    %c0_2 = arith.constant 0 : index
    %3 = vector.load %arg2[%c0, %c0_1, %c0_2] : memref<1x128x32xf32, #tpu.memory_space<vmem>>, vector<1x128x32xf32>
    %4 = vector.shape_cast %3 : vector<1x128x32xf32> to vector<128x32xf32>
    %c0_3 = arith.constant 0 : index
    %c0_4 = arith.constant 0 : index
    %5 = vector.load %arg5[%c0_3, %c0_4] : memref<1x1xf32, #tpu.memory_space<vmem>>, vector<1x1xf32>
    %6 = vector.shape_cast %4 : vector<128x32xf32> to vector<1x128x32xf32>
    %cst = arith.constant dense<0.000000e+00> : vector<1xf32>
    %7 = vector.multi_reduction <add>, %6, %cst [1, 2] : vector<1x128x32xf32> to vector<1xf32>
    %8 = vector.shape_cast %7 : vector<1xf32> to vector<1x1x1xf32>
    %9 = vector.extract %8[0, 0, 0] : f32 from vector<1x1x1xf32>
    %10 = vector.broadcast %9 : f32 to vector<1x1xf32>
    %11 = arith.addf %5, %10 : vector<1x1xf32>
    %c0_5 = arith.constant 0 : index
    %c0_6 = arith.constant 0 : index
    %12 = vector.load %arg5[%c0_5, %c0_6] : memref<1x1xf32, #tpu.memory_space<vmem>>, vector<1x1xf32>
    tpu.vector_store %arg5[%c0_5, %c0_6], %11 {strides = array<i32>} : memref<1x1xf32, #tpu.memory_space<vmem>>, vector<1x1xf32>,
    %c0_7 = arith.constant 0 : index
    %c0_8 = arith.constant 0 : index
    %13 = vector.load %arg6[%c0_7, %c0_8] : memref<1x1xf32, #tpu.memory_space<vmem>>, vector<1x1xf32>
    %14 = arith.mulf %4, %4 : vector<128x32xf32>
    %15 = vector.shape_cast %14 : vector<128x32xf32> to vector<1x128x32xf32>
    %cst_9 = arith.constant dense<0.000000e+00> : vector<1xf32>
    %16 = vector.multi_reduction <add>, %15, %cst_9 [1, 2] : vector<1x128x32xf32> to vector<1xf32>
    %17 = vector.shape_cast %16 : vector<1xf32> to vector<1x1x1xf32>
    %18 = vector.extract %17[0, 0, 0] : f32 from vector<1x1x1xf32>
    %19 = vector.broadcast %18 : f32 to vector<1x1xf32>
    %20 = arith.addf %13, %19 : vector<1x1xf32>
    %c0_10 = arith.constant 0 : index
    %c0_11 = arith.constant 0 : index
    %21 = vector.load %arg6[%c0_10, %c0_11] : memref<1x1xf32, #tpu.memory_space<vmem>>, vector<1x1xf32>
    tpu.vector_store %arg6[%c0_10, %c0_11], %20 {strides = array<i32>} : memref<1x1xf32, #tpu.memory_space<vmem>>, vector<1x1xf32>,
    %c1_i32 = arith.constant 1 : i32
    %22 = arith.cmpi eq, %arg1, %c1_i32 : i32
    %23 = arith.extui %22 : i1 to i32
    %c0_i32_12 = arith.constant 0 : i32
    %24 = arith.cmpi ne, %23, %c0_i32_12 : i32
    scf.if %24 {
      %c0_13 = arith.constant 0 : index
      %c0_14 = arith.constant 0 : index
      %25 = vector.load %arg5[%c0_13, %c0_14] : memref<1x1xf32, #tpu.memory_space<vmem>>, vector<1x1xf32>
      %cst_15 = arith.constant 1.22070313E-4 : f32
      %26 = vector.broadcast %cst_15 : f32 to vector<1x1xf32>
      %27 = arith.mulf %25, %26 : vector<1x1xf32>
      %c0_16 = arith.constant 0 : index
      %c0_17 = arith.constant 0 : index
      %28 = vector.load %arg6[%c0_16, %c0_17] : memref<1x1xf32, #tpu.memory_space<vmem>>, vector<1x1xf32>
      %cst_18 = arith.constant 1.22070313E-4 : f32
      %29 = vector.broadcast %cst_18 : f32 to vector<1x1xf32>
      %30 = arith.mulf %28, %29 : vector<1x1xf32>
      %31 = arith.mulf %27, %27 : vector<1x1xf32>
      %32 = arith.subf %30, %31 : vector<1x1xf32>
      %c0_19 = arith.constant 0 : index
      %c0_20 = arith.constant 0 : index
      %c0_21 = arith.constant 0 : index
      %33 = vector.load %arg3[%c0_19, %c0_20, %c0_21] : memref<1x1x1xf32, #tpu.memory_space<vmem>>, vector<1x1x1xf32>
      %34 = vector.shape_cast %33 : vector<1x1x1xf32> to vector<1x1xf32>
      %35 = vector.shape_cast %27 : vector<1x1xf32> to vector<1x1x1xf32>
      tpu.vector_store %arg3[%c0_19, %c0_20, %c0_21], %35 {strides = array<i32>} : memref<1x1x1xf32, #tpu.memory_space<vmem>>, vector<1x1x1xf32>,
      %cst_22 = arith.constant 9.99999974E-6 : f32
      %36 = vector.broadcast %cst_22 : f32 to vector<1x1xf32>
      %37 = arith.addf %32, %36 : vector<1x1xf32>
      %38 = math.sqrt %37 : vector<1x1xf32>
      %c0_23 = arith.constant 0 : index
      %c0_24 = arith.constant 0 : index
      %c0_25 = arith.constant 0 : index
      %39 = vector.load %arg4[%c0_23, %c0_24, %c0_25] : memref<1x1x1xf32, #tpu.memory_space<vmem>>, vector<1x1x1xf32>
      %40 = vector.shape_cast %39 : vector<1x1x1xf32> to vector<1x1xf32>
      %41 = vector.shape_cast %38 : vector<1x1xf32> to vector<1x1x1xf32>
      tpu.vector_store %arg4[%c0_23, %c0_24, %c0_25], %41 {strides = array<i32>} : memref<1x1x1xf32, #tpu.memory_space<vmem>>, vector<1x1x1xf32>,
    } else {
    }
    return
  }
  func.func @transform_0(%arg0: i32, %arg1: i32) -> (i32, i32, i32) {
    %c0_i32 = arith.constant 0 : i32
    %c0_i32_0 = arith.constant 0 : i32
    return %arg0, %arg1, %c0_i32 : i32, i32, i32
  }
  func.func @transform_1(%arg0: i32, %arg1: i32) -> (i32, i32, i32) {
    %c0_i32 = arith.constant 0 : i32
    %c0_i32_0 = arith.constant 0 : i32
    %c0_i32_1 = arith.constant 0 : i32
    return %arg0, %c0_i32, %c0_i32_0 : i32, i32, i32
  }
  func.func @transform_2(%arg0: i32, %arg1: i32) -> (i32, i32, i32) {
    %c0_i32 = arith.constant 0 : i32
    %c0_i32_0 = arith.constant 0 : i32
    %c0_i32_1 = arith.constant 0 : i32
    return %arg0, %c0_i32, %c0_i32_0 : i32, i32, i32
  }
}

</mosaic_0001>

<llo_original>
// kernel: transformer_block_forward.3
$region0: #{transformer_block_forward.3}
  #allocation0 [shape = 'u32[]', space=smem, size = 0x4, offset = 0x4, fixed_abs, tag = 'smem constant byte address 0x4 - core index']
  #allocation1 [shape = 'u32[144,128]{1,0:T(1,128)}', space=vmem, size = 0x12000, scoped, tag = 'internal scratch']
  #allocation2 [shape = 'f32[1,1]{1,0:T(1,128)}', space=vmem, size = 0x200, scoped, tag = 'scratch operand']
  #allocation3 [shape = 'f32[1,1]{1,0:T(1,128)}', space=vmem, size = 0x200, scoped, tag = 'scratch operand']
  %s0 = inlined_call_operand.hbm [shape: f32[2,256,32], index: 0, kind: input, shape index: {}]
  %s1 = inlined_call_operand.vmem [shape: f32[2,1,1], index: 1, kind: output, shape index: {0}]
  %s2 = inlined_call_operand.vmem [shape: f32[2,1,1], index: 2, kind: output, shape index: {1}]
  %3 = xla_tuple %s1, %s2
  %s4 = sld [smem:[#allocation0]]
  $region57: #{transformer_block_forward.3} parent=0
    _
  %s6 = ssub.s32 1, %s4
  %s7 = scalar_select 0, %s6, %s4
  $region1: #{transformer_block_forward.3} parent=0
    #allocation4 [shape = 'u8[131072]{0}', space=vmem, size = 0x20000, scoped, tag = 'input window, operand 0']
    #allocation5 [shape = 's32[2]{0}', space=sflag, size = 0x8, scoped, tag = 'scoped memory for transformer_block_forward.3']
    %8 = vsyncpa [#allocation5], 0
    %s9 = scalar_lea.sflag [#allocation5], 1
    %10 = vsyncpa %s9, 0
    loop: start=0, step=1, limit=6
    $region2: #{transformer_block_forward.3} parent=1 // loop_pre_header
      _
    $region3: #{transformer_block_forward.3} parent=1 // loop_header
      %s12 = sphi 0, %s16
      %p13 = scmp.ge.s32.totalorder %s12, 6
      %s19 = sphi 0, %s31
      %s20 = sphi 0, %s27
      %s21 = sphi 0, %s19
      %s22 = sphi 0, %s20
      %s23 = sphi 0, %s21
      %s24 = sphi 0, %s22
      %s36 = sphi 0, %s38
      %s39 = sphi 0, %s36
      %s40 = sphi 0, %s39
      %s56 = sphi 0, %s40
      %s62 = sphi 0, %s64
      %s65 = sphi 0, %s62
      %s66 = sphi 0, %s65
      %s82 = sphi 0, %s66
      %s88 = sphi 0, %s90
      %s91 = sphi 0, %s88
      %s92 = sphi 0, %s91
      %s108 = sphi 0, %s92
    $region4: #{transformer_block_forward.3} parent=1 // loop_header_branch
      %15 = sbr.rel (%p13) target = $region8
    $region5: #{transformer_block_forward.3} parent=1 // loop_body
      %s17 = ssub.s32 %s12, 1
      %s18 = ssub.s32 %s12, 2
      %s25 = sadd.s32 1, %s20
      %p26 = scmp.ge.s32.totalorder %s25, 2
      %s27 = scalar_select %p26, 0, %s25
      %s28 = sadd.s32 1, %s19
      %s29 = scalar_select %p26, %s28, %s19
      %p30 = scmp.ge.s32.totalorder %s29, 2
      %s31 = scalar_select %p30, 0, %s29
      %s32 = ssub.s32 %s19, %s31
      %s33 = ssub.s32 %s20, %s27
      %s34 = sor.u32 %s32, %s33
      %p35 = scmp.eq.s32.totalorder %s34, 0
      %s37 = sadd.s32 %s36, 1
      %s38 = scalar_select %p35, %s36, %s37
      %p41 = pneg %p35
      %p42 = scmp.eq.s32.totalorder %s12, 3
      %p43 = por %p41, %p42
      %p44 = scmp.ne.s32.totalorder %s36, %s39
      %p45 = scmp.eq.s32.totalorder %s12, 0
      %p46 = por %p44, %p45
      %p47 = scmp.ne.s32.totalorder %s36, %s39
      %p48 = scmp.eq.s32.totalorder %s17, 3
      %p49 = por %p47, %p48
      %p50 = scmp.ne.s32.totalorder %s39, %s40
      %p51 = scmp.eq.s32.totalorder %s17, 0
      %p52 = por %p50, %p51
      %p53 = scmp.ne.s32.totalorder %s39, %s40
      %p54 = scmp.eq.s32.totalorder %s18, 3
      %p55 = por %p53, %p54
      %p57 = scmp.ne.s32.totalorder %s40, %s56
      %p58 = scmp.eq.s32.totalorder %s18, 0
      %p59 = por %p57, %p58
      %s60 = ssub.s32 %s19, %s31
      %p61 = scmp.eq.s32.totalorder %s60, 0
      %s63 = sadd.s32 %s62, 1
      %s64 = scalar_select %p61, %s62, %s63
      %p67 = pneg %p61
      %p68 = scmp.eq.s32.totalorder %s12, 3
      %p69 = por %p67, %p68
      %p70 = scmp.ne.s32.totalorder %s62, %s65
      %p71 = scmp.eq.s32.totalorder %s12, 0
      %p72 = por %p70, %p71
      %p73 = scmp.ne.s32.totalorder %s62, %s65
      %p74 = scmp.eq.s32.totalorder %s17, 3
      %p75 = por %p73, %p74
      %p76 = scmp.ne.s32.totalorder %s65, %s66
      %p77 = scmp.eq.s32.totalorder %s17, 0
      %p78 = por %p76, %p77
      %p79 = scmp.ne.s32.totalorder %s65, %s66
      %p80 = scmp.eq.s32.totalorder %s18, 3
      %p81 = por %p79, %p80
      %p83 = scmp.ne.s32.totalorder %s66, %s82
      %p84 = scmp.eq.s32.totalorder %s18, 0
      %p85 = por %p83, %p84
      %s86 = ssub.s32 %s19, %s31
      %p87 = scmp.eq.s32.totalorder %s86, 0
      %s89 = sadd.s32 %s88, 1
      %s90 = scalar_select %p87, %s88, %s89
      %p93 = pneg %p87
      %p94 = scmp.eq.s32.totalorder %s12, 3
      %p95 = por %p93, %p94
      %p96 = scmp.ne.s32.totalorder %s88, %s91
      %p97 = scmp.eq.s32.totalorder %s12, 0
      %p98 = por %p96, %p97
      %p99 = scmp.ne.s32.totalorder %s88, %s91
      %p100 = scmp.eq.s32.totalorder %s17, 3
      %p101 = por %p99, %p100
      %p102 = scmp.ne.s32.totalorder %s91, %s92
      %p103 = scmp.eq.s32.totalorder %s17, 0
      %p104 = por %p102, %p103
      %p105 = scmp.ne.s32.totalorder %s91, %s92
      %p106 = scmp.eq.s32.totalorder %s18, 3
      %p107 = por %p105, %p106
      %p109 = scmp.ne.s32.totalorder %s92, %s108
      %p110 = scmp.eq.s32.totalorder %s18, 0
      %p111 = por %p109, %p110
      %p112 = scmp.le.s32.totalorder 1, %s12
      %p113 = scmp.lt.s32.totalorder %s12, 5
      %p114 = pnand %p112, %p113
      %p115 = pneg %p114
      // Predicated region
      $region9: #{transformer_block_forward.3} parent=5 // pred_check
        _
      $region10: #{transformer_block_forward.3} parent=5 // pred_check_branch
        %117 = sbr.rel (%p114) target = $region12
      $region11: #{transformer_block_forward.3} parent=5 // pred_region
        %s118 = ssub.s32 %s12, 1
      $region12: #{transformer_block_forward.3} parent=5 // pred_fallthru
        _
      %p119 = scmp.lt.s32.totalorder %s12, 4
      // Predicated region
      $region13: #{transformer_block_forward.3} parent=5 // pred_check
        %p120 = pneg %p119
      $region14: #{transformer_block_forward.3} parent=5 // pred_check_branch
        %122 = sbr.rel (%p120) target = $region16
      $region15: #{transformer_block_forward.3} parent=5 // pred_region
        // Predicated region
        $region17: #{transformer_block_forward.3} parent=15 // pred_check
          %p123 = pneg %p46
        $region18: #{transformer_block_forward.3} parent=15 // pred_check_branch
          %125 = sbr.rel (%p123) target = $region20
        $region19: #{transformer_block_forward.3} parent=15 // pred_region
          %s126 = sand.u32 %s36, 1
          %s127 = scalar_lea.sflag [#allocation5], %s126
          %s128 = sand.u32 %s36, 1
          %s129 = smul.addr %s128, 128
          %s130 = scalar_lea.vmem [#allocation4], %s129
          %s131 = smul.u32 16, %s20
          %s133 = ssub.s32 2048, 2048
          %134 = vsyncadd %s127, %s133
          %s135 = smul.addr %s19, 32
          %s136 = sadd.s32 %s131, %s135
          %s137 = smul.addr %s136, 128
          %s138 = scalar_lea.hbm %s0, %s137
          %s139 = sshll.u32 %s130, 4
          %s140 = int_to_ptr.vmem [resolvable:$true] %s139
          %145 = dma.hbm_to_vmem [thread:$0]  %s138, 2048, %s140, %s127, 128, 128, 8
        $region20: #{transformer_block_forward.3} parent=15 // pred_fallthru
          _
      $region16: #{transformer_block_forward.3} parent=5 // pred_fallthru
        _
      %p146 = scmp.le.s32.totalorder 1, %s12
      %p147 = scmp.lt.s32.totalorder %s12, 5
      %p148 = pnand %p146, %p147
      %p149 = pneg %p148
      // Predicated region
      $region21: #{transformer_block_forward.3} parent=5 // pred_check
        _
      $region22: #{transformer_block_forward.3} parent=5 // pred_check_branch
        %151 = sbr.rel (%p148) target = $region24
      $region23: #{transformer_block_forward.3} parent=5 // pred_region
        %s152 = ssub.s32 %s12, 1
        %s153 = sand.u32 %s39, 1
        %s154 = scalar_lea.sflag [#allocation5], %s153
        %s155 = sand.u32 %s39, 1
        %s156 = smul.addr %s155, 128
        %s157 = scalar_lea.vmem [#allocation4], %s156
        // Predicated region
        $region25: #{transformer_block_forward.3} parent=23 // pred_check
          %p158 = pneg %p52
        $region26: #{transformer_block_forward.3} parent=23 // pred_check_branch
          %160 = sbr.rel (%p158) target = $region28
        $region27: #{transformer_block_forward.3} parent=23 // pred_region
          %161 = dma.done %s154, 2048
        $region28: #{transformer_block_forward.3} parent=23 // pred_fallthru
          _
        %s162 = sand.u32 %s39, 1
        %s163 = scalar_lea.sflag [#allocation5], %s162
        %s164 = sand.u32 %s39, 1
        %s165 = smul.addr %s164, 128
        %s166 = scalar_lea.vmem [#allocation4], %s165
        %p167 = pneg %p52
        %p168 = pneg %p49
        %p169 = pneg %p78
        %p170 = pneg %p75
        %p171 = scmp.lt.s32.totalorder %s21, 1
        %s172 = scalar_select %p171, %s21, 1
        %s173 = scalar_lea.vmem %s1, %s172
        %p174 = pneg %p104
        %p175 = pneg %p101
        %p176 = scmp.lt.s32.totalorder %s21, 1
        %s177 = scalar_select %p176, %s21, 1
        %s178 = scalar_lea.vmem %s2, %s177
        %s179 = smul.u32 16, %s22
        %p180 = scmp.lt.s32.totalorder %s21, 1
        %s181 = scalar_select %p180, %s21, 1
        %s182 = scalar_lea.vmem %s1, %s181
        %p183 = scmp.lt.s32.totalorder %s21, 1
        %s184 = scalar_select %p183, %s21, 1
        %s185 = scalar_lea.vmem %s2, %s184
        %p186 = scmp.eq.s32.totalorder %s22, 0
        // Predicated region
        $region29: #{transformer_block_forward.3} parent=23 // pred_check
          %p187 = pneg %p186
        $region30: #{transformer_block_forward.3} parent=23 // pred_check_branch
          %189 = sbr.rel (%p187) target = $region32
        $region31: #{transformer_block_forward.3} parent=23 // pred_region
          %vm190 = vcmask 0
          %191 = vst.msk [vmem:[#allocation2] sm:$0x1] %vm190, 0.0
          %192 = vst.msk [vmem:[#allocation3] sm:$0x1] %vm190, 0.0
        $region32: #{transformer_block_forward.3} parent=23 // pred_fallthru
          _
        %v193 = vld [vmem:[%s157] sm:$0xff]
        %v194 = vld [vmem:[%s157 + $0x8] sm:$0xff]
        %v195 = vld [vmem:[%s157 + $0x10] sm:$0xff]
        %v196 = vld [vmem:[%s157 + $0x18] sm:$0xff]
        %v197 = vld [vmem:[%s157 + $0x20] sm:$0xff]
        %v198 = vld [vmem:[%s157 + $0x28] sm:$0xff]
        %v199 = vld [vmem:[%s157 + $0x30] sm:$0xff]
        %v200 = vld [vmem:[%s157 + $0x38] sm:$0xff]
        %v201 = vld [vmem:[%s157 + $0x40] sm:$0xff]
        %v202 = vld [vmem:[%s157 + $0x48] sm:$0xff]
        %v203 = vld [vmem:[%s157 + $0x50] sm:$0xff]
        %v204 = vld [vmem:[%s157 + $0x58] sm:$0xff]
        %v205 = vld [vmem:[%s157 + $0x60] sm:$0xff]
        %v206 = vld [vmem:[%s157 + $0x68] sm:$0xff]
        %v207 = vld [vmem:[%s157 + $0x70] sm:$0xff]
        %v208 = vld [vmem:[%s157 + $0x78] sm:$0xff]
        %v209 = vld [vmem:[#allocation2] sm:$0x1]
        %vm210 = vcmask 261120
        %v211 = vsel %vm210, %v193, 0.0
        %v212 = vsel %vm210, %v194, 0.0
        %v213 = vadd.f32 %v211, %v212
        %v214 = vsel %vm210, %v195, 0.0
        %v215 = vadd.f32 %v213, %v214
        %v216 = vsel %vm210, %v196, 0.0
        %v217 = vadd.f32 %v215, %v216
        %v218 = vsel %vm210, %v197, 0.0
        %v219 = vadd.f32 %v217, %v218
        %v220 = vsel %vm210, %v198, 0.0
        %v221 = vadd.f32 %v219, %v220
        %v222 = vsel %vm210, %v199, 0.0
        %v223 = vadd.f32 %v221, %v222
        %v224 = vsel %vm210, %v200, 0.0
        %v225 = vadd.f32 %v223, %v224
        %v226 = vsel %vm210, %v201, 0.0
        %v227 = vadd.f32 %v225, %v226
        %v228 = vsel %vm210, %v202, 0.0
        %v229 = vadd.f32 %v227, %v228
        %v230 = vsel %vm210, %v203, 0.0
        %v231 = vadd.f32 %v229, %v230
        %v232 = vsel %vm210, %v204, 0.0
        %v233 = vadd.f32 %v231, %v232
        %v234 = vsel %vm210, %v205, 0.0
        %v235 = vadd.f32 %v233, %v234
        %v236 = vsel %vm210, %v206, 0.0
        %v237 = vadd.f32 %v235, %v236
        %v238 = vsel %vm210, %v207, 0.0
        %v239 = vadd.f32 %v237, %v238
        %v240 = vsel %vm210, %v208, 0.0
        %v241 = vadd.f32 %v239, %v240
        %242 = vadd.xlane.f32.xlu0 %v241
        %v243 = vpop.xlane.xlu0 %242
        %v244 = vrot.slane %v243, 4
        %v245 = vadd.f32 %v243, %v244
        %v246 = vrot.slane %v245, 2
        %v247 = vadd.f32 %v245, %v246
        %v248 = vrot.slane %v247, 1
        %v249 = vadd.f32 %v247, %v248
        %s250 = vtos %v249
        %v251 = vstv %s250
        %v252 = vadd.f32 %v209, %v251
        %vm253 = vcmask 0
        %254 = vst.msk [vmem:[#allocation2] sm:$0x1] %vm253, %v252
        %v255 = vld [vmem:[#allocation3] sm:$0x1]
        %v256 = vmul.f32 %v193, %v193
        %v257 = vmul.f32 %v194, %v194
        %v258 = vmul.f32 %v195, %v195
        %v259 = vmul.f32 %v196, %v196
        %v260 = vmul.f32 %v197, %v197
        %v261 = vmul.f32 %v198, %v198
        %v262 = vmul.f32 %v199, %v199
        %v263 = vmul.f32 %v200, %v200
        %v264 = vmul.f32 %v201, %v201
        %v265 = vmul.f32 %v202, %v202
        %v266 = vmul.f32 %v203, %v203
        %v267 = vmul.f32 %v204, %v204
        %v268 = vmul.f32 %v205, %v205
        %v269 = vmul.f32 %v206, %v206
        %v270 = vmul.f32 %v207, %v207
        %v271 = vmul.f32 %v208, %v208
        %v272 = vsel %vm210, %v256, 0.0
        %v273 = vsel %vm210, %v257, 0.0
        %v274 = vadd.f32 %v272, %v273
        %v275 = vsel %vm210, %v258, 0.0
        %v276 = vadd.f32 %v274, %v275
        %v277 = vsel %vm210, %v259, 0.0
        %v278 = vadd.f32 %v276, %v277
        %v279 = vsel %vm210, %v260, 0.0
        %v280 = vadd.f32 %v278, %v279
        %v281 = vsel %vm210, %v261, 0.0
        %v282 = vadd.f32 %v280, %v281
        %v283 = vsel %vm210, %v262, 0.0
        %v284 = vadd.f32 %v282, %v283
        %v285 = vsel %vm210, %v263, 0.0
        %v286 = vadd.f32 %v284, %v285
        %v287 = vsel %vm210, %v264, 0.0
        %v288 = vadd.f32 %v286, %v287
        %v289 = vsel %vm210, %v265, 0.0
        %v290 = vadd.f32 %v288, %v289
        %v291 = vsel %vm210, %v266, 0.0
        %v292 = vadd.f32 %v290, %v291
        %v293 = vsel %vm210, %v267, 0.0
        %v294 = vadd.f32 %v292, %v293
        %v295 = vsel %vm210, %v268, 0.0
        %v296 = vadd.f32 %v294, %v295
        %v297 = vsel %vm210, %v269, 0.0
        %v298 = vadd.f32 %v296, %v297
        %v299 = vsel %vm210, %v270, 0.0
        %v300 = vadd.f32 %v298, %v299
        %v301 = vsel %vm210, %v271, 0.0
        %v302 = vadd.f32 %v300, %v301
        %303 = vadd.xlane.f32.xlu0 %v302
        %v304 = vpop.xlane.xlu0 %303
        %v305 = vrot.slane %v304, 4
        %v306 = vadd.f32 %v304, %v305
        %v307 = vrot.slane %v306, 2
        %v308 = vadd.f32 %v306, %v307
        %v309 = vrot.slane %v308, 1
        %v310 = vadd.f32 %v308, %v309
        %s311 = vtos %v310
        %v312 = vstv %s311
        %v313 = vadd.f32 %v255, %v312
        %314 = vst.msk [vmem:[#allocation3] sm:$0x1] %vm253, %v313
        %p315 = scmp.eq.s32.totalorder %s22, 1
        // Predicated region
        $region33: #{transformer_block_forward.3} parent=23 // pred_check
          %p316 = pneg %p315
        $region34: #{transformer_block_forward.3} parent=23 // pred_check_branch
          %318 = sbr.rel (%p316) target = $region36
        $region35: #{transformer_block_forward.3} parent=23 // pred_region
          %v319 = vld [vmem:[#allocation2] sm:$0x1]
          %v320 = vmul.f32 %v319, 0.00012207031
          %v321 = vld [vmem:[#allocation3] sm:$0x1]
          %v322 = vmul.f32 %v321, 0.00012207031
          %v323 = vmul.f32 %v320, %v320
          %v324 = vsub.f32 %v322, %v323
          %325 = vst.msk [vmem:[%s182] sm:$0x1] %vm253, %v320
          %v326 = vadd.f32 %v324, 1e-05
          %v327 = vrsqrt.pop %v326
          %v328 = vmul.f32 %v326, %v327
          %vm329 = vcmp.eq.f32.partialorder %v326, inf
          %v330 = vsel %vm329, %v326, %v328
          %vm331 = vcmp.eq.f32.partialorder %v326, 0.0
          %v332 = vand.u32 %v326, 2147483648
          %v333 = vsel %vm331, %v332, %v330
          %334 = vst.msk [vmem:[%s185] sm:$0x1] %vm253, %v333
        $region36: #{transformer_block_forward.3} parent=23 // pred_fallthru
          _
        %p335 = scmp.lt.s32.totalorder %s21, 1
        %s336 = scalar_select %p335, %s21, 1
        %s337 = scalar_lea.vmem %s1, %s336
        %p338 = scmp.lt.s32.totalorder %s21, 1
        %s339 = scalar_select %p338, %s21, 1
        %s340 = scalar_lea.vmem %s2, %s339
        // Predicated region
        $region37: #{transformer_block_forward.3} parent=23 // pred_check
          %p341 = pneg %p75
        $region38: #{transformer_block_forward.3} parent=23 // pred_check_branch
          %343 = sbr.rel (%p341) target = $region40
        $region39: #{transformer_block_forward.3} parent=23 // pred_region
          _
        $region40: #{transformer_block_forward.3} parent=23 // pred_fallthru
          _
        // Predicated region
        $region41: #{transformer_block_forward.3} parent=23 // pred_check
          %p344 = pneg %p101
        $region42: #{transformer_block_forward.3} parent=23 // pred_check_branch
          %346 = sbr.rel (%p344) target = $region44
        $region43: #{transformer_block_forward.3} parent=23 // pred_region
          _
        $region44: #{transformer_block_forward.3} parent=23 // pred_fallthru
          _
      $region24: #{transformer_block_forward.3} parent=5 // pred_fallthru
        _
      %p347 = scmp.le.s32.totalorder 2, %s12
      // Predicated region
      $region45: #{transformer_block_forward.3} parent=5 // pred_check
        %p348 = pneg %p347
      $region46: #{transformer_block_forward.3} parent=5 // pred_check_branch
        %350 = sbr.rel (%p348) target = $region48
      $region47: #{transformer_block_forward.3} parent=5 // pred_region
        %s351 = ssub.s32 %s12, 2
        // Predicated region
        $region49: #{transformer_block_forward.3} parent=47 // pred_check
          %p352 = pneg %p81
        $region50: #{transformer_block_forward.3} parent=47 // pred_check_branch
          %354 = sbr.rel (%p352) target = $region52
        $region51: #{transformer_block_forward.3} parent=47 // pred_region
          %p355 = scmp.lt.s32.totalorder %s23, 1
          %s356 = scalar_select %p355, %s23, 1
          %s357 = scalar_lea.vmem %s1, %s356
        $region52: #{transformer_block_forward.3} parent=47 // pred_fallthru
          _
        // Predicated region
        $region53: #{transformer_block_forward.3} parent=47 // pred_check
          %p358 = pneg %p107
        $region54: #{transformer_block_forward.3} parent=47 // pred_check_branch
          %360 = sbr.rel (%p358) target = $region56
        $region55: #{transformer_block_forward.3} parent=47 // pred_region
          %p361 = scmp.lt.s32.totalorder %s23, 1
          %s362 = scalar_select %p361, %s23, 1
          %s363 = scalar_lea.vmem %s2, %s362
        $region56: #{transformer_block_forward.3} parent=47 // pred_fallthru
          _
      $region48: #{transformer_block_forward.3} parent=5 // pred_fallthru
        _
    $region6: #{transformer_block_forward.3} parent=1 // loop_footer
      %s16 = sadd.s32 1, %s12
    $region7: #{transformer_block_forward.3} parent=1 // loop_footer_branch
      %11 = sbr.rel target = $region3
    $region8: #{transformer_block_forward.3} parent=1 // loop_exit
      _
    %364 = vsyncpa [#allocation5], 1
    %s365 = scalar_lea.sflag [#allocation5], 1
    %366 = vsyncpa %s365, 1

// kernel: transformer_block_forward.5
$region0: #{transformer_block_forward.5}
  #allocation0 [shape = 'u32[]', space=smem, size = 0x4, offset = 0x4, fixed_abs, tag = 'smem constant byte address 0x4 - core index']
  #allocation1 [shape = 'u32[144,128]{1,0:T(1,128)}', space=vmem, size = 0x12000, scoped, tag = 'internal scratch']
  %s0 = inlined_call_operand.vmem [shape: f32[2,256,32], index: 0, kind: input, shape index: {}]
  %s1 = inlined_call_operand.vmem [shape: f32[2,256,32], index: 1, kind: input, shape index: {}]
  %s2 = inlined_call_operand.vmem [shape: f32[2,1,1], index: 2, kind: input, shape index: {}]
  %s3 = inlined_call_operand.vmem [shape: f32[2,1,1], index: 3, kind: input, shape index: {}]
  %s4 = inlined_call_operand.vmem [shape: f32[1,32], index: 4, kind: input, shape index: {}]
  %s5 = inlined_call_operand.vmem [shape: f32[1,32], index: 5, kind: input, shape index: {}]
  %s6 = inlined_call_operand.vmem [shape: f32[1,32], index: 6, kind: input, shape index: {}]
  %s7 = inlined_call_operand.vmem [shape: f32[1,32], index: 7, kind: input, shape index: {}]
  %s8 = inlined_call_operand.vmem [shape: f32[32,32], index: 8, kind: input, shape index: {}]
  %s9 = inlined_call_operand.vmem [shape: f32[1,32], index: 9, kind: input, shape index: {}]
  %s10 = inlined_call_operand.vmem [shape: f32[32,128], index: 10, kind: input, shape index: {}]
  %s11 = inlined_call_operand.vmem [shape: f32[1,128], index: 11, kind: input, shape index: {}]
  %s12 = inlined_call_operand.vmem [shape: f32[128,32], index: 12, kind: input, shape index: {}]
  %s13 = inlined_call_operand.vmem [shape: f32[1,32], index: 13, kind: input, shape index: {}]
  %s14 = inlined_call_operand.hbm [shape: f32[2,256,32], index: 14, kind: output, shape index: {}]
  %s15 = sld [smem:[#allocation0]]
  $region89: #{transformer_block_forward.5} parent=0
    _
  %s17 = ssub.s32 1, %s15
  %s18 = scalar_select 0, %s17, %s15
  $region1: #{transformer_block_forward.5} parent=0
    #allocation2 [shape = 'u8[131072]{0}', space=vmem, size = 0x20000, scoped, tag = 'output window, operand 0']
    #allocation3 [shape = 's32[2]{0}', space=sflag, size = 0x8, scoped, tag = 'scoped memory for transformer_block_forward.5']
    %19 = vsyncpa [#allocation3], 0
    %s20 = scalar_lea.sflag [#allocation3], 1
    %21 = vsyncpa %s20, 0
    loop: start=0, step=1, limit=6
    $region2: #{transformer_block_forward.5} parent=1 // loop_pre_header
      _
    $region3: #{transformer_block_forward.5} parent=1 // loop_header
      %s23 = sphi 0, %s27
      %p24 = scmp.ge.s32.totalorder %s23, 6
      %s30 = sphi 0, %s42
      %s31 = sphi 0, %s38
      %s32 = sphi 0, %s30
      %s33 = sphi 0, %s31
      %s34 = sphi 0, %s32
      %s35 = sphi 0, %s33
      %s47 = sphi 0, %s49
      %s50 = sphi 0, %s47
      %s51 = sphi 0, %s50
      %s67 = sphi 0, %s51
      %s75 = sphi 0, %s77
      %s78 = sphi 0, %s75
      %s79 = sphi 0, %s78
      %s95 = sphi 0, %s79
      %s101 = sphi 0, %s103
      %s104 = sphi 0, %s101
      %s105 = sphi 0, %s104
      %s121 = sphi 0, %s105
      %s127 = sphi 0, %s129
      %s130 = sphi 0, %s127
      %s131 = sphi 0, %s130
      %s147 = sphi 0, %s131
      %s151 = sphi 0, %s151
      %s153 = sphi 0, %s151
      %s154 = sphi 0, %s153
      %s168 = sphi 0, %s154
      %s172 = sphi 0, %s172
      %s174 = sphi 0, %s172
      %s175 = sphi 0, %s174
      %s189 = sphi 0, %s175
      %s193 = sphi 0, %s193
      %s195 = sphi 0, %s193
      %s196 = sphi 0, %s195
      %s210 = sphi 0, %s196
      %s214 = sphi 0, %s214
      %s216 = sphi 0, %s214
      %s217 = sphi 0, %s216
      %s231 = sphi 0, %s217
      %s235 = sphi 0, %s235
      %s237 = sphi 0, %s235
      %s238 = sphi 0, %s237
      %s252 = sphi 0, %s238
      %s256 = sphi 0, %s256
      %s258 = sphi 0, %s256
      %s259 = sphi 0, %s258
      %s273 = sphi 0, %s259
      %s277 = sphi 0, %s277
      %s279 = sphi 0, %s277
      %s280 = sphi 0, %s279
      %s294 = sphi 0, %s280
      %s298 = sphi 0, %s298
      %s300 = sphi 0, %s298
      %s301 = sphi 0, %s300
      %s315 = sphi 0, %s301
      %s319 = sphi 0, %s319
      %s321 = sphi 0, %s319
      %s322 = sphi 0, %s321
      %s336 = sphi 0, %s322
      %s340 = sphi 0, %s340
      %s342 = sphi 0, %s340
      %s343 = sphi 0, %s342
      %s357 = sphi 0, %s343
      %s365 = sphi 0, %s367
      %s368 = sphi 0, %s365
      %s369 = sphi 0, %s368
      %s385 = sphi 0, %s369
    $region4: #{transformer_block_forward.5} parent=1 // loop_header_branch
      %26 = sbr.rel (%p24) target = $region8
    $region5: #{transformer_block_forward.5} parent=1 // loop_body
      %s28 = ssub.s32 %s23, 1
      %s29 = ssub.s32 %s23, 2
      %s36 = sadd.s32 1, %s31
      %p37 = scmp.ge.s32.totalorder %s36, 2
      %s38 = scalar_select %p37, 0, %s36
      %s39 = sadd.s32 1, %s30
      %s40 = scalar_select %p37, %s39, %s30
      %p41 = scmp.ge.s32.totalorder %s40, 2
      %s42 = scalar_select %p41, 0, %s40
      %s43 = ssub.s32 %s30, %s42
      %s44 = ssub.s32 %s31, %s38
      %s45 = sor.u32 %s43, %s44
      %p46 = scmp.eq.s32.totalorder %s45, 0
      %s48 = sadd.s32 %s47, 1
      %s49 = scalar_select %p46, %s47, %s48
      %p52 = pneg %p46
      %p53 = scmp.eq.s32.totalorder %s23, 3
      %p54 = por %p52, %p53
      %p55 = scmp.ne.s32.totalorder %s47, %s50
      %p56 = scmp.eq.s32.totalorder %s23, 0
      %p57 = por %p55, %p56
      %p58 = scmp.ne.s32.totalorder %s47, %s50
      %p59 = scmp.eq.s32.totalorder %s28, 3
      %p60 = por %p58, %p59
      %p61 = scmp.ne.s32.totalorder %s50, %s51
      %p62 = scmp.eq.s32.totalorder %s28, 0
      %p63 = por %p61, %p62
      %p64 = scmp.ne.s32.totalorder %s50, %s51
      %p65 = scmp.eq.s32.totalorder %s29, 3
      %p66 = por %p64, %p65
      %p68 = scmp.ne.s32.totalorder %s51, %s67
      %p69 = scmp.eq.s32.totalorder %s29, 0
      %p70 = por %p68, %p69
      %s71 = ssub.s32 %s30, %s42
      %s72 = ssub.s32 %s31, %s38
      %s73 = sor.u32 %s71, %s72
      %p74 = scmp.eq.s32.totalorder %s73, 0
      %s76 = sadd.s32 %s75, 1
      %s77 = scalar_select %p74, %s75, %s76
      %p80 = pneg %p74
      %p81 = scmp.eq.s32.totalorder %s23, 3
      %p82 = por %p80, %p81
      %p83 = scmp.ne.s32.totalorder %s75, %s78
      %p84 = scmp.eq.s32.totalorder %s23, 0
      %p85 = por %p83, %p84
      %p86 = scmp.ne.s32.totalorder %s75, %s78
      %p87 = scmp.eq.s32.totalorder %s28, 3
      %p88 = por %p86, %p87
      %p89 = scmp.ne.s32.totalorder %s78, %s79
      %p90 = scmp.eq.s32.totalorder %s28, 0
      %p91 = por %p89, %p90
      %p92 = scmp.ne.s32.totalorder %s78, %s79
      %p93 = scmp.eq.s32.totalorder %s29, 3
      %p94 = por %p92, %p93
      %p96 = scmp.ne.s32.totalorder %s79, %s95
      %p97 = scmp.eq.s32.totalorder %s29, 0
      %p98 = por %p96, %p97
      %s99 = ssub.s32 %s30, %s42
      %p100 = scmp.eq.s32.totalorder %s99, 0
      %s102 = sadd.s32 %s101, 1
      %s103 = scalar_select %p100, %s101, %s102
      %p106 = pneg %p100
      %p107 = scmp.eq.s32.totalorder %s23, 3
      %p108 = por %p106, %p107
      %p109 = scmp.ne.s32.totalorder %s101, %s104
      %p110 = scmp.eq.s32.totalorder %s23, 0
      %p111 = por %p109, %p110
      %p112 = scmp.ne.s32.totalorder %s101, %s104
      %p113 = scmp.eq.s32.totalorder %s28, 3
      %p114 = por %p112, %p113
      %p115 = scmp.ne.s32.totalorder %s104, %s105
      %p116 = scmp.eq.s32.totalorder %s28, 0
      %p117 = por %p115, %p116
      %p118 = scmp.ne.s32.totalorder %s104, %s105
      %p119 = scmp.eq.s32.totalorder %s29, 3
      %p120 = por %p118, %p119
      %p122 = scmp.ne.s32.totalorder %s105, %s121
      %p123 = scmp.eq.s32.totalorder %s29, 0
      %p124 = por %p122, %p123
      %s125 = ssub.s32 %s30, %s42
      %p126 = scmp.eq.s32.totalorder %s125, 0
      %s128 = sadd.s32 %s127, 1
      %s129 = scalar_select %p126, %s127, %s128
      %p132 = pneg %p126
      %p133 = scmp.eq.s32.totalorder %s23, 3
      %p134 = por %p132, %p133
      %p135 = scmp.ne.s32.totalorder %s127, %s130
      %p136 = scmp.eq.s32.totalorder %s23, 0
      %p137 = por %p135, %p136
      %p138 = scmp.ne.s32.totalorder %s127, %s130
      %p139 = scmp.eq.s32.totalorder %s28, 3
      %p140 = por %p138, %p139
      %p141 = scmp.ne.s32.totalorder %s130, %s131
      %p142 = scmp.eq.s32.totalorder %s28, 0
      %p143 = por %p141, %p142
      %p144 = scmp.ne.s32.totalorder %s130, %s131
      %p145 = scmp.eq.s32.totalorder %s29, 3
      %p146 = por %p144, %p145
      %p148 = scmp.ne.s32.totalorder %s131, %s147
      %p149 = scmp.eq.s32.totalorder %s29, 0
      %p150 = por %p148, %p149
      %s152 = sadd.s32 %s151, 1
      %p155 = scmp.eq.s32.totalorder %s23, 3
      %p156 = scmp.ne.s32.totalorder %s151, %s153
      %p157 = scmp.eq.s32.totalorder %s23, 0
      %p158 = por %p156, %p157
      %p159 = scmp.ne.s32.totalorder %s151, %s153
      %p160 = scmp.eq.s32.totalorder %s28, 3
      %p161 = por %p159, %p160
      %p162 = scmp.ne.s32.totalorder %s153, %s154
      %p163 = scmp.eq.s32.totalorder %s28, 0
      %p164 = por %p162, %p163
      %p165 = scmp.ne.s32.totalorder %s153, %s154
      %p166 = scmp.eq.s32.totalorder %s29, 3
      %p167 = por %p165, %p166
      %p169 = scmp.ne.s32.totalorder %s154, %s168
      %p170 = scmp.eq.s32.totalorder %s29, 0
      %p171 = por %p169, %p170
      %s173 = sadd.s32 %s172, 1
      %p176 = scmp.eq.s32.totalorder %s23, 3
      %p177 = scmp.ne.s32.totalorder %s172, %s174
      %p178 = scmp.eq.s32.totalorder %s23, 0
      %p179 = por %p177, %p178
      %p180 = scmp.ne.s32.totalorder %s172, %s174
      %p181 = scmp.eq.s32.totalorder %s28, 3
      %p182 = por %p180, %p181
      %p183 = scmp.ne.s32.totalorder %s174, %s175
      %p184 = scmp.eq.s32.totalorder %s28, 0
      %p185 = por %p183, %p184
      %p186 = scmp.ne.s32.totalorder %s174, %s175
      %p187 = scmp.eq.s32.totalorder %s29, 3
      %p188 = por %p186, %p187
      %p190 = scmp.ne.s32.totalorder %s175, %s189
      %p191 = scmp.eq.s32.totalorder %s29, 0
      %p192 = por %p190, %p191
      %s194 = sadd.s32 %s193, 1
      %p197 = scmp.eq.s32.totalorder %s23, 3
      %p198 = scmp.ne.s32.totalorder %s193, %s195
      %p199 = scmp.eq.s32.totalorder %s23, 0
      %p200 = por %p198, %p199
      %p201 = scmp.ne.s32.totalorder %s193, %s195
      %p202 = scmp.eq.s32.totalorder %s28, 3
      %p203 = por %p201, %p202
      %p204 = scmp.ne.s32.totalorder %s195, %s196
      %p205 = scmp.eq.s32.totalorder %s28, 0
      %p206 = por %p204, %p205
      %p207 = scmp.ne.s32.totalorder %s195, %s196
      %p208 = scmp.eq.s32.totalorder %s29, 3
      %p209 = por %p207, %p208
      %p211 = scmp.ne.s32.totalorder %s196, %s210
      %p212 = scmp.eq.s32.totalorder %s29, 0
      %p213 = por %p211, %p212
      %s215 = sadd.s32 %s214, 1
      %p218 = scmp.eq.s32.totalorder %s23, 3
      %p219 = scmp.ne.s32.totalorder %s214, %s216
      %p220 = scmp.eq.s32.totalorder %s23, 0
      %p221 = por %p219, %p220
      %p222 = scmp.ne.s32.totalorder %s214, %s216
      %p223 = scmp.eq.s32.totalorder %s28, 3
      %p224 = por %p222, %p223
      %p225 = scmp.ne.s32.totalorder %s216, %s217
      %p226 = scmp.eq.s32.totalorder %s28, 0
      %p227 = por %p225, %p226
      %p228 = scmp.ne.s32.totalorder %s216, %s217
      %p229 = scmp.eq.s32.totalorder %s29, 3
      %p230 = por %p228, %p229
      %p232 = scmp.ne.s32.totalorder %s217, %s231
      %p233 = scmp.eq.s32.totalorder %s29, 0
      %p234 = por %p232, %p233
      %s236 = sadd.s32 %s235, 1
      %p239 = scmp.eq.s32.totalorder %s23, 3
      %p240 = scmp.ne.s32.totalorder %s235, %s237
      %p241 = scmp.eq.s32.totalorder %s23, 0
      %p242 = por %p240, %p241
      %p243 = scmp.ne.s32.totalorder %s235, %s237
      %p244 = scmp.eq.s32.totalorder %s28, 3
      %p245 = por %p243, %p244
      %p246 = scmp.ne.s32.totalorder %s237, %s238
      %p247 = scmp.eq.s32.totalorder %s28, 0
      %p248 = por %p246, %p247
      %p249 = scmp.ne.s32.totalorder %s237, %s238
      %p250 = scmp.eq.s32.totalorder %s29, 3
      %p251 = por %p249, %p250
      %p253 = scmp.ne.s32.totalorder %s238, %s252
      %p254 = scmp.eq.s32.totalorder %s29, 0
      %p255 = por %p253, %p254
      %s257 = sadd.s32 %s256, 1
      %p260 = scmp.eq.s32.totalorder %s23, 3
      %p261 = scmp.ne.s32.totalorder %s256, %s258
      %p262 = scmp.eq.s32.totalorder %s23, 0
      %p263 = por %p261, %p262
      %p264 = scmp.ne.s32.totalorder %s256, %s258
      %p265 = scmp.eq.s32.totalorder %s28, 3
      %p266 = por %p264, %p265
      %p267 = scmp.ne.s32.totalorder %s258, %s259
      %p268 = scmp.eq.s32.totalorder %s28, 0
      %p269 = por %p267, %p268
      %p270 = scmp.ne.s32.totalorder %s258, %s259
      %p271 = scmp.eq.s32.totalorder %s29, 3
      %p272 = por %p270, %p271
      %p274 = scmp.ne.s32.totalorder %s259, %s273
      %p275 = scmp.eq.s32.totalorder %s29, 0
      %p276 = por %p274, %p275
      %s278 = sadd.s32 %s277, 1
      %p281 = scmp.eq.s32.totalorder %s23, 3
      %p282 = scmp.ne.s32.totalorder %s277, %s279
      %p283 = scmp.eq.s32.totalorder %s23, 0
      %p284 = por %p282, %p283
      %p285 = scmp.ne.s32.totalorder %s277, %s279
      %p286 = scmp.eq.s32.totalorder %s28, 3
      %p287 = por %p285, %p286
      %p288 = scmp.ne.s32.totalorder %s279, %s280
      %p289 = scmp.eq.s32.totalorder %s28, 0
      %p290 = por %p288, %p289
      %p291 = scmp.ne.s32.totalorder %s279, %s280
      %p292 = scmp.eq.s32.totalorder %s29, 3
      %p293 = por %p291, %p292
      %p295 = scmp.ne.s32.totalorder %s280, %s294
      %p296 = scmp.eq.s32.totalorder %s29, 0
      %p297 = por %p295, %p296
      %s299 = sadd.s32 %s298, 1
      %p302 = scmp.eq.s32.totalorder %s23, 3
      %p303 = scmp.ne.s32.totalorder %s298, %s300
      %p304 = scmp.eq.s32.totalorder %s23, 0
      %p305 = por %p303, %p304
      %p306 = scmp.ne.s32.totalorder %s298, %s300
      %p307 = scmp.eq.s32.totalorder %s28, 3
      %p308 = por %p306, %p307
      %p309 = scmp.ne.s32.totalorder %s300, %s301
      %p310 = scmp.eq.s32.totalorder %s28, 0
      %p311 = por %p309, %p310
      %p312 = scmp.ne.s32.totalorder %s300, %s301
      %p313 = scmp.eq.s32.totalorder %s29, 3
      %p314 = por %p312, %p313
      %p316 = scmp.ne.s32.totalorder %s301, %s315
      %p317 = scmp.eq.s32.totalorder %s29, 0
      %p318 = por %p316, %p317
      %s320 = sadd.s32 %s319, 1
      %p323 = scmp.eq.s32.totalorder %s23, 3
      %p324 = scmp.ne.s32.totalorder %s319, %s321
      %p325 = scmp.eq.s32.totalorder %s23, 0
      %p326 = por %p324, %p325
      %p327 = scmp.ne.s32.totalorder %s319, %s321
      %p328 = scmp.eq.s32.totalorder %s28, 3
      %p329 = por %p327, %p328
      %p330 = scmp.ne.s32.totalorder %s321, %s322
      %p331 = scmp.eq.s32.totalorder %s28, 0
      %p332 = por %p330, %p331
      %p333 = scmp.ne.s32.totalorder %s321, %s322
      %p334 = scmp.eq.s32.totalorder %s29, 3
      %p335 = por %p333, %p334
      %p337 = scmp.ne.s32.totalorder %s322, %s336
      %p338 = scmp.eq.s32.totalorder %s29, 0
      %p339 = por %p337, %p338
      %s341 = sadd.s32 %s340, 1
      %p344 = scmp.eq.s32.totalorder %s23, 3
      %p345 = scmp.ne.s32.totalorder %s340, %s342
      %p346 = scmp.eq.s32.totalorder %s23, 0
      %p347 = por %p345, %p346
      %p348 = scmp.ne.s32.totalorder %s340, %s342
      %p349 = scmp.eq.s32.totalorder %s28, 3
      %p350 = por %p348, %p349
      %p351 = scmp.ne.s32.totalorder %s342, %s343
      %p352 = scmp.eq.s32.totalorder %s28, 0
      %p353 = por %p351, %p352
      %p354 = scmp.ne.s32.totalorder %s342, %s343
      %p355 = scmp.eq.s32.totalorder %s29, 3
      %p356 = por %p354, %p355
      %p358 = scmp.ne.s32.totalorder %s343, %s357
      %p359 = scmp.eq.s32.totalorder %s29, 0
      %p360 = por %p358, %p359
      %s361 = ssub.s32 %s30, %s42
      %s362 = ssub.s32 %s31, %s38
      %s363 = sor.u32 %s361, %s362
      %p364 = scmp.eq.s32.totalorder %s363, 0
      %s366 = sadd.s32 %s365, 1
      %s367 = scalar_select %p364, %s365, %s366
      %p370 = pneg %p364
      %p371 = scmp.eq.s32.totalorder %s23, 3
      %p372 = por %p370, %p371
      %p373 = scmp.ne.s32.totalorder %s365, %s368
      %p374 = scmp.eq.s32.totalorder %s23, 0
      %p375 = por %p373, %p374
      %p376 = scmp.ne.s32.totalorder %s365, %s368
      %p377 = scmp.eq.s32.totalorder %s28, 3
      %p378 = por %p376, %p377
      %p379 = scmp.ne.s32.totalorder %s368, %s369
      %p380 = scmp.eq.s32.totalorder %s28, 0
      %p381 = por %p379, %p380
      %p382 = scmp.ne.s32.totalorder %s368, %s369
      %p383 = scmp.eq.s32.totalorder %s29, 3
      %p384 = por %p382, %p383
      %p386 = scmp.ne.s32.totalorder %s369, %s385
      %p387 = scmp.eq.s32.totalorder %s29, 0
      %p388 = por %p386, %p387
      %p389 = scmp.le.s32.totalorder 1, %s23
      %p390 = scmp.lt.s32.totalorder %s23, 5
      %p391 = pnand %p389, %p390
      %p392 = pneg %p391
      // Predicated region
      $region9: #{transformer_block_forward.5} parent=5 // pred_check
        _
      $region10: #{transformer_block_forward.5} parent=5 // pred_check_branch
        %394 = sbr.rel (%p391) target = $region12
      $region11: #{transformer_block_forward.5} parent=5 // pred_region
        %s395 = ssub.s32 %s23, 1
        // Predicated region
        $region13: #{transformer_block_forward.5} parent=11 // pred_check
          %p396 = pneg %p164
        $region14: #{transformer_block_forward.5} parent=11 // pred_check_branch
          %398 = sbr.rel (%p396) target = $region16
        $region15: #{transformer_block_forward.5} parent=11 // pred_region
          _
        $region16: #{transformer_block_forward.5} parent=11 // pred_fallthru
          _
        // Predicated region
        $region17: #{transformer_block_forward.5} parent=11 // pred_check
          %p399 = pneg %p185
        $region18: #{transformer_block_forward.5} parent=11 // pred_check_branch
          %401 = sbr.rel (%p399) target = $region20
        $region19: #{transformer_block_forward.5} parent=11 // pred_region
          _
        $region20: #{transformer_block_forward.5} parent=11 // pred_fallthru
          _
        // Predicated region
        $region21: #{transformer_block_forward.5} parent=11 // pred_check
          %p402 = pneg %p206
        $region22: #{transformer_block_forward.5} parent=11 // pred_check_branch
          %404 = sbr.rel (%p402) target = $region24
        $region23: #{transformer_block_forward.5} parent=11 // pred_region
          _
        $region24: #{transformer_block_forward.5} parent=11 // pred_fallthru
          _
        // Predicated region
        $region25: #{transformer_block_forward.5} parent=11 // pred_check
          %p405 = pneg %p227
        $region26: #{transformer_block_forward.5} parent=11 // pred_check_branch
          %407 = sbr.rel (%p405) target = $region28
        $region27: #{transformer_block_forward.5} parent=11 // pred_region
          _
        $region28: #{transformer_block_forward.5} parent=11 // pred_fallthru
          _
        // Predicated region
        $region29: #{transformer_block_forward.5} parent=11 // pred_check
          %p408 = pneg %p248
        $region30: #{transformer_block_forward.5} parent=11 // pred_check_branch
          %410 = sbr.rel (%p408) target = $region32
        $region31: #{transformer_block_forward.5} parent=11 // pred_region
          _
        $region32: #{transformer_block_forward.5} parent=11 // pred_fallthru
          _
        // Predicated region
        $region33: #{transformer_block_forward.5} parent=11 // pred_check
          %p411 = pneg %p269
        $region34: #{transformer_block_forward.5} parent=11 // pred_check_branch
          %413 = sbr.rel (%p411) target = $region36
        $region35: #{transformer_block_forward.5} parent=11 // pred_region
          _
        $region36: #{transformer_block_forward.5} parent=11 // pred_fallthru
          _
        // Predicated region
        $region37: #{transformer_block_forward.5} parent=11 // pred_check
          %p414 = pneg %p290
        $region38: #{transformer_block_forward.5} parent=11 // pred_check_branch
          %416 = sbr.rel (%p414) target = $region40
        $region39: #{transformer_block_forward.5} parent=11 // pred_region
          _
        $region40: #{transformer_block_forward.5} parent=11 // pred_fallthru
          _
        // Predicated region
        $region41: #{transformer_block_forward.5} parent=11 // pred_check
          %p417 = pneg %p311
        $region42: #{transformer_block_forward.5} parent=11 // pred_check_branch
          %419 = sbr.rel (%p417) target = $region44
        $region43: #{transformer_block_forward.5} parent=11 // pred_region
          _
        $region44: #{transformer_block_forward.5} parent=11 // pred_fallthru
          _
        // Predicated region
        $region45: #{transformer_block_forward.5} parent=11 // pred_check
          %p420 = pneg %p332
        $region46: #{transformer_block_forward.5} parent=11 // pred_check_branch
          %422 = sbr.rel (%p420) target = $region48
        $region47: #{transformer_block_forward.5} parent=11 // pred_region
          _
        $region48: #{transformer_block_forward.5} parent=11 // pred_fallthru
          _
        // Predicated region
        $region49: #{transformer_block_forward.5} parent=11 // pred_check
          %p423 = pneg %p353
        $region50: #{transformer_block_forward.5} parent=11 // pred_check_branch
          %425 = sbr.rel (%p423) target = $region52
        $region51: #{transformer_block_forward.5} parent=11 // pred_region
          _
        $region52: #{transformer_block_forward.5} parent=11 // pred_fallthru
          _
      $region12: #{transformer_block_forward.5} parent=5 // pred_fallthru
        _
      %p426 = scmp.lt.s32.totalorder %s23, 4
      // Predicated region
      $region53: #{transformer_block_forward.5} parent=5 // pred_check
        %p427 = pneg %p426
      $region54: #{transformer_block_forward.5} parent=5 // pred_check_branch
        %429 = sbr.rel (%p427) target = $region56
      $region55: #{transformer_block_forward.5} parent=5 // pred_region
        // Predicated region
        $region57: #{transformer_block_forward.5} parent=55 // pred_check
          %p430 = pneg %p57
        $region58: #{transformer_block_forward.5} parent=55 // pred_check_branch
          %432 = sbr.rel (%p430) target = $region60
        $region59: #{transformer_block_forward.5} parent=55 // pred_region
          %s433 = smul.u32 16, %s31
          %p434 = scmp.lt.s32.totalorder %s30, 1
          %s435 = scalar_select %p434, %s30, 1
          %p436 = scmp.lt.s32.totalorder %s433, 31
          %s437 = scalar_select %p436, %s433, 31
          %s438 = smul.addr %s435, 32
          %s439 = sadd.s32 %s437, %s438
          %s440 = smul.addr %s439, 8
          %s441 = scalar_lea.vmem %s0, %s440
          %s442 = smul.u32 16, %s31
        $region60: #{transformer_block_forward.5} parent=55 // pred_fallthru
          _
        // Predicated region
        $region61: #{transformer_block_forward.5} parent=55 // pred_check
          %p443 = pneg %p85
        $region62: #{transformer_block_forward.5} parent=55 // pred_check_branch
          %445 = sbr.rel (%p443) target = $region64
        $region63: #{transformer_block_forward.5} parent=55 // pred_region
          %s446 = smul.u32 16, %s31
          %p447 = scmp.lt.s32.totalorder %s30, 1
          %s448 = scalar_select %p447, %s30, 1
          %p449 = scmp.lt.s32.totalorder %s446, 31
          %s450 = scalar_select %p449, %s446, 31
          %s451 = smul.addr %s448, 32
          %s452 = sadd.s32 %s450, %s451
          %s453 = smul.addr %s452, 8
          %s454 = scalar_lea.vmem %s1, %s453
          %s455 = smul.u32 16, %s31
        $region64: #{transformer_block_forward.5} parent=55 // pred_fallthru
          _
        // Predicated region
        $region65: #{transformer_block_forward.5} parent=55 // pred_check
          %p456 = pneg %p111
        $region66: #{transformer_block_forward.5} parent=55 // pred_check_branch
          %458 = sbr.rel (%p456) target = $region68
        $region67: #{transformer_block_forward.5} parent=55 // pred_region
          %p459 = scmp.lt.s32.totalorder %s30, 1
          %s460 = scalar_select %p459, %s30, 1
          %s461 = scalar_lea.vmem %s2, %s460
        $region68: #{transformer_block_forward.5} parent=55 // pred_fallthru
          _
        // Predicated region
        $region69: #{transformer_block_forward.5} parent=55 // pred_check
          %p462 = pneg %p137
        $region70: #{transformer_block_forward.5} parent=55 // pred_check_branch
          %464 = sbr.rel (%p462) target = $region72
        $region71: #{transformer_block_forward.5} parent=55 // pred_region
          %p465 = scmp.lt.s32.totalorder %s30, 1
          %s466 = scalar_select %p465, %s30, 1
          %s467 = scalar_lea.vmem %s3, %s466
        $region72: #{transformer_block_forward.5} parent=55 // pred_fallthru
          _
      $region56: #{transformer_block_forward.5} parent=5 // pred_fallthru
        _
      %p468 = scmp.le.s32.totalorder 1, %s23
      %p469 = scmp.lt.s32.totalorder %s23, 5
      %p470 = pnand %p468, %p469
      %p471 = pneg %p470
      // Predicated region
      $region73: #{transformer_block_forward.5} parent=5 // pred_check
        _
      $region74: #{transformer_block_forward.5} parent=5 // pred_check_branch
        %473 = sbr.rel (%p470) target = $region76
      $region75: #{transformer_block_forward.5} parent=5 // pred_region
        %s474 = ssub.s32 %s23, 1
        %s475 = smul.u32 16, %s33
        %p476 = scmp.lt.s32.totalorder %s32, 1
        %s477 = scalar_select %p476, %s32, 1
        %p478 = scmp.lt.s32.totalorder %s475, 31
        %s479 = scalar_select %p478, %s475, 31
        %s480 = smul.addr %s477, 32
        %s481 = sadd.s32 %s479, %s480
        %s482 = smul.addr %s481, 8
        %s483 = scalar_lea.vmem %s0, %s482
        %p484 = pneg %p63
        %p485 = pneg %p60
        %s486 = smul.u32 16, %s33
        %p487 = scmp.lt.s32.totalorder %s32, 1
        %s488 = scalar_select %p487, %s32, 1
        %p489 = scmp.lt.s32.totalorder %s486, 31
        %s490 = scalar_select %p489, %s486, 31
        %s491 = smul.addr %s488, 32
        %s492 = sadd.s32 %s490, %s491
        %s493 = smul.addr %s492, 8
        %s494 = scalar_lea.vmem %s1, %s493
        %p495 = pneg %p91
        %p496 = pneg %p88
        %p497 = scmp.lt.s32.totalorder %s32, 1
        %s498 = scalar_select %p497, %s32, 1
        %s499 = scalar_lea.vmem %s2, %s498
        %p500 = pneg %p117
        %p501 = pneg %p114
        %p502 = scmp.lt.s32.totalorder %s32, 1
        %s503 = scalar_select %p502, %s32, 1
        %s504 = scalar_lea.vmem %s3, %s503
        %p505 = pneg %p143
        %p506 = pneg %p140
        %p507 = pneg %p164
        %p508 = pneg %p161
        %p509 = pneg %p185
        %p510 = pneg %p182
        %p511 = pneg %p206
        %p512 = pneg %p203
        %p513 = pneg %p227
        %p514 = pneg %p224
        %p515 = pneg %p248
        %p516 = pneg %p245
        %p517 = pneg %p269
        %p518 = pneg %p266
        %p519 = pneg %p290
        %p520 = pneg %p287
        %p521 = pneg %p311
        %p522 = pneg %p308
        %p523 = pneg %p332
        %p524 = pneg %p329
        %p525 = pneg %p353
        %p526 = pneg %p350
        %p527 = pneg %p381
        %p528 = pneg %p378
        %s529 = sand.u32 %s368, 1
        %s530 = scalar_lea.sflag [#allocation3], %s529
        %s531 = sand.u32 %s368, 1
        %s532 = smul.addr %s531, 128
        %s533 = scalar_lea.vmem [#allocation2], %s532
        %s534 = smul.u32 16, %s33
        %p535 = scmp.lt.s32.totalorder %s32, 1
        %s536 = scalar_select %p535, %s32, 1
        %p537 = scmp.lt.s32.totalorder %s534, 31
        %s538 = scalar_select %p537, %s534, 31
        %s539 = smul.addr %s536, 32
        %s540 = sadd.s32 %s538, %s539
        %s541 = smul.addr %s540, 8
        %s542 = scalar_lea.vmem %s0, %s541
        %s543 = smul.u32 16, %s33
        %s544 = smul.u32 16, %s33
        %p545 = scmp.lt.s32.totalorder %s32, 1
        %s546 = scalar_select %p545, %s32, 1
        %p547 = scmp.lt.s32.totalorder %s544, 31
        %s548 = scalar_select %p547, %s544, 31
        %s549 = smul.addr %s546, 32
        %s550 = sadd.s32 %s548, %s549
        %s551 = smul.addr %s550, 8
        %s552 = scalar_lea.vmem %s1, %s551
        %s553 = smul.u32 16, %s33
        %p554 = scmp.lt.s32.totalorder %s32, 1
        %s555 = scalar_select %p554, %s32, 1
        %s556 = scalar_lea.vmem %s2, %s555
        %p557 = scmp.lt.s32.totalorder %s32, 1
        %s558 = scalar_select %p557, %s32, 1
        %s559 = scalar_lea.vmem %s3, %s558
        %s560 = smul.u32 16, %s33
        %v562 = vld [vmem:[%s542] sm:$0xff]
        %v563 = vld [vmem:[%s542 + $0x8] sm:$0xff]
        %v564 = vld [vmem:[%s542 + $0x10] sm:$0xff]
        %v565 = vld [vmem:[%s542 + $0x18] sm:$0xff]
        %v566 = vld [vmem:[%s542 + $0x20] sm:$0xff]
        %v567 = vld [vmem:[%s542 + $0x28] sm:$0xff]
        %v568 = vld [vmem:[%s542 + $0x30] sm:$0xff]
        %v569 = vld [vmem:[%s542 + $0x38] sm:$0xff]
        %v570 = vld [vmem:[%s542 + $0x40] sm:$0xff]
        %v571 = vld [vmem:[%s542 + $0x48] sm:$0xff]
        %v572 = vld [vmem:[%s542 + $0x50] sm:$0xff]
        %v573 = vld [vmem:[%s542 + $0x58] sm:$0xff]
        %v574 = vld [vmem:[%s542 + $0x60] sm:$0xff]
        %v575 = vld [vmem:[%s542 + $0x68] sm:$0xff]
        %v576 = vld [vmem:[%s542 + $0x70] sm:$0xff]
        %v577 = vld [vmem:[%s542 + $0x78] sm:$0xff]
        %v578 = vld [vmem:[%s552] sm:$0xff]
        %v579 = vld [vmem:[%s552 + $0x8] sm:$0xff]
        %v580 = vld [vmem:[%s552 + $0x10] sm:$0xff]
        %v581 = vld [vmem:[%s552 + $0x18] sm:$0xff]
        %v582 = vld [vmem:[%s552 + $0x20] sm:$0xff]
        %v583 = vld [vmem:[%s552 + $0x28] sm:$0xff]
        %v584 = vld [vmem:[%s552 + $0x30] sm:$0xff]
        %v585 = vld [vmem:[%s552 + $0x38] sm:$0xff]
        %v586 = vld [vmem:[%s552 + $0x40] sm:$0xff]
        %v587 = vld [vmem:[%s552 + $0x48] sm:$0xff]
        %v588 = vld [vmem:[%s552 + $0x50] sm:$0xff]
        %v589 = vld [vmem:[%s552 + $0x58] sm:$0xff]
        %v590 = vld [vmem:[%s552 + $0x60] sm:$0xff]
        %v591 = vld [vmem:[%s552 + $0x68] sm:$0xff]
        %v592 = vld [vmem:[%s552 + $0x70] sm:$0xff]
        %v593 = vld [vmem:[%s552 + $0x78] sm:$0xff]
        %v594 = vld [vmem:[%s556] sm:$0x1]
        %v595 = vld [vmem:[%s559] sm:$0x1]
        %v596 = vld [vmem:[%s4] sm:$0x1]
        %598 = vset.pattern.permute.xlu0 0
        %599 = vperm.xlu0 %598, %v595
        %v600 = vpop.permute.xlu0 %599
        %v602 = vlaneseq
        %v603 = vshrl.u32 %v602, 7
        %v604 = vsub.s32 0, %v603
        %v605 = vrot.slane %v600, %v604
        %v606 = vmul.f32 %v596, %v605
        %v607 = vld [vmem:[%s5] sm:$0x1]
        %v608 = vadd.f32 %v606, %v607
        %v609 = vld [vmem:[%s6] sm:$0x1]
        %611 = vset.pattern.permute.xlu0 0
        %612 = vperm.xlu0 %611, %v594
        %v613 = vpop.permute.xlu0 %612
        %v615 = vlaneseq
        %v616 = vshrl.u32 %v615, 7
        %v617 = vsub.s32 0, %v616
        %v618 = vrot.slane %v613, %v617
        %v619 = vmul.f32 %v609, %v618
        %v620 = vld [vmem:[%s7] sm:$0x1]
        %v621 = vadd.f32 %v619, %v620
        %v622 = vpack.c.bf16 %v563, %v562
        %v623 = vpack.c.bf16 %v565, %v564
        %v624 = vpack.c.bf16 %v567, %v566
        %v625 = vpack.c.bf16 %v569, %v568
        %v626 = vpack.c.bf16 %v571, %v570
        %v627 = vpack.c.bf16 %v573, %v572
        %v628 = vpack.c.bf16 %v575, %v574
        %v629 = vpack.c.bf16 %v577, %v576
        %v630 = vld [vmem:[%s8] sm:$0xff]
        %v631 = vld [vmem:[%s8 + $0x8] sm:$0xff]
        %v632 = vld [vmem:[%s8 + $0x10] sm:$0xff]
        %v633 = vld [vmem:[%s8 + $0x18] sm:$0xff]
        %v634 = vpack.c.bf16 %v631, %v630
        %v635 = vpack.c.bf16 %v633, %v632
        %v636 = vld [vmem:[%s9] sm:$0x1]
        %v638 = vlaneseq
        %v639 = vshrl.u32 %v638, 7
        %v640 = vsub.s32 0, %v639
        %v641 = vrot.slane %v636, %v640
        %vm643 = vcmask 261120
        %v645 = vsel %vm643, %v622, 0
        %v648 = vsel %vm643, %v623, 0
        %v651 = vsel %vm643, %v624, 0
        %v654 = vsel %vm643, %v625, 0
        %v657 = vsel %vm643, %v626, 0
        %v660 = vsel %vm643, %v627, 0
        %v663 = vsel %vm643, %v628, 0
        %v666 = vsel %vm643, %v629, 0
        %668 = vmatprep.subr.bf16.mxu0 0
        %669 = vmatpush1.bf16.msra.mxu0 %v634
        %670 = vmatprep.subr.bf16.mxu0 0
        %671 = vmatpush1.bf16.msra.mxu0 %v635
        %672 = vmatprep.subr.bf16.mxu0 0
        %673 = vmatpush1.bf16.msra.mxu0 0
        %674 = vmatprep.subr.bf16.mxu0 0
        %675 = vmatpush1.bf16.msra.mxu0 0
        %676 = vmatprep.subr.bf16.mxu0 0
        %677 = vmatpush1.bf16.msra.mxu0 0
        %678 = vmatprep.subr.bf16.mxu0 0
        %679 = vmatpush1.bf16.msra.mxu0 0
        %680 = vmatprep.subr.bf16.mxu0 0
        %681 = vmatpush1.bf16.msra.mxu0 0
        %682 = vmatprep.subr.bf16.mxu0 0
        %683 = vmatpush1.bf16.msra.mxu0 0
        %684 = vmatprep.subr.bf16.mxu0 0
        %685 = vmatpush1.bf16.msra.mxu0 0
        %686 = vmatprep.subr.bf16.mxu0 0
        %687 = vmatpush1.bf16.msra.mxu0 0
        %688 = vmatprep.subr.bf16.mxu0 0
        %689 = vmatpush1.bf16.msra.mxu0 0
        %690 = vmatprep.subr.bf16.mxu0 0
        %691 = vmatpush1.bf16.msra.mxu0 0
        %692 = vmatprep.subr.bf16.mxu0 0
        %693 = vmatpush1.bf16.msra.mxu0 0
        %694 = vmatprep.subr.bf16.mxu0 0
        %695 = vmatpush1.bf16.msra.mxu0 0
        %696 = vmatprep.subr.bf16.mxu0 0
        %697 = vmatpush1.bf16.msra.mxu0 0
        %698 = vmatprep.subr.bf16.mxu0 0
        %699 = vmatpush1.bf16.msra.mxu0 0
        %700 = vmatprep.mubr.bf16.mxu0 0
        %701 = vmatmul.mubr.bf16.gmra.mrb[0].mxu0 %v645
        %v702 = vpop.f32.mrb[0].mxu0
        %v703 = vadd.f32 %v641, %v702
        %v704 = vpop.f32.mrb[0].mxu0
        %v705 = vpop.f32.mrb[0].mxu0
        %v706 = vadd.f32 %v641, %v705
        %v707 = vpop.f32.mrb[0].mxu0
        %708 = vmatprep.mubr.bf16.mxu0 0
        %709 = vmatmul.mubr.bf16.gmra.mrb[0].mxu0 %v648
        %v710 = vpop.f32.mrb[0].mxu0
        %v711 = vadd.f32 %v641, %v710
        %v712 = vpop.f32.mrb[0].mxu0
        %v713 = vpop.f32.mrb[0].mxu0
        %v714 = vadd.f32 %v641, %v713
        %v715 = vpop.f32.mrb[0].mxu0
        %716 = vmatprep.mubr.bf16.mxu0 0
        %717 = vmatmul.mubr.bf16.gmra.mrb[0].mxu0 %v651
        %v718 = vpop.f32.mrb[0].mxu0
        %v719 = vadd.f32 %v641, %v718
        %v720 = vpop.f32.mrb[0].mxu0
        %v721 = vpop.f32.mrb[0].mxu0
        %v722 = vadd.f32 %v641, %v721
        %v723 = vpop.f32.mrb[0].mxu0
        %724 = vmatprep.mubr.bf16.mxu0 0
        %725 = vmatmul.mubr.bf16.gmra.mrb[0].mxu0 %v654
        %v726 = vpop.f32.mrb[0].mxu0
        %v727 = vadd.f32 %v641, %v726
        %v728 = vpop.f32.mrb[0].mxu0
        %v729 = vpop.f32.mrb[0].mxu0
        %v730 = vadd.f32 %v641, %v729
        %v731 = vpop.f32.mrb[0].mxu0
        %732 = vmatprep.mubr.bf16.mxu0 0
        %733 = vmatmul.mubr.bf16.gmra.mrb[0].mxu0 %v657
        %v734 = vpop.f32.mrb[0].mxu0
        %v735 = vadd.f32 %v641, %v734
        %v736 = vpop.f32.mrb[0].mxu0
        %v737 = vpop.f32.mrb[0].mxu0
        %v738 = vadd.f32 %v641, %v737
        %v739 = vpop.f32.mrb[0].mxu0
        %740 = vmatprep.mubr.bf16.mxu0 0
        %741 = vmatmul.mubr.bf16.gmra.mrb[0].mxu0 %v660
        %v742 = vpop.f32.mrb[0].mxu0
        %v743 = vadd.f32 %v641, %v742
        %v744 = vpop.f32.mrb[0].mxu0
        %v745 = vpop.f32.mrb[0].mxu0
        %v746 = vadd.f32 %v641, %v745
        %v747 = vpop.f32.mrb[0].mxu0
        %748 = vmatprep.mubr.bf16.mxu0 0
        %749 = vmatmul.mubr.bf16.gmra.mrb[0].mxu0 %v663
        %v750 = vpop.f32.mrb[0].mxu0
        %v751 = vadd.f32 %v641, %v750
        %v752 = vpop.f32.mrb[0].mxu0
        %v753 = vpop.f32.mrb[0].mxu0
        %v754 = vadd.f32 %v641, %v753
        %v755 = vpop.f32.mrb[0].mxu0
        %756 = vmatprep.mubr.bf16.mxu0 0
        %757 = vmatmul.mubr.bf16.gmra.mrb[0].mxu0 %v666
        %v758 = vpop.f32.mrb[0].mxu0
        %v759 = vadd.f32 %v641, %v758
        %v760 = vpop.f32.mrb[0].mxu0
        %v761 = vpop.f32.mrb[0].mxu0
        %v762 = vadd.f32 %v641, %v761
        %v763 = vpop.f32.mrb[0].mxu0
        %764 = vdwg.mxu0
        %v766 = vlaneseq
        %v767 = vshrl.u32 %v766, 7
        %v768 = vsub.s32 0, %v767
        %v769 = vrot.slane %v608, %v768
        %v771 = vmul.f32 %v703, %v769
        %v772 = vmul.f32 %v706, %v769
        %v773 = vmul.f32 %v711, %v769
        %v774 = vmul.f32 %v714, %v769
        %v775 = vmul.f32 %v719, %v769
        %v776 = vmul.f32 %v722, %v769
        %v777 = vmul.f32 %v727, %v769
        %v778 = vmul.f32 %v730, %v769
        %v779 = vmul.f32 %v735, %v769
        %v780 = vmul.f32 %v738, %v769
        %v781 = vmul.f32 %v743, %v769
        %v782 = vmul.f32 %v746, %v769
        %v783 = vmul.f32 %v751, %v769
        %v784 = vmul.f32 %v754, %v769
        %v785 = vmul.f32 %v759, %v769
        %v786 = vmul.f32 %v762, %v769
        %v788 = vlaneseq
        %v789 = vshrl.u32 %v788, 7
        %v790 = vsub.s32 0, %v789
        %v791 = vrot.slane %v621, %v790
        %v793 = vadd.f32 %v771, %v791
        %v794 = vadd.f32 %v772, %v791
        %v795 = vadd.f32 %v773, %v791
        %v796 = vadd.f32 %v774, %v791
        %v797 = vadd.f32 %v775, %v791
        %v798 = vadd.f32 %v776, %v791
        %v799 = vadd.f32 %v777, %v791
        %v800 = vadd.f32 %v778, %v791
        %v801 = vadd.f32 %v779, %v791
        %v802 = vadd.f32 %v780, %v791
        %v803 = vadd.f32 %v781, %v791
        %v804 = vadd.f32 %v782, %v791
        %v805 = vadd.f32 %v783, %v791
        %v806 = vadd.f32 %v784, %v791
        %v807 = vadd.f32 %v785, %v791
        %v808 = vadd.f32 %v786, %v791
        %v809 = vadd.f32 %v793, %v578
        %v810 = vadd.f32 %v794, %v579
        %v811 = vadd.f32 %v795, %v580
        %v812 = vadd.f32 %v796, %v581
        %v813 = vadd.f32 %v797, %v582
        %v814 = vadd.f32 %v798, %v583
        %v815 = vadd.f32 %v799, %v584
        %v816 = vadd.f32 %v800, %v585
        %v817 = vadd.f32 %v801, %v586
        %v818 = vadd.f32 %v802, %v587
        %v819 = vadd.f32 %v803, %v588
        %v820 = vadd.f32 %v804, %v589
        %v821 = vadd.f32 %v805, %v590
        %v822 = vadd.f32 %v806, %v591
        %v823 = vadd.f32 %v807, %v592
        %v824 = vadd.f32 %v808, %v593
        %v825 = vpack.c.bf16 %v810, %v809
        %v826 = vpack.c.bf16 %v812, %v811
        %v827 = vpack.c.bf16 %v814, %v813
        %v828 = vpack.c.bf16 %v816, %v815
        %v829 = vpack.c.bf16 %v818, %v817
        %v830 = vpack.c.bf16 %v820, %v819
        %v831 = vpack.c.bf16 %v822, %v821
        %v832 = vpack.c.bf16 %v824, %v823
        %v833 = vld [vmem:[%s10] sm:$0xff]
        %v834 = vld [vmem:[%s10 + $0x8] sm:$0xff]
        %v835 = vld [vmem:[%s10 + $0x10] sm:$0xff]
        %v836 = vld [vmem:[%s10 + $0x18] sm:$0xff]
        %v837 = vpack.c.bf16 %v834, %v833
        %v838 = vpack.c.bf16 %v836, %v835
        %v839 = vld [vmem:[%s11] sm:$0x1]
        %v841 = vlaneseq
        %v842 = vshrl.u32 %v841, 7
        %v843 = vsub.s32 0, %v842
        %v844 = vrot.slane %v839, %v843
        %v847 = vsel %vm643, %v825, 0
        %v850 = vsel %vm643, %v826, 0
        %v853 = vsel %vm643, %v827, 0
        %v856 = vsel %vm643, %v828, 0
        %v859 = vsel %vm643, %v829, 0
        %v862 = vsel %vm643, %v830, 0
        %v865 = vsel %vm643, %v831, 0
        %v868 = vsel %vm643, %v832, 0
        %870 = vmatprep.subr.bf16.mxu0 0
        %871 = vmatpush1.bf16.msra.mxu0 %v837
        %872 = vmatprep.subr.bf16.mxu0 0
        %873 = vmatpush1.bf16.msra.mxu0 %v838
        %874 = vmatprep.subr.bf16.mxu0 0
        %875 = vmatpush1.bf16.msra.mxu0 0
        %876 = vmatprep.subr.bf16.mxu0 0
        %877 = vmatpush1.bf16.msra.mxu0 0
        %878 = vmatprep.subr.bf16.mxu0 0
        %879 = vmatpush1.bf16.msra.mxu0 0
        %880 = vmatprep.subr.bf16.mxu0 0
        %881 = vmatpush1.bf16.msra.mxu0 0
        %882 = vmatprep.subr.bf16.mxu0 0
        %883 = vmatpush1.bf16.msra.mxu0 0
        %884 = vmatprep.subr.bf16.mxu0 0
        %885 = vmatpush1.bf16.msra.mxu0 0
        %886 = vmatprep.subr.bf16.mxu0 0
        %887 = vmatpush1.bf16.msra.mxu0 0
        %888 = vmatprep.subr.bf16.mxu0 0
        %889 = vmatpush1.bf16.msra.mxu0 0
        %890 = vmatprep.subr.bf16.mxu0 0
        %891 = vmatpush1.bf16.msra.mxu0 0
        %892 = vmatprep.subr.bf16.mxu0 0
        %893 = vmatpush1.bf16.msra.mxu0 0
        %894 = vmatprep.subr.bf16.mxu0 0
        %895 = vmatpush1.bf16.msra.mxu0 0
        %896 = vmatprep.subr.bf16.mxu0 0
        %897 = vmatpush1.bf16.msra.mxu0 0
        %898 = vmatprep.subr.bf16.mxu0 0
        %899 = vmatpush1.bf16.msra.mxu0 0
        %900 = vmatprep.subr.bf16.mxu0 0
        %901 = vmatpush1.bf16.msra.mxu0 0
        %902 = vmatprep.mubr.bf16.mxu0 0
        %903 = vmatmul.mubr.bf16.gmra.mrb[0].mxu0 %v847
        %v904 = vpop.f32.mrb[0].mxu0
        %v905 = vadd.f32 %v844, %v904
        %v906 = vpop.f32.mrb[0].mxu0
        %v907 = vpop.f32.mrb[0].mxu0
        %v908 = vadd.f32 %v844, %v907
        %v909 = vpop.f32.mrb[0].mxu0
        %910 = vmatprep.mubr.bf16.mxu0 0
        %911 = vmatmul.mubr.bf16.gmra.mrb[0].mxu0 %v850
        %v912 = vpop.f32.mrb[0].mxu0
        %v913 = vadd.f32 %v844, %v912
        %v914 = vpop.f32.mrb[0].mxu0
        %v915 = vpop.f32.mrb[0].mxu0
        %v916 = vadd.f32 %v844, %v915
        %v917 = vpop.f32.mrb[0].mxu0
        %918 = vmatprep.mubr.bf16.mxu0 0
        %919 = vmatmul.mubr.bf16.gmra.mrb[0].mxu0 %v853
        %v920 = vpop.f32.mrb[0].mxu0
        %v921 = vadd.f32 %v844, %v920
        %v922 = vpop.f32.mrb[0].mxu0
        %v923 = vpop.f32.mrb[0].mxu0
        %v924 = vadd.f32 %v844, %v923
        %v925 = vpop.f32.mrb[0].mxu0
        %926 = vmatprep.mubr.bf16.mxu0 0
        %927 = vmatmul.mubr.bf16.gmra.mrb[0].mxu0 %v856
        %v928 = vpop.f32.mrb[0].mxu0
        %v929 = vadd.f32 %v844, %v928
        %v930 = vpop.f32.mrb[0].mxu0
        %v931 = vpop.f32.mrb[0].mxu0
        %v932 = vadd.f32 %v844, %v931
        %v933 = vpop.f32.mrb[0].mxu0
        %934 = vmatprep.mubr.bf16.mxu0 0
        %935 = vmatmul.mubr.bf16.gmra.mrb[0].mxu0 %v859
        %v936 = vpop.f32.mrb[0].mxu0
        %v937 = vadd.f32 %v844, %v936
        %v938 = vpop.f32.mrb[0].mxu0
        %v939 = vpop.f32.mrb[0].mxu0
        %v940 = vadd.f32 %v844, %v939
        %v941 = vpop.f32.mrb[0].mxu0
        %942 = vmatprep.mubr.bf16.mxu0 0
        %943 = vmatmul.mubr.bf16.gmra.mrb[0].mxu0 %v862
        %v944 = vpop.f32.mrb[0].mxu0
        %v945 = vadd.f32 %v844, %v944
        %v946 = vpop.f32.mrb[0].mxu0
        %v947 = vpop.f32.mrb[0].mxu0
        %v948 = vadd.f32 %v844, %v947
        %v949 = vpop.f32.mrb[0].mxu0
        %950 = vmatprep.mubr.bf16.mxu0 0
        %951 = vmatmul.mubr.bf16.gmra.mrb[0].mxu0 %v865
        %v952 = vpop.f32.mrb[0].mxu0
        %v953 = vadd.f32 %v844, %v952
        %v954 = vpop.f32.mrb[0].mxu0
        %v955 = vpop.f32.mrb[0].mxu0
        %v956 = vadd.f32 %v844, %v955
        %v957 = vpop.f32.mrb[0].mxu0
        %958 = vmatprep.mubr.bf16.mxu0 0
        %959 = vmatmul.mubr.bf16.gmra.mrb[0].mxu0 %v868
        %v960 = vpop.f32.mrb[0].mxu0
        %v961 = vadd.f32 %v844, %v960
        %v962 = vpop.f32.mrb[0].mxu0
        %v963 = vpop.f32.mrb[0].mxu0
        %v964 = vadd.f32 %v844, %v963
        %v965 = vpop.f32.mrb[0].mxu0
        %966 = vdwg.mxu0
        %v967 = vmax.f32 %v905, 0.0
        %v968 = vmax.f32 %v908, 0.0
        %v969 = vmax.f32 %v913, 0.0
        %v970 = vmax.f32 %v916, 0.0
        %v971 = vmax.f32 %v921, 0.0
        %v972 = vmax.f32 %v924, 0.0
        %v973 = vmax.f32 %v929, 0.0
        %v974 = vmax.f32 %v932, 0.0
        %v975 = vmax.f32 %v937, 0.0
        %v976 = vmax.f32 %v940, 0.0
        %v977 = vmax.f32 %v945, 0.0
        %v978 = vmax.f32 %v948, 0.0
        %v979 = vmax.f32 %v953, 0.0
        %v980 = vmax.f32 %v956, 0.0
        %v981 = vmax.f32 %v961, 0.0
        %v982 = vmax.f32 %v964, 0.0
        %v983 = vpack.c.bf16 %v968, %v967
        %v984 = vpack.c.bf16 %v970, %v969
        %v985 = vpack.c.bf16 %v972, %v971
        %v986 = vpack.c.bf16 %v974, %v973
        %v987 = vpack.c.bf16 %v976, %v975
        %v988 = vpack.c.bf16 %v978, %v977
        %v989 = vpack.c.bf16 %v980, %v979
        %v990 = vpack.c.bf16 %v982, %v981
        %v991 = vld [vmem:[%s12] sm:$0xff]
        %v992 = vld [vmem:[%s12 + $0x8] sm:$0xff]
        %v993 = vld [vmem:[%s12 + $0x10] sm:$0xff]
        %v994 = vld [vmem:[%s12 + $0x18] sm:$0xff]
        %v995 = vld [vmem:[%s12 + $0x20] sm:$0xff]
        %v996 = vld [vmem:[%s12 + $0x28] sm:$0xff]
        %v997 = vld [vmem:[%s12 + $0x30] sm:$0xff]
        %v998 = vld [vmem:[%s12 + $0x38] sm:$0xff]
        %v999 = vld [vmem:[%s12 + $0x40] sm:$0xff]
        %v1000 = vld [vmem:[%s12 + $0x48] sm:$0xff]
        %v1001 = vld [vmem:[%s12 + $0x50] sm:$0xff]
        %v1002 = vld [vmem:[%s12 + $0x58] sm:$0xff]
        %v1003 = vld [vmem:[%s12 + $0x60] sm:$0xff]
        %v1004 = vld [vmem:[%s12 + $0x68] sm:$0xff]
        %v1005 = vld [vmem:[%s12 + $0x70] sm:$0xff]
        %v1006 = vld [vmem:[%s12 + $0x78] sm:$0xff]
        %v1007 = vpack.c.bf16 %v992, %v991
        %v1008 = vpack.c.bf16 %v994, %v993
        %v1009 = vpack.c.bf16 %v996, %v995
        %v1010 = vpack.c.bf16 %v998, %v997
        %v1011 = vpack.c.bf16 %v1000, %v999
        %v1012 = vpack.c.bf16 %v1002, %v1001
        %v1013 = vpack.c.bf16 %v1004, %v1003
        %v1014 = vpack.c.bf16 %v1006, %v1005
        %v1015 = vld [vmem:[%s13] sm:$0x1]
        %v1017 = vlaneseq
        %v1018 = vshrl.u32 %v1017, 7
        %v1019 = vsub.s32 0, %v1018
        %v1020 = vrot.slane %v1015, %v1019
        %1022 = vmatprep.subr.bf16.mxu0 0
        %1023 = vmatpush1.bf16.msra.mxu0 %v1007
        %1024 = vmatprep.subr.bf16.mxu0 0
        %1025 = vmatpush1.bf16.msra.mxu0 %v1008
        %1026 = vmatprep.subr.bf16.mxu0 0
        %1027 = vmatpush1.bf16.msra.mxu0 %v1009
        %1028 = vmatprep.subr.bf16.mxu0 0
        %1029 = vmatpush1.bf16.msra.mxu0 %v1010
        %1030 = vmatprep.subr.bf16.mxu0 0
        %1031 = vmatpush1.bf16.msra.mxu0 %v1011
        %1032 = vmatprep.subr.bf16.mxu0 0
        %1033 = vmatpush1.bf16.msra.mxu0 %v1012
        %1034 = vmatprep.subr.bf16.mxu0 0
        %1035 = vmatpush1.bf16.msra.mxu0 %v1013
        %1036 = vmatprep.subr.bf16.mxu0 0
        %1037 = vmatpush1.bf16.msra.mxu0 %v1014
        %1038 = vmatprep.subr.bf16.mxu0 0
        %1039 = vmatpush1.bf16.msra.mxu0 0
        %1040 = vmatprep.subr.bf16.mxu0 0
        %1041 = vmatpush1.bf16.msra.mxu0 0
        %1042 = vmatprep.subr.bf16.mxu0 0
        %1043 = vmatpush1.bf16.msra.mxu0 0
        %1044 = vmatprep.subr.bf16.mxu0 0
        %1045 = vmatpush1.bf16.msra.mxu0 0
        %1046 = vmatprep.subr.bf16.mxu0 0
        %1047 = vmatpush1.bf16.msra.mxu0 0
        %1048 = vmatprep.subr.bf16.mxu0 0
        %1049 = vmatpush1.bf16.msra.mxu0 0
        %1050 = vmatprep.subr.bf16.mxu0 0
        %1051 = vmatpush1.bf16.msra.mxu0 0
        %1052 = vmatprep.subr.bf16.mxu0 0
        %1053 = vmatpush1.bf16.msra.mxu0 0
        %1054 = vmatprep.mubr.bf16.mxu0 0
        %1055 = vmatmul.mubr.bf16.gmra.mrb[0].mxu0 %v983
        %v1056 = vpop.f32.mrb[0].mxu0
        %v1057 = vadd.f32 %v1020, %v1056
        %v1058 = vpop.f32.mrb[0].mxu0
        %v1059 = vpop.f32.mrb[0].mxu0
        %v1060 = vadd.f32 %v1020, %v1059
        %v1061 = vpop.f32.mrb[0].mxu0
        %1062 = vmatprep.mubr.bf16.mxu0 0
        %1063 = vmatmul.mubr.bf16.gmra.mrb[0].mxu0 %v984
        %v1064 = vpop.f32.mrb[0].mxu0
        %v1065 = vadd.f32 %v1020, %v1064
        %v1066 = vpop.f32.mrb[0].mxu0
        %v1067 = vpop.f32.mrb[0].mxu0
        %v1068 = vadd.f32 %v1020, %v1067
        %v1069 = vpop.f32.mrb[0].mxu0
        %1070 = vmatprep.mubr.bf16.mxu0 0
        %1071 = vmatmul.mubr.bf16.gmra.mrb[0].mxu0 %v985
        %v1072 = vpop.f32.mrb[0].mxu0
        %v1073 = vadd.f32 %v1020, %v1072
        %v1074 = vpop.f32.mrb[0].mxu0
        %v1075 = vpop.f32.mrb[0].mxu0
        %v1076 = vadd.f32 %v1020, %v1075
        %v1077 = vpop.f32.mrb[0].mxu0
        %1078 = vmatprep.mubr.bf16.mxu0 0
        %1079 = vmatmul.mubr.bf16.gmra.mrb[0].mxu0 %v986
        %v1080 = vpop.f32.mrb[0].mxu0
        %v1081 = vadd.f32 %v1020, %v1080
        %v1082 = vpop.f32.mrb[0].mxu0
        %v1083 = vpop.f32.mrb[0].mxu0
        %v1084 = vadd.f32 %v1020, %v1083
        %v1085 = vpop.f32.mrb[0].mxu0
        %1086 = vmatprep.mubr.bf16.mxu0 0
        %1087 = vmatmul.mubr.bf16.gmra.mrb[0].mxu0 %v987
        %v1088 = vpop.f32.mrb[0].mxu0
        %v1089 = vadd.f32 %v1020, %v1088
        %v1090 = vpop.f32.mrb[0].mxu0
        %v1091 = vpop.f32.mrb[0].mxu0
        %v1092 = vadd.f32 %v1020, %v1091
        %v1093 = vpop.f32.mrb[0].mxu0
        %1094 = vmatprep.mubr.bf16.mxu0 0
        %1095 = vmatmul.mubr.bf16.gmra.mrb[0].mxu0 %v988
        %v1096 = vpop.f32.mrb[0].mxu0
        %v1097 = vadd.f32 %v1020, %v1096
        %v1098 = vpop.f32.mrb[0].mxu0
        %v1099 = vpop.f32.mrb[0].mxu0
        %v1100 = vadd.f32 %v1020, %v1099
        %v1101 = vpop.f32.mrb[0].mxu0
        %1102 = vmatprep.mubr.bf16.mxu0 0
        %1103 = vmatmul.mubr.bf16.gmra.mrb[0].mxu0 %v989
        %v1104 = vpop.f32.mrb[0].mxu0
        %v1105 = vadd.f32 %v1020, %v1104
        %v1106 = vpop.f32.mrb[0].mxu0
        %v1107 = vpop.f32.mrb[0].mxu0
        %v1108 = vadd.f32 %v1020, %v1107
        %v1109 = vpop.f32.mrb[0].mxu0
        %1110 = vmatprep.mubr.bf16.mxu0 0
        %1111 = vmatmul.mubr.bf16.gmra.mrb[0].mxu0 %v990
        %v1112 = vpop.f32.mrb[0].mxu0
        %v1113 = vadd.f32 %v1020, %v1112
        %v1114 = vpop.f32.mrb[0].mxu0
        %v1115 = vpop.f32.mrb[0].mxu0
        %v1116 = vadd.f32 %v1020, %v1115
        %v1117 = vpop.f32.mrb[0].mxu0
        %1118 = vdwg.mxu0
        %v1119 = vadd.f32 %v1057, %v809
        %v1120 = vadd.f32 %v1060, %v810
        %v1121 = vadd.f32 %v1065, %v811
        %v1122 = vadd.f32 %v1068, %v812
        %v1123 = vadd.f32 %v1073, %v813
        %v1124 = vadd.f32 %v1076, %v814
        %v1125 = vadd.f32 %v1081, %v815
        %v1126 = vadd.f32 %v1084, %v816
        %v1127 = vadd.f32 %v1089, %v817
        %v1128 = vadd.f32 %v1092, %v818
        %v1129 = vadd.f32 %v1097, %v819
        %v1130 = vadd.f32 %v1100, %v820
        %v1131 = vadd.f32 %v1105, %v821
        %v1132 = vadd.f32 %v1108, %v822
        %v1133 = vadd.f32 %v1113, %v823
        %v1134 = vadd.f32 %v1116, %v824
        %1135 = vst.msk [vmem:[%s533] sm:$0xff] %vm643, %v1119
        %1136 = vst.msk [vmem:[%s533 + $0x8] sm:$0xff] %vm643, %v1120
        %1137 = vst.msk [vmem:[%s533 + $0x10] sm:$0xff] %vm643, %v1121
        %1138 = vst.msk [vmem:[%s533 + $0x18] sm:$0xff] %vm643, %v1122
        %1139 = vst.msk [vmem:[%s533 + $0x20] sm:$0xff] %vm643, %v1123
        %1140 = vst.msk [vmem:[%s533 + $0x28] sm:$0xff] %vm643, %v1124
        %1141 = vst.msk [vmem:[%s533 + $0x30] sm:$0xff] %vm643, %v1125
        %1142 = vst.msk [vmem:[%s533 + $0x38] sm:$0xff] %vm643, %v1126
        %1143 = vst.msk [vmem:[%s533 + $0x40] sm:$0xff] %vm643, %v1127
        %1144 = vst.msk [vmem:[%s533 + $0x48] sm:$0xff] %vm643, %v1128
        %1145 = vst.msk [vmem:[%s533 + $0x50] sm:$0xff] %vm643, %v1129
        %1146 = vst.msk [vmem:[%s533 + $0x58] sm:$0xff] %vm643, %v1130
        %1147 = vst.msk [vmem:[%s533 + $0x60] sm:$0xff] %vm643, %v1131
        %1148 = vst.msk [vmem:[%s533 + $0x68] sm:$0xff] %vm643, %v1132
        %1149 = vst.msk [vmem:[%s533 + $0x70] sm:$0xff] %vm643, %v1133
        %1150 = vst.msk [vmem:[%s533 + $0x78] sm:$0xff] %vm643, %v1134
        %s1151 = sand.u32 %s368, 1
        %s1152 = scalar_lea.sflag [#allocation3], %s1151
        %s1153 = sand.u32 %s368, 1
        %s1154 = smul.addr %s1153, 128
        %s1155 = scalar_lea.vmem [#allocation2], %s1154
        // Predicated region
        $region77: #{transformer_block_forward.5} parent=75 // pred_check
          %p1156 = pneg %p378
        $region78: #{transformer_block_forward.5} parent=75 // pred_check_branch
          %1158 = sbr.rel (%p1156) target = $region80
        $region79: #{transformer_block_forward.5} parent=75 // pred_region
          %s1159 = smul.u32 16, %s33
          %s1161 = ssub.s32 2048, 2048
          %1162 = vsyncadd %s1152, %s1161
          %s1163 = smul.addr %s32, 32
          %s1164 = sadd.s32 %s1159, %s1163
          %s1165 = smul.addr %s1164, 128
          %s1166 = scalar_lea.hbm %s14, %s1165
          %s1167 = sshll.u32 %s1155, 4
          %s1168 = int_to_ptr.vmem [resolvable:$true] %s1167
          %1173 = dma.vmem_to_hbm [thread:$0]  %s1168, 2048, %s1166, %s1152, 128, 128, 8
        $region80: #{transformer_block_forward.5} parent=75 // pred_fallthru
          _
      $region76: #{transformer_block_forward.5} parent=5 // pred_fallthru
        _
      %p1174 = scmp.le.s32.totalorder 2, %s23
      // Predicated region
      $region81: #{transformer_block_forward.5} parent=5 // pred_check
        %p1175 = pneg %p1174
      $region82: #{transformer_block_forward.5} parent=5 // pred_check_branch
        %1177 = sbr.rel (%p1175) target = $region84
      $region83: #{transformer_block_forward.5} parent=5 // pred_region
        %s1178 = ssub.s32 %s23, 2
        // Predicated region
        $region85: #{transformer_block_forward.5} parent=83 // pred_check
          %p1179 = pneg %p384
        $region86: #{transformer_block_forward.5} parent=83 // pred_check_branch
          %1181 = sbr.rel (%p1179) target = $region88
        $region87: #{transformer_block_forward.5} parent=83 // pred_region
          %s1182 = sand.u32 %s369, 1
          %s1183 = scalar_lea.sflag [#allocation3], %s1182
          %s1184 = sand.u32 %s369, 1
          %s1185 = smul.addr %s1184, 128
          %s1186 = scalar_lea.vmem [#allocation2], %s1185
          %1187 = dma.done %s1183, 2048
        $region88: #{transformer_block_forward.5} parent=83 // pred_fallthru
          _
      $region84: #{transformer_block_forward.5} parent=5 // pred_fallthru
        _
    $region6: #{transformer_block_forward.5} parent=1 // loop_footer
      %s27 = sadd.s32 1, %s23
    $region7: #{transformer_block_forward.5} parent=1 // loop_footer_branch
      %22 = sbr.rel target = $region3
    $region8: #{transformer_block_forward.5} parent=1 // loop_exit
      _
    %1188 = vsyncpa [#allocation3], 1
    %s1189 = scalar_lea.sflag [#allocation3], 1
    %1190 = vsyncpa %s1189, 1

// kernel: transformer_block_forward.4
$region0: #{transformer_block_forward.4}
  #allocation0 [shape = 'u32[]', space=smem, size = 0x4, offset = 0x4, fixed_abs, tag = 'smem constant byte address 0x4 - core index']
  #allocation1 [shape = 'u32[144,128]{1,0:T(1,128)}', space=vmem, size = 0x12000, scoped, tag = 'internal scratch']
  %s0 = inlined_call_operand.vmem [shape: f32[2,16,16,32], index: 0, kind: input, shape index: {}]
  %s1 = inlined_call_operand.vmem [shape: f32[2,1,1], index: 1, kind: input, shape index: {}]
  %s2 = inlined_call_operand.vmem [shape: f32[2,1,1], index: 2, kind: input, shape index: {}]
  %s3 = inlined_call_operand.vmem [shape: f32[1,32], index: 3, kind: input, shape index: {}]
  %s4 = inlined_call_operand.vmem [shape: f32[1,32], index: 4, kind: input, shape index: {}]
  %s5 = inlined_call_operand.vmem [shape: f32[32,96], index: 5, kind: input, shape index: {}]
  %s6 = inlined_call_operand.vmem [shape: f32[1,96], index: 6, kind: input, shape index: {}]
  %s7 = inlined_call_operand.vmem [shape: f32[2,64,64], index: 7, kind: input, shape index: {}]
  %s8 = inlined_call_operand.vmem [shape: f32[2,16,16,32], index: 8, kind: output, shape index: {}]
  %s9 = sld [smem:[#allocation0]]
  $region65: #{transformer_block_forward.4} parent=0
    _
  %s11 = ssub.s32 1, %s9
  %s12 = scalar_select 0, %s11, %s9
  loop: start=0, step=1, limit=6
  $region2: #{transformer_block_forward.4} parent=0 // loop_pre_header
    _
  $region3: #{transformer_block_forward.4} parent=0 // loop_header
    %s14 = sphi 0, %s18
    %p15 = scmp.ge.s32.totalorder %s14, 6
    %s21 = sphi 0, %s40
    %s22 = sphi 0, %s36
    %s23 = sphi 0, %s32
    %s24 = sphi 0, %s21
    %s25 = sphi 0, %s22
    %s26 = sphi 0, %s23
    %s27 = sphi 0, %s24
    %s28 = sphi 0, %s25
    %s29 = sphi 0, %s26
    %s47 = sphi 0, %s49
    %s50 = sphi 0, %s47
    %s51 = sphi 0, %s50
    %s67 = sphi 0, %s51
    %s73 = sphi 0, %s75
    %s76 = sphi 0, %s73
    %s77 = sphi 0, %s76
    %s93 = sphi 0, %s77
    %s99 = sphi 0, %s101
    %s102 = sphi 0, %s99
    %s103 = sphi 0, %s102
    %s119 = sphi 0, %s103
    %s123 = sphi 0, %s123
    %s125 = sphi 0, %s123
    %s126 = sphi 0, %s125
    %s140 = sphi 0, %s126
    %s144 = sphi 0, %s144
    %s146 = sphi 0, %s144
    %s147 = sphi 0, %s146
    %s161 = sphi 0, %s147
    %s165 = sphi 0, %s165
    %s167 = sphi 0, %s165
    %s168 = sphi 0, %s167
    %s182 = sphi 0, %s168
    %s186 = sphi 0, %s186
    %s188 = sphi 0, %s186
    %s189 = sphi 0, %s188
    %s203 = sphi 0, %s189
    %s207 = sphi 0, %s207
    %s209 = sphi 0, %s207
    %s210 = sphi 0, %s209
    %s224 = sphi 0, %s210
    %s234 = sphi 0, %s236
    %s237 = sphi 0, %s234
    %s238 = sphi 0, %s237
    %s254 = sphi 0, %s238
  $region4: #{transformer_block_forward.4} parent=0 // loop_header_branch
    %17 = sbr.rel (%p15) target = $region8
  $region5: #{transformer_block_forward.4} parent=0 // loop_body
    %s19 = ssub.s32 %s14, 1
    %s20 = ssub.s32 %s14, 2
    %s30 = sadd.s32 1, %s23
    %p31 = scmp.ge.s32.totalorder %s30, 1
    %s32 = scalar_select %p31, 0, %s30
    %s33 = sadd.s32 1, %s22
    %s34 = scalar_select %p31, %s33, %s22
    %p35 = scmp.ge.s32.totalorder %s34, 2
    %s36 = scalar_select %p35, 0, %s34
    %s37 = sadd.s32 1, %s21
    %s38 = scalar_select %p35, %s37, %s21
    %p39 = scmp.ge.s32.totalorder %s38, 2
    %s40 = scalar_select %p39, 0, %s38
    %s41 = ssub.s32 %s21, %s40
    %s42 = ssub.s32 %s22, %s36
    %s43 = sor.u32 %s41, %s42
    %s44 = ssub.s32 %s23, %s32
    %s45 = sor.u32 %s43, %s44
    %p46 = scmp.eq.s32.totalorder %s45, 0
    %s48 = sadd.s32 %s47, 1
    %s49 = scalar_select %p46, %s47, %s48
    %p52 = pneg %p46
    %p53 = scmp.eq.s32.totalorder %s14, 3
    %p54 = por %p52, %p53
    %p55 = scmp.ne.s32.totalorder %s47, %s50
    %p56 = scmp.eq.s32.totalorder %s14, 0
    %p57 = por %p55, %p56
    %p58 = scmp.ne.s32.totalorder %s47, %s50
    %p59 = scmp.eq.s32.totalorder %s19, 3
    %p60 = por %p58, %p59
    %p61 = scmp.ne.s32.totalorder %s50, %s51
    %p62 = scmp.eq.s32.totalorder %s19, 0
    %p63 = por %p61, %p62
    %p64 = scmp.ne.s32.totalorder %s50, %s51
    %p65 = scmp.eq.s32.totalorder %s20, 3
    %p66 = por %p64, %p65
    %p68 = scmp.ne.s32.totalorder %s51, %s67
    %p69 = scmp.eq.s32.totalorder %s20, 0
    %p70 = por %p68, %p69
    %s71 = ssub.s32 %s21, %s40
    %p72 = scmp.eq.s32.totalorder %s71, 0
    %s74 = sadd.s32 %s73, 1
    %s75 = scalar_select %p72, %s73, %s74
    %p78 = pneg %p72
    %p79 = scmp.eq.s32.totalorder %s14, 3
    %p80 = por %p78, %p79
    %p81 = scmp.ne.s32.totalorder %s73, %s76
    %p82 = scmp.eq.s32.totalorder %s14, 0
    %p83 = por %p81, %p82
    %p84 = scmp.ne.s32.totalorder %s73, %s76
    %p85 = scmp.eq.s32.totalorder %s19, 3
    %p86 = por %p84, %p85
    %p87 = scmp.ne.s32.totalorder %s76, %s77
    %p88 = scmp.eq.s32.totalorder %s19, 0
    %p89 = por %p87, %p88
    %p90 = scmp.ne.s32.totalorder %s76, %s77
    %p91 = scmp.eq.s32.totalorder %s20, 3
    %p92 = por %p90, %p91
    %p94 = scmp.ne.s32.totalorder %s77, %s93
    %p95 = scmp.eq.s32.totalorder %s20, 0
    %p96 = por %p94, %p95
    %s97 = ssub.s32 %s21, %s40
    %p98 = scmp.eq.s32.totalorder %s97, 0
    %s100 = sadd.s32 %s99, 1
    %s101 = scalar_select %p98, %s99, %s100
    %p104 = pneg %p98
    %p105 = scmp.eq.s32.totalorder %s14, 3
    %p106 = por %p104, %p105
    %p107 = scmp.ne.s32.totalorder %s99, %s102
    %p108 = scmp.eq.s32.totalorder %s14, 0
    %p109 = por %p107, %p108
    %p110 = scmp.ne.s32.totalorder %s99, %s102
    %p111 = scmp.eq.s32.totalorder %s19, 3
    %p112 = por %p110, %p111
    %p113 = scmp.ne.s32.totalorder %s102, %s103
    %p114 = scmp.eq.s32.totalorder %s19, 0
    %p115 = por %p113, %p114
    %p116 = scmp.ne.s32.totalorder %s102, %s103
    %p117 = scmp.eq.s32.totalorder %s20, 3
    %p118 = por %p116, %p117
    %p120 = scmp.ne.s32.totalorder %s103, %s119
    %p121 = scmp.eq.s32.totalorder %s20, 0
    %p122 = por %p120, %p121
    %s124 = sadd.s32 %s123, 1
    %p127 = scmp.eq.s32.totalorder %s14, 3
    %p128 = scmp.ne.s32.totalorder %s123, %s125
    %p129 = scmp.eq.s32.totalorder %s14, 0
    %p130 = por %p128, %p129
    %p131 = scmp.ne.s32.totalorder %s123, %s125
    %p132 = scmp.eq.s32.totalorder %s19, 3
    %p133 = por %p131, %p132
    %p134 = scmp.ne.s32.totalorder %s125, %s126
    %p135 = scmp.eq.s32.totalorder %s19, 0
    %p136 = por %p134, %p135
    %p137 = scmp.ne.s32.totalorder %s125, %s126
    %p138 = scmp.eq.s32.totalorder %s20, 3
    %p139 = por %p137, %p138
    %p141 = scmp.ne.s32.totalorder %s126, %s140
    %p142 = scmp.eq.s32.totalorder %s20, 0
    %p143 = por %p141, %p142
    %s145 = sadd.s32 %s144, 1
    %p148 = scmp.eq.s32.totalorder %s14, 3
    %p149 = scmp.ne.s32.totalorder %s144, %s146
    %p150 = scmp.eq.s32.totalorder %s14, 0
    %p151 = por %p149, %p150
    %p152 = scmp.ne.s32.totalorder %s144, %s146
    %p153 = scmp.eq.s32.totalorder %s19, 3
    %p154 = por %p152, %p153
    %p155 = scmp.ne.s32.totalorder %s146, %s147
    %p156 = scmp.eq.s32.totalorder %s19, 0
    %p157 = por %p155, %p156
    %p158 = scmp.ne.s32.totalorder %s146, %s147
    %p159 = scmp.eq.s32.totalorder %s20, 3
    %p160 = por %p158, %p159
    %p162 = scmp.ne.s32.totalorder %s147, %s161
    %p163 = scmp.eq.s32.totalorder %s20, 0
    %p164 = por %p162, %p163
    %s166 = sadd.s32 %s165, 1
    %p169 = scmp.eq.s32.totalorder %s14, 3
    %p170 = scmp.ne.s32.totalorder %s165, %s167
    %p171 = scmp.eq.s32.totalorder %s14, 0
    %p172 = por %p170, %p171
    %p173 = scmp.ne.s32.totalorder %s165, %s167
    %p174 = scmp.eq.s32.totalorder %s19, 3
    %p175 = por %p173, %p174
    %p176 = scmp.ne.s32.totalorder %s167, %s168
    %p177 = scmp.eq.s32.totalorder %s19, 0
    %p178 = por %p176, %p177
    %p179 = scmp.ne.s32.totalorder %s167, %s168
    %p180 = scmp.eq.s32.totalorder %s20, 3
    %p181 = por %p179, %p180
    %p183 = scmp.ne.s32.totalorder %s168, %s182
    %p184 = scmp.eq.s32.totalorder %s20, 0
    %p185 = por %p183, %p184
    %s187 = sadd.s32 %s186, 1
    %p190 = scmp.eq.s32.totalorder %s14, 3
    %p191 = scmp.ne.s32.totalorder %s186, %s188
    %p192 = scmp.eq.s32.totalorder %s14, 0
    %p193 = por %p191, %p192
    %p194 = scmp.ne.s32.totalorder %s186, %s188
    %p195 = scmp.eq.s32.totalorder %s19, 3
    %p196 = por %p194, %p195
    %p197 = scmp.ne.s32.totalorder %s188, %s189
    %p198 = scmp.eq.s32.totalorder %s19, 0
    %p199 = por %p197, %p198
    %p200 = scmp.ne.s32.totalorder %s188, %s189
    %p201 = scmp.eq.s32.totalorder %s20, 3
    %p202 = por %p200, %p201
    %p204 = scmp.ne.s32.totalorder %s189, %s203
    %p205 = scmp.eq.s32.totalorder %s20, 0
    %p206 = por %p204, %p205
    %s208 = sadd.s32 %s207, 1
    %p211 = scmp.eq.s32.totalorder %s14, 3
    %p212 = scmp.ne.s32.totalorder %s207, %s209
    %p213 = scmp.eq.s32.totalorder %s14, 0
    %p214 = por %p212, %p213
    %p215 = scmp.ne.s32.totalorder %s207, %s209
    %p216 = scmp.eq.s32.totalorder %s19, 3
    %p217 = por %p215, %p216
    %p218 = scmp.ne.s32.totalorder %s209, %s210
    %p219 = scmp.eq.s32.totalorder %s19, 0
    %p220 = por %p218, %p219
    %p221 = scmp.ne.s32.totalorder %s209, %s210
    %p222 = scmp.eq.s32.totalorder %s20, 3
    %p223 = por %p221, %p222
    %p225 = scmp.ne.s32.totalorder %s210, %s224
    %p226 = scmp.eq.s32.totalorder %s20, 0
    %p227 = por %p225, %p226
    %s228 = ssub.s32 %s21, %s40
    %s229 = ssub.s32 %s22, %s36
    %s230 = sor.u32 %s228, %s229
    %s231 = ssub.s32 %s23, %s32
    %s232 = sor.u32 %s230, %s231
    %p233 = scmp.eq.s32.totalorder %s232, 0
    %s235 = sadd.s32 %s234, 1
    %s236 = scalar_select %p233, %s234, %s235
    %p239 = pneg %p233
    %p240 = scmp.eq.s32.totalorder %s14, 3
    %p241 = por %p239, %p240
    %p242 = scmp.ne.s32.totalorder %s234, %s237
    %p243 = scmp.eq.s32.totalorder %s14, 0
    %p244 = por %p242, %p243
    %p245 = scmp.ne.s32.totalorder %s234, %s237
    %p246 = scmp.eq.s32.totalorder %s19, 3
    %p247 = por %p245, %p246
    %p248 = scmp.ne.s32.totalorder %s237, %s238
    %p249 = scmp.eq.s32.totalorder %s19, 0
    %p250 = por %p248, %p249
    %p251 = scmp.ne.s32.totalorder %s237, %s238
    %p252 = scmp.eq.s32.totalorder %s20, 3
    %p253 = por %p251, %p252
    %p255 = scmp.ne.s32.totalorder %s238, %s254
    %p256 = scmp.eq.s32.totalorder %s20, 0
    %p257 = por %p255, %p256
    %p258 = scmp.le.s32.totalorder 1, %s14
    %p259 = scmp.lt.s32.totalorder %s14, 5
    %p260 = pnand %p258, %p259
    %p261 = pneg %p260
    // Predicated region
    $region9: #{transformer_block_forward.4} parent=5 // pred_check
      _
    $region10: #{transformer_block_forward.4} parent=5 // pred_check_branch
      %263 = sbr.rel (%p260) target = $region12
    $region11: #{transformer_block_forward.4} parent=5 // pred_region
      %s264 = ssub.s32 %s14, 1
      // Predicated region
      $region13: #{transformer_block_forward.4} parent=11 // pred_check
        %p265 = pneg %p136
      $region14: #{transformer_block_forward.4} parent=11 // pred_check_branch
        %267 = sbr.rel (%p265) target = $region16
      $region15: #{transformer_block_forward.4} parent=11 // pred_region
        _
      $region16: #{transformer_block_forward.4} parent=11 // pred_fallthru
        _
      // Predicated region
      $region17: #{transformer_block_forward.4} parent=11 // pred_check
        %p268 = pneg %p157
      $region18: #{transformer_block_forward.4} parent=11 // pred_check_branch
        %270 = sbr.rel (%p268) target = $region20
      $region19: #{transformer_block_forward.4} parent=11 // pred_region
        _
      $region20: #{transformer_block_forward.4} parent=11 // pred_fallthru
        _
      // Predicated region
      $region21: #{transformer_block_forward.4} parent=11 // pred_check
        %p271 = pneg %p178
      $region22: #{transformer_block_forward.4} parent=11 // pred_check_branch
        %273 = sbr.rel (%p271) target = $region24
      $region23: #{transformer_block_forward.4} parent=11 // pred_region
        _
      $region24: #{transformer_block_forward.4} parent=11 // pred_fallthru
        _
      // Predicated region
      $region25: #{transformer_block_forward.4} parent=11 // pred_check
        %p274 = pneg %p199
      $region26: #{transformer_block_forward.4} parent=11 // pred_check_branch
        %276 = sbr.rel (%p274) target = $region28
      $region27: #{transformer_block_forward.4} parent=11 // pred_region
        _
      $region28: #{transformer_block_forward.4} parent=11 // pred_fallthru
        _
      // Predicated region
      $region29: #{transformer_block_forward.4} parent=11 // pred_check
        %p277 = pneg %p220
      $region30: #{transformer_block_forward.4} parent=11 // pred_check_branch
        %279 = sbr.rel (%p277) target = $region32
      $region31: #{transformer_block_forward.4} parent=11 // pred_region
        _
      $region32: #{transformer_block_forward.4} parent=11 // pred_fallthru
        _
    $region12: #{transformer_block_forward.4} parent=5 // pred_fallthru
      _
    %p280 = scmp.lt.s32.totalorder %s14, 4
    // Predicated region
    $region33: #{transformer_block_forward.4} parent=5 // pred_check
      %p281 = pneg %p280
    $region34: #{transformer_block_forward.4} parent=5 // pred_check_branch
      %283 = sbr.rel (%p281) target = $region36
    $region35: #{transformer_block_forward.4} parent=5 // pred_region
      // Predicated region
      $region37: #{transformer_block_forward.4} parent=35 // pred_check
        %p284 = pneg %p57
      $region38: #{transformer_block_forward.4} parent=35 // pred_check_branch
        %286 = sbr.rel (%p284) target = $region40
      $region39: #{transformer_block_forward.4} parent=35 // pred_region
        %s287 = smul.u32 8, %s22
        %s288 = smul.u32 2, %s23
        %p289 = scmp.lt.s32.totalorder %s21, 1
        %s290 = scalar_select %p289, %s21, 1
        %p291 = scmp.lt.s32.totalorder %s287, 15
        %s292 = scalar_select %p291, %s287, 15
        %p293 = scmp.lt.s32.totalorder %s288, 1
        %s294 = scalar_select %p293, %s288, 1
        %s295 = smul.addr %s292, 2
        %s296 = sadd.s32 %s294, %s295
        %s297 = smul.addr %s290, 32
        %s298 = sadd.s32 %s296, %s297
        %s299 = smul.addr %s298, 8
        %s300 = scalar_lea.vmem %s0, %s299
        %s301 = smul.u32 8, %s22
        %s302 = smul.u32 2, %s23
      $region40: #{transformer_block_forward.4} parent=35 // pred_fallthru
        _
      // Predicated region
      $region41: #{transformer_block_forward.4} parent=35 // pred_check
        %p303 = pneg %p83
      $region42: #{transformer_block_forward.4} parent=35 // pred_check_branch
        %305 = sbr.rel (%p303) target = $region44
      $region43: #{transformer_block_forward.4} parent=35 // pred_region
        %p306 = scmp.lt.s32.totalorder %s21, 1
        %s307 = scalar_select %p306, %s21, 1
        %s308 = scalar_lea.vmem %s1, %s307
      $region44: #{transformer_block_forward.4} parent=35 // pred_fallthru
        _
      // Predicated region
      $region45: #{transformer_block_forward.4} parent=35 // pred_check
        %p309 = pneg %p109
      $region46: #{transformer_block_forward.4} parent=35 // pred_check_branch
        %311 = sbr.rel (%p309) target = $region48
      $region47: #{transformer_block_forward.4} parent=35 // pred_region
        %p312 = scmp.lt.s32.totalorder %s21, 1
        %s313 = scalar_select %p312, %s21, 1
        %s314 = scalar_lea.vmem %s2, %s313
      $region48: #{transformer_block_forward.4} parent=35 // pred_fallthru
        _
    $region36: #{transformer_block_forward.4} parent=5 // pred_fallthru
      _
    %p315 = scmp.le.s32.totalorder 1, %s14
    %p316 = scmp.lt.s32.totalorder %s14, 5
    %p317 = pnand %p315, %p316
    %p318 = pneg %p317
    // Predicated region
    $region49: #{transformer_block_forward.4} parent=5 // pred_check
      _
    $region50: #{transformer_block_forward.4} parent=5 // pred_check_branch
      %320 = sbr.rel (%p317) target = $region52
    $region51: #{transformer_block_forward.4} parent=5 // pred_region
      %s321 = ssub.s32 %s14, 1
      %s322 = smul.u32 8, %s25
      %s323 = smul.u32 2, %s26
      %p324 = scmp.lt.s32.totalorder %s24, 1
      %s325 = scalar_select %p324, %s24, 1
      %p326 = scmp.lt.s32.totalorder %s322, 15
      %s327 = scalar_select %p326, %s322, 15
      %p328 = scmp.lt.s32.totalorder %s323, 1
      %s329 = scalar_select %p328, %s323, 1
      %s330 = smul.addr %s327, 2
      %s331 = sadd.s32 %s329, %s330
      %s332 = smul.addr %s325, 32
      %s333 = sadd.s32 %s331, %s332
      %s334 = smul.addr %s333, 8
      %s335 = scalar_lea.vmem %s0, %s334
      %p336 = pneg %p63
      %p337 = pneg %p60
      %p338 = scmp.lt.s32.totalorder %s24, 1
      %s339 = scalar_select %p338, %s24, 1
      %s340 = scalar_lea.vmem %s1, %s339
      %p341 = pneg %p89
      %p342 = pneg %p86
      %p343 = scmp.lt.s32.totalorder %s24, 1
      %s344 = scalar_select %p343, %s24, 1
      %s345 = scalar_lea.vmem %s2, %s344
      %p346 = pneg %p115
      %p347 = pneg %p112
      %p348 = pneg %p136
      %p349 = pneg %p133
      %p350 = pneg %p157
      %p351 = pneg %p154
      %p352 = pneg %p178
      %p353 = pneg %p175
      %p354 = pneg %p199
      %p355 = pneg %p196
      %p356 = pneg %p220
      %p357 = pneg %p217
      %p358 = pneg %p250
      %p359 = pneg %p247
      %s360 = smul.u32 8, %s25
      %s361 = smul.u32 2, %s26
      %p362 = scmp.lt.s32.totalorder %s24, 1
      %s363 = scalar_select %p362, %s24, 1
      %p364 = scmp.lt.s32.totalorder %s360, 15
      %s365 = scalar_select %p364, %s360, 15
      %p366 = scmp.lt.s32.totalorder %s361, 1
      %s367 = scalar_select %p366, %s361, 1
      %s368 = smul.addr %s365, 2
      %s369 = sadd.s32 %s367, %s368
      %s370 = smul.addr %s363, 32
      %s371 = sadd.s32 %s369, %s370
      %s372 = smul.addr %s371, 8
      %s373 = scalar_lea.vmem %s8, %s372
      %s374 = smul.u32 8, %s25
      %s375 = smul.u32 2, %s26
      %p376 = scmp.lt.s32.totalorder %s24, 1
      %s377 = scalar_select %p376, %s24, 1
      %p378 = scmp.lt.s32.totalorder %s374, 15
      %s379 = scalar_select %p378, %s374, 15
      %p380 = scmp.lt.s32.totalorder %s375, 1
      %s381 = scalar_select %p380, %s375, 1
      %s382 = smul.addr %s379, 2
      %s383 = sadd.s32 %s381, %s382
      %s384 = smul.addr %s377, 32
      %s385 = sadd.s32 %s383, %s384
      %s386 = smul.addr %s385, 8
      %s387 = scalar_lea.vmem %s0, %s386
      %s388 = smul.u32 8, %s25
      %s389 = smul.u32 2, %s26
      %p390 = scmp.lt.s32.totalorder %s24, 1
      %s391 = scalar_select %p390, %s24, 1
      %s392 = scalar_lea.vmem %s1, %s391
      %p393 = scmp.lt.s32.totalorder %s24, 1
      %s394 = scalar_select %p393, %s24, 1
      %s395 = scalar_lea.vmem %s2, %s394
      %s396 = smul.u32 8, %s25
      %s397 = smul.u32 2, %s26
      %p398 = scmp.lt.s32.totalorder %s24, 1
      %s399 = scalar_select %p398, %s24, 1
      %p400 = scmp.lt.s32.totalorder %s396, 15
      %s401 = scalar_select %p400, %s396, 15
      %p402 = scmp.lt.s32.totalorder %s397, 1
      %s403 = scalar_select %p402, %s397, 1
      %s404 = smul.addr %s401, 2
      %s405 = sadd.s32 %s403, %s404
      %s406 = smul.addr %s399, 32
      %s407 = sadd.s32 %s405, %s406
      %s408 = smul.addr %s407, 8
      %s409 = scalar_lea.vmem %s8, %s408
      %s410 = smul.u32 8, %s25
      %s411 = smul.u32 2, %s26
      %v413 = vld [vmem:[%s392] sm:$0x1]
      %v414 = vld [vmem:[%s395] sm:$0x1]
      %v415 = vrcp.pop %v414
      %v416 = vmul.f32 1.0, %v415
      %v417 = vld [vmem:[%s3] sm:$0x1]
      %v418 = vld [vmem:[%s4] sm:$0x1]
      %v419 = vld [vmem:[%s5] sm:$0xff]
      %v420 = vld [vmem:[%s5 + $0x8] sm:$0xff]
      %v421 = vld [vmem:[%s5 + $0x10] sm:$0xff]
      %v422 = vld [vmem:[%s5 + $0x18] sm:$0xff]
      %v423 = vpack.c.bf16 %v420, %v419
      %v424 = vpack.c.bf16 %v422, %v421
      %v425 = vld [vmem:[%s6] sm:$0x1]
      %v426 = vld [vmem:[%s387] sm:$0xff]
      %v427 = vld [vmem:[%s387 + $0x8] sm:$0xff]
      %v428 = vld [vmem:[%s387 + $0x10] sm:$0xff]
      %v429 = vld [vmem:[%s387 + $0x18] sm:$0xff]
      %v430 = vld [vmem:[%s387 + $0x20] sm:$0xff]
      %v431 = vld [vmem:[%s387 + $0x28] sm:$0xff]
      %v432 = vld [vmem:[%s387 + $0x30] sm:$0xff]
      %v433 = vld [vmem:[%s387 + $0x38] sm:$0xff]
      %v434 = vld [vmem:[%s387 + $0x40] sm:$0xff]
      %v435 = vld [vmem:[%s387 + $0x48] sm:$0xff]
      %v436 = vld [vmem:[%s387 + $0x50] sm:$0xff]
      %v437 = vld [vmem:[%s387 + $0x58] sm:$0xff]
      %v438 = vld [vmem:[%s387 + $0x60] sm:$0xff]
      %v439 = vld [vmem:[%s387 + $0x68] sm:$0xff]
      %v440 = vld [vmem:[%s387 + $0x70] sm:$0xff]
      %v441 = vld [vmem:[%s387 + $0x78] sm:$0xff]
      %v443 = vlaneseq
      %v444 = vshrl.u32 %v443, 7
      %v445 = vsub.s32 0, %v444
      %v446 = vrot.slane %v413, %v445
      %447 = vset.pattern.permute.xlu0 0
      %448 = vperm.xlu0 %447, %v446
      %v449 = vpop.permute.xlu0 %448
      %v451 = vsub.f32 %v426, %v449
      %v452 = vsub.f32 %v428, %v449
      %v453 = vsub.f32 %v430, %v449
      %v454 = vsub.f32 %v432, %v449
      %v455 = vsub.f32 %v434, %v449
      %v456 = vsub.f32 %v436, %v449
      %v457 = vsub.f32 %v438, %v449
      %v458 = vsub.f32 %v440, %v449
      %v460 = vlaneseq
      %v461 = vshrl.u32 %v460, 7
      %v462 = vsub.s32 0, %v461
      %v463 = vrot.slane %v416, %v462
      %464 = vset.pattern.permute.xlu0 0
      %465 = vperm.xlu0 %464, %v463
      %v466 = vpop.permute.xlu0 %465
      %v468 = vmul.f32 %v451, %v466
      %v469 = vmul.f32 %v452, %v466
      %v470 = vmul.f32 %v453, %v466
      %v471 = vmul.f32 %v454, %v466
      %v472 = vmul.f32 %v455, %v466
      %v473 = vmul.f32 %v456, %v466
      %v474 = vmul.f32 %v457, %v466
      %v475 = vmul.f32 %v458, %v466
      %v477 = vlaneseq
      %v478 = vshrl.u32 %v477, 7
      %v479 = vsub.s32 0, %v478
      %v480 = vrot.slane %v417, %v479
      %v482 = vmul.f32 %v468, %v480
      %v483 = vmul.f32 %v469, %v480
      %v484 = vmul.f32 %v470, %v480
      %v485 = vmul.f32 %v471, %v480
      %v486 = vmul.f32 %v472, %v480
      %v487 = vmul.f32 %v473, %v480
      %v488 = vmul.f32 %v474, %v480
      %v489 = vmul.f32 %v475, %v480
      %v491 = vlaneseq
      %v492 = vshrl.u32 %v491, 7
      %v493 = vsub.s32 0, %v492
      %v494 = vrot.slane %v418, %v493
      %v496 = vadd.f32 %v482, %v494
      %v497 = vadd.f32 %v483, %v494
      %v498 = vadd.f32 %v484, %v494
      %v499 = vadd.f32 %v485, %v494
      %v500 = vadd.f32 %v486, %v494
      %v501 = vadd.f32 %v487, %v494
      %v502 = vadd.f32 %v488, %v494
      %v503 = vadd.f32 %v489, %v494
      %v504 = vpack.c.bf16 %v497, %v496
      %v505 = vpack.c.bf16 %v499, %v498
      %v506 = vpack.c.bf16 %v501, %v500
      %v507 = vpack.c.bf16 %v503, %v502
      %v509 = vlaneseq
      %v510 = vshrl.u32 %v509, 7
      %v511 = vsub.s32 0, %v510
      %v512 = vrot.slane %v425, %v511
      %vm514 = vcmask 261120
      %v516 = vsel %vm514, %v504, 0
      %v519 = vsel %vm514, %v505, 0
      %v522 = vsel %vm514, %v506, 0
      %v525 = vsel %vm514, %v507, 0
      %527 = vmatprep.subr.bf16.mxu0 0
      %528 = vmatpush1.bf16.msra.mxu0 %v423
      %529 = vmatprep.subr.bf16.mxu0 0
      %530 = vmatpush1.bf16.msra.mxu0 %v424
      %531 = vmatprep.subr.bf16.mxu0 0
      %532 = vmatpush1.bf16.msra.mxu0 0
      %533 = vmatprep.subr.bf16.mxu0 0
      %534 = vmatpush1.bf16.msra.mxu0 0
      %535 = vmatprep.subr.bf16.mxu0 0
      %536 = vmatpush1.bf16.msra.mxu0 0
      %537 = vmatprep.subr.bf16.mxu0 0
      %538 = vmatpush1.bf16.msra.mxu0 0
      %539 = vmatprep.subr.bf16.mxu0 0
      %540 = vmatpush1.bf16.msra.mxu0 0
      %541 = vmatprep.subr.bf16.mxu0 0
      %542 = vmatpush1.bf16.msra.mxu0 0
      %543 = vmatprep.subr.bf16.mxu0 0
      %544 = vmatpush1.bf16.msra.mxu0 0
      %545 = vmatprep.subr.bf16.mxu0 0
      %546 = vmatpush1.bf16.msra.mxu0 0
      %547 = vmatprep.subr.bf16.mxu0 0
      %548 = vmatpush1.bf16.msra.mxu0 0
      %549 = vmatprep.subr.bf16.mxu0 0
      %550 = vmatpush1.bf16.msra.mxu0 0
      %551 = vmatprep.subr.bf16.mxu0 0
      %552 = vmatpush1.bf16.msra.mxu0 0
      %553 = vmatprep.subr.bf16.mxu0 0
      %554 = vmatpush1.bf16.msra.mxu0 0
      %555 = vmatprep.subr.bf16.mxu0 0
      %556 = vmatpush1.bf16.msra.mxu0 0
      %557 = vmatprep.subr.bf16.mxu0 0
      %558 = vmatpush1.bf16.msra.mxu0 0
      %559 = vmatprep.mubr.bf16.mxu0 0
      %560 = vmatmul.mubr.bf16.gmra.mrb[0].mxu0 %v516
      %v561 = vpop.f32.mrb[0].mxu0
      %v562 = vadd.f32 %v512, %v561
      %v563 = vpop.f32.mrb[0].mxu0
      %v564 = vpop.f32.mrb[0].mxu0
      %v565 = vadd.f32 %v512, %v564
      %v566 = vpop.f32.mrb[0].mxu0
      %567 = vmatprep.mubr.bf16.mxu0 0
      %568 = vmatmul.mubr.bf16.gmra.mrb[0].mxu0 %v519
      %v569 = vpop.f32.mrb[0].mxu0
      %v570 = vadd.f32 %v512, %v569
      %v571 = vpop.f32.mrb[0].mxu0
      %v572 = vpop.f32.mrb[0].mxu0
      %v573 = vadd.f32 %v512, %v572
      %v574 = vpop.f32.mrb[0].mxu0
      %575 = vmatprep.mubr.bf16.mxu0 0
      %576 = vmatmul.mubr.bf16.gmra.mrb[0].mxu0 %v522
      %v577 = vpop.f32.mrb[0].mxu0
      %v578 = vadd.f32 %v512, %v577
      %v579 = vpop.f32.mrb[0].mxu0
      %v580 = vpop.f32.mrb[0].mxu0
      %v581 = vadd.f32 %v512, %v580
      %v582 = vpop.f32.mrb[0].mxu0
      %583 = vmatprep.mubr.bf16.mxu0 0
      %584 = vmatmul.mubr.bf16.gmra.mrb[0].mxu0 %v525
      %v585 = vpop.f32.mrb[0].mxu0
      %v586 = vadd.f32 %v512, %v585
      %v587 = vpop.f32.mrb[0].mxu0
      %v588 = vpop.f32.mrb[0].mxu0
      %v589 = vadd.f32 %v512, %v588
      %v590 = vpop.f32.mrb[0].mxu0
      %591 = vdwg.mxu0
      %v592 = vmul.f32 %v562, 0.25
      %v593 = vmul.f32 %v565, 0.25
      %v594 = vmul.f32 %v570, 0.25
      %v595 = vmul.f32 %v573, 0.25
      %v596 = vmul.f32 %v578, 0.25
      %v597 = vmul.f32 %v581, 0.25
      %v598 = vmul.f32 %v586, 0.25
      %v599 = vmul.f32 %v589, 0.25
      %v600 = vpack.c.bf16 %v593, %v592
      %v601 = vpack.c.bf16 %v595, %v594
      %v602 = vpack.c.bf16 %v597, %v596
      %v603 = vpack.c.bf16 %v599, %v598
      %v604 = vpack.c.bf16 %v565, %v562
      %v605 = vpack.c.bf16 %v573, %v570
      %v606 = vpack.c.bf16 %v581, %v578
      %v607 = vpack.c.bf16 %v589, %v586
      %v608 = vld [vmem:[%s7] sm:$0xff]
      %v609 = vld [vmem:[%s7 + $0x8] sm:$0xff]
      %v610 = vld [vmem:[%s7 + $0x10] sm:$0xff]
      %v611 = vld [vmem:[%s7 + $0x18] sm:$0xff]
      %v612 = vld [vmem:[%s7 + $0x20] sm:$0xff]
      %v613 = vld [vmem:[%s7 + $0x28] sm:$0xff]
      %v614 = vld [vmem:[%s7 + $0x30] sm:$0xff]
      %v615 = vld [vmem:[%s7 + $0x38] sm:$0xff]
      %620 = vrot.lane.b32.xlu0 %v604, 96
      %v621 = vpop.permute.xlu0 %620
      %622 = vrot.lane.b32.xlu0 %v605, 96
      %v623 = vpop.permute.xlu0 %622
      %624 = vrot.lane.b32.xlu0 %v606, 96
      %v625 = vpop.permute.xlu0 %624
      %626 = vrot.lane.b32.xlu0 %v607, 96
      %v627 = vpop.permute.xlu0 %626
      %vm628 = vcmask 130048
      %v630 = vsel %vm628, %v600, 0
      %v633 = vsel %vm628, %v601, 0
      %v636 = vsel %vm628, %v602, 0
      %v639 = vsel %vm628, %v603, 0
      %v642 = vsel %vm628, %v621, 0
      %v645 = vsel %vm628, %v623, 0
      %v648 = vsel %vm628, %v625, 0
      %v651 = vsel %vm628, %v627, 0
      %653 = vmatprep.subr.bf16.mxu0 0
      %654 = vmatpush1.bf16.xpose.msra.mxu0 %v642
      %655 = vmatprep.subr.bf16.mxu0 0
      %656 = vmatpush1.bf16.xpose.msra.mxu0 %v645
      %657 = vmatprep.subr.bf16.mxu0 0
      %658 = vmatpush1.bf16.xpose.msra.mxu0 %v648
      %659 = vmatprep.subr.bf16.mxu0 0
      %660 = vmatpush1.bf16.xpose.msra.mxu0 %v651
      %661 = vmatprep.subr.bf16.mxu0 0
      %662 = vmatpush1.bf16.xpose.msra.mxu0 0
      %663 = vmatprep.subr.bf16.mxu0 0
      %664 = vmatpush1.bf16.xpose.msra.mxu0 0
      %665 = vmatprep.subr.bf16.mxu0 0
      %666 = vmatpush1.bf16.xpose.msra.mxu0 0
      %667 = vmatprep.subr.bf16.mxu0 0
      %668 = vmatpush1.bf16.xpose.msra.mxu0 0
      %669 = vmatprep.subr.bf16.mxu0 0
      %670 = vmatpush1.bf16.xpose.msra.mxu0 0
      %671 = vmatprep.subr.bf16.mxu0 0
      %672 = vmatpush1.bf16.xpose.msra.mxu0 0
      %673 = vmatprep.subr.bf16.mxu0 0
      %674 = vmatpush1.bf16.xpose.msra.mxu0 0
      %675 = vmatprep.subr.bf16.mxu0 0
      %676 = vmatpush1.bf16.xpose.msra.mxu0 0
      %677 = vmatprep.subr.bf16.mxu0 0
      %678 = vmatpush1.bf16.xpose.msra.mxu0 0
      %679 = vmatprep.subr.bf16.mxu0 0
      %680 = vmatpush1.bf16.xpose.msra.mxu0 0
      %681 = vmatprep.subr.bf16.mxu0 0
      %682 = vmatpush1.bf16.xpose.msra.mxu0 0
      %683 = vmatprep.subr.bf16.mxu0 0
      %684 = vmatpush1.bf16.xpose.msra.mxu0 0
      %685 = vmatprep.mubr.bf16.mxu0 0
      %686 = vmatmul.mubr.bf16.gmra.mrb[0].mxu0 %v630
      %v687 = vpop.f32.mrb[0].mxu0
      %v688 = vadd.f32 %v608, %v687
      %v689 = vpop.f32.mrb[0].mxu0
      %v690 = vpop.f32.mrb[0].mxu0
      %v691 = vadd.f32 %v609, %v690
      %v692 = vpop.f32.mrb[0].mxu0
      %693 = vmatprep.mubr.bf16.mxu0 0
      %694 = vmatmul.mubr.bf16.gmra.mrb[0].mxu0 %v633
      %v695 = vpop.f32.mrb[0].mxu0
      %v696 = vadd.f32 %v610, %v695
      %v697 = vpop.f32.mrb[0].mxu0
      %v698 = vpop.f32.mrb[0].mxu0
      %v699 = vadd.f32 %v611, %v698
      %v700 = vpop.f32.mrb[0].mxu0
      %701 = vmatprep.mubr.bf16.mxu0 0
      %702 = vmatmul.mubr.bf16.gmra.mrb[0].mxu0 %v636
      %v703 = vpop.f32.mrb[0].mxu0
      %v704 = vadd.f32 %v612, %v703
      %v705 = vpop.f32.mrb[0].mxu0
      %v706 = vpop.f32.mrb[0].mxu0
      %v707 = vadd.f32 %v613, %v706
      %v708 = vpop.f32.mrb[0].mxu0
      %709 = vmatprep.mubr.bf16.mxu0 0
      %710 = vmatmul.mubr.bf16.gmra.mrb[0].mxu0 %v639
      %v711 = vpop.f32.mrb[0].mxu0
      %v712 = vadd.f32 %v614, %v711
      %v713 = vpop.f32.mrb[0].mxu0
      %v714 = vpop.f32.mrb[0].mxu0
      %v715 = vadd.f32 %v615, %v714
      %v716 = vpop.f32.mrb[0].mxu0
      %717 = vdwg.mxu0
      %vm718 = vcmask 523264
      %v719 = vsel %vm718, %v688, -inf
      %720 = vmax.xlane.f32.xlu0 %v719
      %v721 = vpop.xlane.xlu0 %720
      %v722 = vsel %vm718, %v691, -inf
      %723 = vmax.xlane.f32.xlu0 %v722
      %v724 = vpop.xlane.xlu0 %723
      %v725 = vsel %vm718, %v696, -inf
      %726 = vmax.xlane.f32.xlu0 %v725
      %v727 = vpop.xlane.xlu0 %726
      %v728 = vsel %vm718, %v699, -inf
      %729 = vmax.xlane.f32.xlu0 %v728
      %v730 = vpop.xlane.xlu0 %729
      %v731 = vsel %vm718, %v704, -inf
      %732 = vmax.xlane.f32.xlu0 %v731
      %v733 = vpop.xlane.xlu0 %732
      %v734 = vsel %vm718, %v707, -inf
      %735 = vmax.xlane.f32.xlu0 %v734
      %v736 = vpop.xlane.xlu0 %735
      %v737 = vsel %vm718, %v712, -inf
      %738 = vmax.xlane.f32.xlu0 %v737
      %v739 = vpop.xlane.xlu0 %738
      %v740 = vsel %vm718, %v715, -inf
      %741 = vmax.xlane.f32.xlu0 %v740
      %v742 = vpop.xlane.xlu0 %741
      %v743 = vsub.f32 %v688, %v721
      %v744 = vsub.f32 %v691, %v724
      %v745 = vsub.f32 %v696, %v727
      %v746 = vsub.f32 %v699, %v730
      %v747 = vsub.f32 %v704, %v733
      %v748 = vsub.f32 %v707, %v736
      %v749 = vsub.f32 %v712, %v739
      %v750 = vsub.f32 %v715, %v742
      %v751 = vmul.f32 %v743, 1.442695
      %v752 = vpow.pop %v751
      %v753 = vmul.f32 %v744, 1.442695
      %v754 = vpow.pop %v753
      %v755 = vmul.f32 %v745, 1.442695
      %v756 = vpow.pop %v755
      %v757 = vmul.f32 %v746, 1.442695
      %v758 = vpow.pop %v757
      %v759 = vmul.f32 %v747, 1.442695
      %v760 = vpow.pop %v759
      %v761 = vmul.f32 %v748, 1.442695
      %v762 = vpow.pop %v761
      %v763 = vmul.f32 %v749, 1.442695
      %v764 = vpow.pop %v763
      %v765 = vmul.f32 %v750, 1.442695
      %v766 = vpow.pop %v765
      %v767 = vsel %vm718, %v752, 0.0
      %768 = vadd.xlane.f32.xlu0 %v767
      %v769 = vpop.xlane.xlu0 %768
      %v770 = vsel %vm718, %v754, 0.0
      %771 = vadd.xlane.f32.xlu0 %v770
      %v772 = vpop.xlane.xlu0 %771
      %v773 = vsel %vm718, %v756, 0.0
      %774 = vadd.xlane.f32.xlu0 %v773
      %v775 = vpop.xlane.xlu0 %774
      %v776 = vsel %vm718, %v758, 0.0
      %777 = vadd.xlane.f32.xlu0 %v776
      %v778 = vpop.xlane.xlu0 %777
      %v779 = vsel %vm718, %v760, 0.0
      %780 = vadd.xlane.f32.xlu0 %v779
      %v781 = vpop.xlane.xlu0 %780
      %v782 = vsel %vm718, %v762, 0.0
      %783 = vadd.xlane.f32.xlu0 %v782
      %v784 = vpop.xlane.xlu0 %783
      %v785 = vsel %vm718, %v764, 0.0
      %786 = vadd.xlane.f32.xlu0 %v785
      %v787 = vpop.xlane.xlu0 %786
      %v788 = vsel %vm718, %v766, 0.0
      %789 = vadd.xlane.f32.xlu0 %v788
      %v790 = vpop.xlane.xlu0 %789
      %v791 = vrcp.pop %v769
      %v792 = vrcp.pop %v772
      %v793 = vrcp.pop %v775
      %v794 = vrcp.pop %v778
      %v795 = vrcp.pop %v781
      %v796 = vrcp.pop %v784
      %v797 = vrcp.pop %v787
      %v798 = vrcp.pop %v790
      %v799 = vmul.f32 %v752, %v791
      %v800 = vmul.f32 %v754, %v792
      %v801 = vmul.f32 %v756, %v793
      %v802 = vmul.f32 %v758, %v794
      %v803 = vmul.f32 %v760, %v795
      %v804 = vmul.f32 %v762, %v796
      %v805 = vmul.f32 %v764, %v797
      %v806 = vmul.f32 %v766, %v798
      %v807 = vpack.c.bf16 %v800, %v799
      %v808 = vpack.c.bf16 %v802, %v801
      %v809 = vpack.c.bf16 %v804, %v803
      %v810 = vpack.c.bf16 %v806, %v805
      %811 = vrot.lane.b32.xlu0 %v604, 64
      %v812 = vpop.permute.xlu0 %811
      %813 = vrot.lane.b32.xlu0 %v605, 64
      %v814 = vpop.permute.xlu0 %813
      %815 = vrot.lane.b32.xlu0 %v606, 64
      %v816 = vpop.permute.xlu0 %815
      %817 = vrot.lane.b32.xlu0 %v607, 64
      %v818 = vpop.permute.xlu0 %817
      %v824 = vsel %vm718, %v807, 0
      %v827 = vsel %vm718, %v808, 0
      %v830 = vsel %vm718, %v809, 0
      %v833 = vsel %vm718, %v810, 0
      %835 = vmatprep.subr.bf16.mxu0 0
      %836 = vmatpush1.bf16.msra.mxu0 %v812
      %837 = vmatprep.subr.bf16.mxu0 0
      %838 = vmatpush1.bf16.msra.mxu0 %v814
      %839 = vmatprep.subr.bf16.mxu0 0
      %840 = vmatpush1.bf16.msra.mxu0 %v816
      %841 = vmatprep.subr.bf16.mxu0 0
      %842 = vmatpush1.bf16.msra.mxu0 %v818
      %843 = vmatprep.subr.bf16.mxu0 0
      %844 = vmatpush1.bf16.msra.mxu0 0
      %845 = vmatprep.subr.bf16.mxu0 0
      %846 = vmatpush1.bf16.msra.mxu0 0
      %847 = vmatprep.subr.bf16.mxu0 0
      %848 = vmatpush1.bf16.msra.mxu0 0
      %849 = vmatprep.subr.bf16.mxu0 0
      %850 = vmatpush1.bf16.msra.mxu0 0
      %851 = vmatprep.subr.bf16.mxu0 0
      %852 = vmatpush1.bf16.msra.mxu0 0
      %853 = vmatprep.subr.bf16.mxu0 0
      %854 = vmatpush1.bf16.msra.mxu0 0
      %855 = vmatprep.subr.bf16.mxu0 0
      %856 = vmatpush1.bf16.msra.mxu0 0
      %857 = vmatprep.subr.bf16.mxu0 0
      %858 = vmatpush1.bf16.msra.mxu0 0
      %859 = vmatprep.subr.bf16.mxu0 0
      %860 = vmatpush1.bf16.msra.mxu0 0
      %861 = vmatprep.subr.bf16.mxu0 0
      %862 = vmatpush1.bf16.msra.mxu0 0
      %863 = vmatprep.subr.bf16.mxu0 0
      %864 = vmatpush1.bf16.msra.mxu0 0
      %865 = vmatprep.subr.bf16.mxu0 0
      %866 = vmatpush1.bf16.msra.mxu0 0
      %867 = vmatprep.mubr.bf16.mxu0 0
      %868 = vmatmul.mubr.bf16.gmra.mrb[0].mxu0 %v824
      %v869 = vpop.f32.mrb[0].mxu0
      %v870 = vadd.f32 0.0, %v869
      %v871 = vpop.f32.mrb[0].mxu0
      %v872 = vpop.f32.mrb[0].mxu0
      %v873 = vadd.f32 0.0, %v872
      %v874 = vpop.f32.mrb[0].mxu0
      %875 = vmatprep.mubr.bf16.mxu0 0
      %876 = vmatmul.mubr.bf16.gmra.mrb[0].mxu0 %v827
      %v877 = vpop.f32.mrb[0].mxu0
      %v878 = vadd.f32 0.0, %v877
      %v879 = vpop.f32.mrb[0].mxu0
      %v880 = vpop.f32.mrb[0].mxu0
      %v881 = vadd.f32 0.0, %v880
      %v882 = vpop.f32.mrb[0].mxu0
      %883 = vmatprep.mubr.bf16.mxu0 0
      %884 = vmatmul.mubr.bf16.gmra.mrb[0].mxu0 %v830
      %v885 = vpop.f32.mrb[0].mxu0
      %v886 = vadd.f32 0.0, %v885
      %v887 = vpop.f32.mrb[0].mxu0
      %v888 = vpop.f32.mrb[0].mxu0
      %v889 = vadd.f32 0.0, %v888
      %v890 = vpop.f32.mrb[0].mxu0
      %891 = vmatprep.mubr.bf16.mxu0 0
      %892 = vmatmul.mubr.bf16.gmra.mrb[0].mxu0 %v833
      %v893 = vpop.f32.mrb[0].mxu0
      %v894 = vadd.f32 0.0, %v893
      %v895 = vpop.f32.mrb[0].mxu0
      %v896 = vpop.f32.mrb[0].mxu0
      %v897 = vadd.f32 0.0, %v896
      %v898 = vpop.f32.mrb[0].mxu0
      %899 = vdwg.mxu0
      %900 = vst.msk [vmem:[%s409] sm:$0xff] %vm628, %v870
      %901 = vst.msk [vmem:[%s409 + $0x10] sm:$0xff] %vm628, %v873
      %902 = vst.msk [vmem:[%s409 + $0x20] sm:$0xff] %vm628, %v878
      %903 = vst.msk [vmem:[%s409 + $0x30] sm:$0xff] %vm628, %v881
      %904 = vst.msk [vmem:[%s409 + $0x40] sm:$0xff] %vm628, %v886
      %905 = vst.msk [vmem:[%s409 + $0x50] sm:$0xff] %vm628, %v889
      %906 = vst.msk [vmem:[%s409 + $0x60] sm:$0xff] %vm628, %v894
      %907 = vst.msk [vmem:[%s409 + $0x70] sm:$0xff] %vm628, %v897
      %s908 = scalar_lea.vmem %s7, 64
      %v909 = vld [vmem:[%s908] sm:$0xff]
      %v910 = vld [vmem:[%s908 + $0x8] sm:$0xff]
      %v911 = vld [vmem:[%s908 + $0x10] sm:$0xff]
      %v912 = vld [vmem:[%s908 + $0x18] sm:$0xff]
      %v913 = vld [vmem:[%s908 + $0x20] sm:$0xff]
      %v914 = vld [vmem:[%s908 + $0x28] sm:$0xff]
      %v915 = vld [vmem:[%s908 + $0x30] sm:$0xff]
      %v916 = vld [vmem:[%s908 + $0x38] sm:$0xff]
      %921 = vrot.lane.b32.xlu0 %v600, 112
      %v922 = vpop.permute.xlu0 %921
      %923 = vrot.lane.b32.xlu0 %v601, 112
      %v924 = vpop.permute.xlu0 %923
      %925 = vrot.lane.b32.xlu0 %v602, 112
      %v926 = vpop.permute.xlu0 %925
      %927 = vrot.lane.b32.xlu0 %v603, 112
      %v928 = vpop.permute.xlu0 %927
      %929 = vrot.lane.b32.xlu0 %v604, 80
      %v930 = vpop.permute.xlu0 %929
      %931 = vrot.lane.b32.xlu0 %v605, 80
      %v932 = vpop.permute.xlu0 %931
      %933 = vrot.lane.b32.xlu0 %v606, 80
      %v934 = vpop.permute.xlu0 %933
      %935 = vrot.lane.b32.xlu0 %v607, 80
      %v936 = vpop.permute.xlu0 %935
      %v938 = vsel %vm628, %v922, 0
      %v941 = vsel %vm628, %v924, 0
      %v944 = vsel %vm628, %v926, 0
      %v947 = vsel %vm628, %v928, 0
      %v950 = vsel %vm628, %v930, 0
      %v953 = vsel %vm628, %v932, 0
      %v956 = vsel %vm628, %v934, 0
      %v959 = vsel %vm628, %v936, 0
      %961 = vmatprep.subr.bf16.mxu0 0
      %962 = vmatpush1.bf16.xpose.msra.mxu0 %v950
      %963 = vmatprep.subr.bf16.mxu0 0
      %964 = vmatpush1.bf16.xpose.msra.mxu0 %v953
      %965 = vmatprep.subr.bf16.mxu0 0
      %966 = vmatpush1.bf16.xpose.msra.mxu0 %v956
      %967 = vmatprep.subr.bf16.mxu0 0
      %968 = vmatpush1.bf16.xpose.msra.mxu0 %v959
      %969 = vmatprep.subr.bf16.mxu0 0
      %970 = vmatpush1.bf16.xpose.msra.mxu0 0
      %971 = vmatprep.subr.bf16.mxu0 0
      %972 = vmatpush1.bf16.xpose.msra.mxu0 0
      %973 = vmatprep.subr.bf16.mxu0 0
      %974 = vmatpush1.bf16.xpose.msra.mxu0 0
      %975 = vmatprep.subr.bf16.mxu0 0
      %976 = vmatpush1.bf16.xpose.msra.mxu0 0
      %977 = vmatprep.subr.bf16.mxu0 0
      %978 = vmatpush1.bf16.xpose.msra.mxu0 0
      %979 = vmatprep.subr.bf16.mxu0 0
      %980 = vmatpush1.bf16.xpose.msra.mxu0 0
      %981 = vmatprep.subr.bf16.mxu0 0
      %982 = vmatpush1.bf16.xpose.msra.mxu0 0
      %983 = vmatprep.subr.bf16.mxu0 0
      %984 = vmatpush1.bf16.xpose.msra.mxu0 0
      %985 = vmatprep.subr.bf16.mxu0 0
      %986 = vmatpush1.bf16.xpose.msra.mxu0 0
      %987 = vmatprep.subr.bf16.mxu0 0
      %988 = vmatpush1.bf16.xpose.msra.mxu0 0
      %989 = vmatprep.subr.bf16.mxu0 0
      %990 = vmatpush1.bf16.xpose.msra.mxu0 0
      %991 = vmatprep.subr.bf16.mxu0 0
      %992 = vmatpush1.bf16.xpose.msra.mxu0 0
      %993 = vmatprep.mubr.bf16.mxu0 0
      %994 = vmatmul.mubr.bf16.gmra.mrb[0].mxu0 %v938
      %v995 = vpop.f32.mrb[0].mxu0
      %v996 = vadd.f32 %v909, %v995
      %v997 = vpop.f32.mrb[0].mxu0
      %v998 = vpop.f32.mrb[0].mxu0
      %v999 = vadd.f32 %v910, %v998
      %v1000 = vpop.f32.mrb[0].mxu0
      %1001 = vmatprep.mubr.bf16.mxu0 0
      %1002 = vmatmul.mubr.bf16.gmra.mrb[0].mxu0 %v941
      %v1003 = vpop.f32.mrb[0].mxu0
      %v1004 = vadd.f32 %v911, %v1003
      %v1005 = vpop.f32.mrb[0].mxu0
      %v1006 = vpop.f32.mrb[0].mxu0
      %v1007 = vadd.f32 %v912, %v1006
      %v1008 = vpop.f32.mrb[0].mxu0
      %1009 = vmatprep.mubr.bf16.mxu0 0
      %1010 = vmatmul.mubr.bf16.gmra.mrb[0].mxu0 %v944
      %v1011 = vpop.f32.mrb[0].mxu0
      %v1012 = vadd.f32 %v913, %v1011
      %v1013 = vpop.f32.mrb[0].mxu0
      %v1014 = vpop.f32.mrb[0].mxu0
      %v1015 = vadd.f32 %v914, %v1014
      %v1016 = vpop.f32.mrb[0].mxu0
      %1017 = vmatprep.mubr.bf16.mxu0 0
      %1018 = vmatmul.mubr.bf16.gmra.mrb[0].mxu0 %v947
      %v1019 = vpop.f32.mrb[0].mxu0
      %v1020 = vadd.f32 %v915, %v1019
      %v1021 = vpop.f32.mrb[0].mxu0
      %v1022 = vpop.f32.mrb[0].mxu0
      %v1023 = vadd.f32 %v916, %v1022
      %v1024 = vpop.f32.mrb[0].mxu0
      %1025 = vdwg.mxu0
      %v1026 = vsel %vm718, %v996, -inf
      %1027 = vmax.xlane.f32.xlu0 %v1026
      %v1028 = vpop.xlane.xlu0 %1027
      %v1029 = vsel %vm718, %v999, -inf
      %1030 = vmax.xlane.f32.xlu0 %v1029
      %v1031 = vpop.xlane.xlu0 %1030
      %v1032 = vsel %vm718, %v1004, -inf
      %1033 = vmax.xlane.f32.xlu0 %v1032
      %v1034 = vpop.xlane.xlu0 %1033
      %v1035 = vsel %vm718, %v1007, -inf
      %1036 = vmax.xlane.f32.xlu0 %v1035
      %v1037 = vpop.xlane.xlu0 %1036
      %v1038 = vsel %vm718, %v1012, -inf
      %1039 = vmax.xlane.f32.xlu0 %v1038
      %v1040 = vpop.xlane.xlu0 %1039
      %v1041 = vsel %vm718, %v1015, -inf
      %1042 = vmax.xlane.f32.xlu0 %v1041
      %v1043 = vpop.xlane.xlu0 %1042
      %v1044 = vsel %vm718, %v1020, -inf
      %1045 = vmax.xlane.f32.xlu0 %v1044
      %v1046 = vpop.xlane.xlu0 %1045
      %v1047 = vsel %vm718, %v1023, -inf
      %1048 = vmax.xlane.f32.xlu0 %v1047
      %v1049 = vpop.xlane.xlu0 %1048
      %v1050 = vsub.f32 %v996, %v1028
      %v1051 = vsub.f32 %v999, %v1031
      %v1052 = vsub.f32 %v1004, %v1034
      %v1053 = vsub.f32 %v1007, %v1037
      %v1054 = vsub.f32 %v1012, %v1040
      %v1055 = vsub.f32 %v1015, %v1043
      %v1056 = vsub.f32 %v1020, %v1046
      %v1057 = vsub.f32 %v1023, %v1049
      %v1058 = vmul.f32 %v1050, 1.442695
      %v1059 = vpow.pop %v1058
      %v1060 = vmul.f32 %v1051, 1.442695
      %v1061 = vpow.pop %v1060
      %v1062 = vmul.f32 %v1052, 1.442695
      %v1063 = vpow.pop %v1062
      %v1064 = vmul.f32 %v1053, 1.442695
      %v1065 = vpow.pop %v1064
      %v1066 = vmul.f32 %v1054, 1.442695
      %v1067 = vpow.pop %v1066
      %v1068 = vmul.f32 %v1055, 1.442695
      %v1069 = vpow.pop %v1068
      %v1070 = vmul.f32 %v1056, 1.442695
      %v1071 = vpow.pop %v1070
      %v1072 = vmul.f32 %v1057, 1.442695
      %v1073 = vpow.pop %v1072
      %v1074 = vsel %vm718, %v1059, 0.0
      %1075 = vadd.xlane.f32.xlu0 %v1074
      %v1076 = vpop.xlane.xlu0 %1075
      %v1077 = vsel %vm718, %v1061, 0.0
      %1078 = vadd.xlane.f32.xlu0 %v1077
      %v1079 = vpop.xlane.xlu0 %1078
      %v1080 = vsel %vm718, %v1063, 0.0
      %1081 = vadd.xlane.f32.xlu0 %v1080
      %v1082 = vpop.xlane.xlu0 %1081
      %v1083 = vsel %vm718, %v1065, 0.0
      %1084 = vadd.xlane.f32.xlu0 %v1083
      %v1085 = vpop.xlane.xlu0 %1084
      %v1086 = vsel %vm718, %v1067, 0.0
      %1087 = vadd.xlane.f32.xlu0 %v1086
      %v1088 = vpop.xlane.xlu0 %1087
      %v1089 = vsel %vm718, %v1069, 0.0
      %1090 = vadd.xlane.f32.xlu0 %v1089
      %v1091 = vpop.xlane.xlu0 %1090
      %v1092 = vsel %vm718, %v1071, 0.0
      %1093 = vadd.xlane.f32.xlu0 %v1092
      %v1094 = vpop.xlane.xlu0 %1093
      %v1095 = vsel %vm718, %v1073, 0.0
      %1096 = vadd.xlane.f32.xlu0 %v1095
      %v1097 = vpop.xlane.xlu0 %1096
      %v1098 = vrcp.pop %v1076
      %v1099 = vrcp.pop %v1079
      %v1100 = vrcp.pop %v1082
      %v1101 = vrcp.pop %v1085
      %v1102 = vrcp.pop %v1088
      %v1103 = vrcp.pop %v1091
      %v1104 = vrcp.pop %v1094
      %v1105 = vrcp.pop %v1097
      %v1106 = vmul.f32 %v1059, %v1098
      %v1107 = vmul.f32 %v1061, %v1099
      %v1108 = vmul.f32 %v1063, %v1100
      %v1109 = vmul.f32 %v1065, %v1101
      %v1110 = vmul.f32 %v1067, %v1102
      %v1111 = vmul.f32 %v1069, %v1103
      %v1112 = vmul.f32 %v1071, %v1104
      %v1113 = vmul.f32 %v1073, %v1105
      %v1114 = vpack.c.bf16 %v1107, %v1106
      %v1115 = vpack.c.bf16 %v1109, %v1108
      %v1116 = vpack.c.bf16 %v1111, %v1110
      %v1117 = vpack.c.bf16 %v1113, %v1112
      %1118 = vrot.lane.b32.xlu0 %v604, 48
      %v1119 = vpop.permute.xlu0 %1118
      %1120 = vrot.lane.b32.xlu0 %v605, 48
      %v1121 = vpop.permute.xlu0 %1120
      %1122 = vrot.lane.b32.xlu0 %v606, 48
      %v1123 = vpop.permute.xlu0 %1122
      %1124 = vrot.lane.b32.xlu0 %v607, 48
      %v1125 = vpop.permute.xlu0 %1124
      %v1131 = vsel %vm718, %v1114, 0
      %v1134 = vsel %vm718, %v1115, 0
      %v1137 = vsel %vm718, %v1116, 0
      %v1140 = vsel %vm718, %v1117, 0
      %1142 = vmatprep.subr.bf16.mxu0 0
      %1143 = vmatpush1.bf16.msra.mxu0 %v1119
      %1144 = vmatprep.subr.bf16.mxu0 0
      %1145 = vmatpush1.bf16.msra.mxu0 %v1121
      %1146 = vmatprep.subr.bf16.mxu0 0
      %1147 = vmatpush1.bf16.msra.mxu0 %v1123
      %1148 = vmatprep.subr.bf16.mxu0 0
      %1149 = vmatpush1.bf16.msra.mxu0 %v1125
      %1150 = vmatprep.subr.bf16.mxu0 0
      %1151 = vmatpush1.bf16.msra.mxu0 0
      %1152 = vmatprep.subr.bf16.mxu0 0
      %1153 = vmatpush1.bf16.msra.mxu0 0
      %1154 = vmatprep.subr.bf16.mxu0 0
      %1155 = vmatpush1.bf16.msra.mxu0 0
      %1156 = vmatprep.subr.bf16.mxu0 0
      %1157 = vmatpush1.bf16.msra.mxu0 0
      %1158 = vmatprep.subr.bf16.mxu0 0
      %1159 = vmatpush1.bf16.msra.mxu0 0
      %1160 = vmatprep.subr.bf16.mxu0 0
      %1161 = vmatpush1.bf16.msra.mxu0 0
      %1162 = vmatprep.subr.bf16.mxu0 0
      %1163 = vmatpush1.bf16.msra.mxu0 0
      %1164 = vmatprep.subr.bf16.mxu0 0
      %1165 = vmatpush1.bf16.msra.mxu0 0
      %1166 = vmatprep.subr.bf16.mxu0 0
      %1167 = vmatpush1.bf16.msra.mxu0 0
      %1168 = vmatprep.subr.bf16.mxu0 0
      %1169 = vmatpush1.bf16.msra.mxu0 0
      %1170 = vmatprep.subr.bf16.mxu0 0
      %1171 = vmatpush1.bf16.msra.mxu0 0
      %1172 = vmatprep.subr.bf16.mxu0 0
      %1173 = vmatpush1.bf16.msra.mxu0 0
      %1174 = vmatprep.mubr.bf16.mxu0 0
      %1175 = vmatmul.mubr.bf16.gmra.mrb[0].mxu0 %v1131
      %v1176 = vpop.f32.mrb[0].mxu0
      %v1177 = vadd.f32 0.0, %v1176
      %v1178 = vpop.f32.mrb[0].mxu0
      %v1179 = vpop.f32.mrb[0].mxu0
      %v1180 = vadd.f32 0.0, %v1179
      %v1181 = vpop.f32.mrb[0].mxu0
      %1182 = vmatprep.mubr.bf16.mxu0 0
      %1183 = vmatmul.mubr.bf16.gmra.mrb[0].mxu0 %v1134
      %v1184 = vpop.f32.mrb[0].mxu0
      %v1185 = vadd.f32 0.0, %v1184
      %v1186 = vpop.f32.mrb[0].mxu0
      %v1187 = vpop.f32.mrb[0].mxu0
      %v1188 = vadd.f32 0.0, %v1187
      %v1189 = vpop.f32.mrb[0].mxu0
      %1190 = vmatprep.mubr.bf16.mxu0 0
      %1191 = vmatmul.mubr.bf16.gmra.mrb[0].mxu0 %v1137
      %v1192 = vpop.f32.mrb[0].mxu0
      %v1193 = vadd.f32 0.0, %v1192
      %v1194 = vpop.f32.mrb[0].mxu0
      %v1195 = vpop.f32.mrb[0].mxu0
      %v1196 = vadd.f32 0.0, %v1195
      %v1197 = vpop.f32.mrb[0].mxu0
      %1198 = vmatprep.mubr.bf16.mxu0 0
      %1199 = vmatmul.mubr.bf16.gmra.mrb[0].mxu0 %v1140
      %v1200 = vpop.f32.mrb[0].mxu0
      %v1201 = vadd.f32 0.0, %v1200
      %v1202 = vpop.f32.mrb[0].mxu0
      %v1203 = vpop.f32.mrb[0].mxu0
      %v1204 = vadd.f32 0.0, %v1203
      %v1205 = vpop.f32.mrb[0].mxu0
      %1206 = vdwg.mxu0
      %1215 = vrot.lane.b32.xlu0 %v1177, 16
      %v1216 = vpop.permute.xlu0 %1215
      %1217 = vrot.lane.b32.xlu0 %v1180, 16
      %v1218 = vpop.permute.xlu0 %1217
      %1219 = vrot.lane.b32.xlu0 %v1185, 16
      %v1220 = vpop.permute.xlu0 %1219
      %1221 = vrot.lane.b32.xlu0 %v1188, 16
      %v1222 = vpop.permute.xlu0 %1221
      %1223 = vrot.lane.b32.xlu0 %v1193, 16
      %v1224 = vpop.permute.xlu0 %1223
      %1225 = vrot.lane.b32.xlu0 %v1196, 16
      %v1226 = vpop.permute.xlu0 %1225
      %1227 = vrot.lane.b32.xlu0 %v1201, 16
      %v1228 = vpop.permute.xlu0 %1227
      %1229 = vrot.lane.b32.xlu0 %v1204, 16
      %v1230 = vpop.permute.xlu0 %1229
      %vm1239 = vcmask 261248
      %1240 = vst.msk [vmem:[%s409] sm:$0xff] %vm1239, %v1216
      %1241 = vst.msk [vmem:[%s409 + $0x10] sm:$0xff] %vm1239, %v1218
      %1242 = vst.msk [vmem:[%s409 + $0x20] sm:$0xff] %vm1239, %v1220
      %1243 = vst.msk [vmem:[%s409 + $0x30] sm:$0xff] %vm1239, %v1222
      %1244 = vst.msk [vmem:[%s409 + $0x40] sm:$0xff] %vm1239, %v1224
      %1245 = vst.msk [vmem:[%s409 + $0x50] sm:$0xff] %vm1239, %v1226
      %1246 = vst.msk [vmem:[%s409 + $0x60] sm:$0xff] %vm1239, %v1228
      %1247 = vst.msk [vmem:[%s409 + $0x70] sm:$0xff] %vm1239, %v1230
      %v1248 = vsub.f32 %v427, %v449
      %v1249 = vsub.f32 %v429, %v449
      %v1250 = vsub.f32 %v431, %v449
      %v1251 = vsub.f32 %v433, %v449
      %v1252 = vsub.f32 %v435, %v449
      %v1253 = vsub.f32 %v437, %v449
      %v1254 = vsub.f32 %v439, %v449
      %v1255 = vsub.f32 %v441, %v449
      %v1256 = vmul.f32 %v1248, %v466
      %v1257 = vmul.f32 %v1249, %v466
      %v1258 = vmul.f32 %v1250, %v466
      %v1259 = vmul.f32 %v1251, %v466
      %v1260 = vmul.f32 %v1252, %v466
      %v1261 = vmul.f32 %v1253, %v466
      %v1262 = vmul.f32 %v1254, %v466
      %v1263 = vmul.f32 %v1255, %v466
      %v1264 = vmul.f32 %v1256, %v480
      %v1265 = vmul.f32 %v1257, %v480
      %v1266 = vmul.f32 %v1258, %v480
      %v1267 = vmul.f32 %v1259, %v480
      %v1268 = vmul.f32 %v1260, %v480
      %v1269 = vmul.f32 %v1261, %v480
      %v1270 = vmul.f32 %v1262, %v480
      %v1271 = vmul.f32 %v1263, %v480
      %v1272 = vadd.f32 %v1264, %v494
      %v1273 = vadd.f32 %v1265, %v494
      %v1274 = vadd.f32 %v1266, %v494
      %v1275 = vadd.f32 %v1267, %v494
      %v1276 = vadd.f32 %v1268, %v494
      %v1277 = vadd.f32 %v1269, %v494
      %v1278 = vadd.f32 %v1270, %v494
      %v1279 = vadd.f32 %v1271, %v494
      %v1280 = vpack.c.bf16 %v1273, %v1272
      %v1281 = vpack.c.bf16 %v1275, %v1274
      %v1282 = vpack.c.bf16 %v1277, %v1276
      %v1283 = vpack.c.bf16 %v1279, %v1278
      %v1285 = vsel %vm514, %v1280, 0
      %v1288 = vsel %vm514, %v1281, 0
      %v1291 = vsel %vm514, %v1282, 0
      %v1294 = vsel %vm514, %v1283, 0
      %1296 = vmatprep.subr.bf16.mxu0 0
      %1297 = vmatpush1.bf16.msra.mxu0 %v423
      %1298 = vmatprep.subr.bf16.mxu0 0
      %1299 = vmatpush1.bf16.msra.mxu0 %v424
      %1300 = vmatprep.subr.bf16.mxu0 0
      %1301 = vmatpush1.bf16.msra.mxu0 0
      %1302 = vmatprep.subr.bf16.mxu0 0
      %1303 = vmatpush1.bf16.msra.mxu0 0
      %1304 = vmatprep.subr.bf16.mxu0 0
      %1305 = vmatpush1.bf16.msra.mxu0 0
      %1306 = vmatprep.subr.bf16.mxu0 0
      %1307 = vmatpush1.bf16.msra.mxu0 0
      %1308 = vmatprep.subr.bf16.mxu0 0
      %1309 = vmatpush1.bf16.msra.mxu0 0
      %1310 = vmatprep.subr.bf16.mxu0 0
      %1311 = vmatpush1.bf16.msra.mxu0 0
      %1312 = vmatprep.subr.bf16.mxu0 0
      %1313 = vmatpush1.bf16.msra.mxu0 0
      %1314 = vmatprep.subr.bf16.mxu0 0
      %1315 = vmatpush1.bf16.msra.mxu0 0
      %1316 = vmatprep.subr.bf16.mxu0 0
      %1317 = vmatpush1.bf16.msra.mxu0 0
      %1318 = vmatprep.subr.bf16.mxu0 0
      %1319 = vmatpush1.bf16.msra.mxu0 0
      %1320 = vmatprep.subr.bf16.mxu0 0
      %1321 = vmatpush1.bf16.msra.mxu0 0
      %1322 = vmatprep.subr.bf16.mxu0 0
      %1323 = vmatpush1.bf16.msra.mxu0 0
      %1324 = vmatprep.subr.bf16.mxu0 0
      %1325 = vmatpush1.bf16.msra.mxu0 0
      %1326 = vmatprep.subr.bf16.mxu0 0
      %1327 = vmatpush1.bf16.msra.mxu0 0
      %1328 = vmatprep.mubr.bf16.mxu0 0
      %1329 = vmatmul.mubr.bf16.gmra.mrb[0].mxu0 %v1285
      %v1330 = vpop.f32.mrb[0].mxu0
      %v1331 = vadd.f32 %v512, %v1330
      %v1332 = vpop.f32.mrb[0].mxu0
      %v1333 = vpop.f32.mrb[0].mxu0
      %v1334 = vadd.f32 %v512, %v1333
      %v1335 = vpop.f32.mrb[0].mxu0
      %1336 = vmatprep.mubr.bf16.mxu0 0
      %1337 = vmatmul.mubr.bf16.gmra.mrb[0].mxu0 %v1288
      %v1338 = vpop.f32.mrb[0].mxu0
      %v1339 = vadd.f32 %v512, %v1338
      %v1340 = vpop.f32.mrb[0].mxu0
      %v1341 = vpop.f32.mrb[0].mxu0
      %v1342 = vadd.f32 %v512, %v1341
      %v1343 = vpop.f32.mrb[0].mxu0
      %1344 = vmatprep.mubr.bf16.mxu0 0
      %1345 = vmatmul.mubr.bf16.gmra.mrb[0].mxu0 %v1291
      %v1346 = vpop.f32.mrb[0].mxu0
      %v1347 = vadd.f32 %v512, %v1346
      %v1348 = vpop.f32.mrb[0].mxu0
      %v1349 = vpop.f32.mrb[0].mxu0
      %v1350 = vadd.f32 %v512, %v1349
      %v1351 = vpop.f32.mrb[0].mxu0
      %1352 = vmatprep.mubr.bf16.mxu0 0
      %1353 = vmatmul.mubr.bf16.gmra.mrb[0].mxu0 %v1294
      %v1354 = vpop.f32.mrb[0].mxu0
      %v1355 = vadd.f32 %v512, %v1354
      %v1356 = vpop.f32.mrb[0].mxu0
      %v1357 = vpop.f32.mrb[0].mxu0
      %v1358 = vadd.f32 %v512, %v1357
      %v1359 = vpop.f32.mrb[0].mxu0
      %1360 = vdwg.mxu0
      %v1361 = vmul.f32 %v1331, 0.25
      %v1362 = vmul.f32 %v1334, 0.25
      %v1363 = vmul.f32 %v1339, 0.25
      %v1364 = vmul.f32 %v1342, 0.25
      %v1365 = vmul.f32 %v1347, 0.25
      %v1366 = vmul.f32 %v1350, 0.25
      %v1367 = vmul.f32 %v1355, 0.25
      %v1368 = vmul.f32 %v1358, 0.25
      %v1369 = vpack.c.bf16 %v1362, %v1361
      %v1370 = vpack.c.bf16 %v1364, %v1363
      %v1371 = vpack.c.bf16 %v1366, %v1365
      %v1372 = vpack.c.bf16 %v1368, %v1367
      %v1373 = vpack.c.bf16 %v1334, %v1331
      %v1374 = vpack.c.bf16 %v1342, %v1339
      %v1375 = vpack.c.bf16 %v1350, %v1347
      %v1376 = vpack.c.bf16 %v1358, %v1355
      %v1377 = vld [vmem:[%s7] sm:$0xff]
      %v1378 = vld [vmem:[%s7 + $0x8] sm:$0xff]
      %v1379 = vld [vmem:[%s7 + $0x10] sm:$0xff]
      %v1380 = vld [vmem:[%s7 + $0x18] sm:$0xff]
      %v1381 = vld [vmem:[%s7 + $0x20] sm:$0xff]
      %v1382 = vld [vmem:[%s7 + $0x28] sm:$0xff]
      %v1383 = vld [vmem:[%s7 + $0x30] sm:$0xff]
      %v1384 = vld [vmem:[%s7 + $0x38] sm:$0xff]
      %1389 = vrot.lane.b32.xlu0 %v1373, 96
      %v1390 = vpop.permute.xlu0 %1389
      %1391 = vrot.lane.b32.xlu0 %v1374, 96
      %v1392 = vpop.permute.xlu0 %1391
      %1393 = vrot.lane.b32.xlu0 %v1375, 96
      %v1394 = vpop.permute.xlu0 %1393
      %1395 = vrot.lane.b32.xlu0 %v1376, 96
      %v1396 = vpop.permute.xlu0 %1395
      %v1398 = vsel %vm628, %v1369, 0
      %v1401 = vsel %vm628, %v1370, 0
      %v1404 = vsel %vm628, %v1371, 0
      %v1407 = vsel %vm628, %v1372, 0
      %v1410 = vsel %vm628, %v1390, 0
      %v1413 = vsel %vm628, %v1392, 0
      %v1416 = vsel %vm628, %v1394, 0
      %v1419 = vsel %vm628, %v1396, 0
      %1421 = vmatprep.subr.bf16.mxu0 0
      %1422 = vmatpush1.bf16.xpose.msra.mxu0 %v1410
      %1423 = vmatprep.subr.bf16.mxu0 0
      %1424 = vmatpush1.bf16.xpose.msra.mxu0 %v1413
      %1425 = vmatprep.subr.bf16.mxu0 0
      %1426 = vmatpush1.bf16.xpose.msra.mxu0 %v1416
      %1427 = vmatprep.subr.bf16.mxu0 0
      %1428 = vmatpush1.bf16.xpose.msra.mxu0 %v1419
      %1429 = vmatprep.subr.bf16.mxu0 0
      %1430 = vmatpush1.bf16.xpose.msra.mxu0 0
      %1431 = vmatprep.subr.bf16.mxu0 0
      %1432 = vmatpush1.bf16.xpose.msra.mxu0 0
      %1433 = vmatprep.subr.bf16.mxu0 0
      %1434 = vmatpush1.bf16.xpose.msra.mxu0 0
      %1435 = vmatprep.subr.bf16.mxu0 0
      %1436 = vmatpush1.bf16.xpose.msra.mxu0 0
      %1437 = vmatprep.subr.bf16.mxu0 0
      %1438 = vmatpush1.bf16.xpose.msra.mxu0 0
      %1439 = vmatprep.subr.bf16.mxu0 0
      %1440 = vmatpush1.bf16.xpose.msra.mxu0 0
      %1441 = vmatprep.subr.bf16.mxu0 0
      %1442 = vmatpush1.bf16.xpose.msra.mxu0 0
      %1443 = vmatprep.subr.bf16.mxu0 0
      %1444 = vmatpush1.bf16.xpose.msra.mxu0 0
      %1445 = vmatprep.subr.bf16.mxu0 0
      %1446 = vmatpush1.bf16.xpose.msra.mxu0 0
      %1447 = vmatprep.subr.bf16.mxu0 0
      %1448 = vmatpush1.bf16.xpose.msra.mxu0 0
      %1449 = vmatprep.subr.bf16.mxu0 0
      %1450 = vmatpush1.bf16.xpose.msra.mxu0 0
      %1451 = vmatprep.subr.bf16.mxu0 0
      %1452 = vmatpush1.bf16.xpose.msra.mxu0 0
      %1453 = vmatprep.mubr.bf16.mxu0 0
      %1454 = vmatmul.mubr.bf16.gmra.mrb[0].mxu0 %v1398
      %v1455 = vpop.f32.mrb[0].mxu0
      %v1456 = vadd.f32 %v1377, %v1455
      %v1457 = vpop.f32.mrb[0].mxu0
      %v1458 = vpop.f32.mrb[0].mxu0
      %v1459 = vadd.f32 %v1378, %v1458
      %v1460 = vpop.f32.mrb[0].mxu0
      %1461 = vmatprep.mubr.bf16.mxu0 0
      %1462 = vmatmul.mubr.bf16.gmra.mrb[0].mxu0 %v1401
      %v1463 = vpop.f32.mrb[0].mxu0
      %v1464 = vadd.f32 %v1379, %v1463
      %v1465 = vpop.f32.mrb[0].mxu0
      %v1466 = vpop.f32.mrb[0].mxu0
      %v1467 = vadd.f32 %v1380, %v1466
      %v1468 = vpop.f32.mrb[0].mxu0
      %1469 = vmatprep.mubr.bf16.mxu0 0
      %1470 = vmatmul.mubr.bf16.gmra.mrb[0].mxu0 %v1404
      %v1471 = vpop.f32.mrb[0].mxu0
      %v1472 = vadd.f32 %v1381, %v1471
      %v1473 = vpop.f32.mrb[0].mxu0
      %v1474 = vpop.f32.mrb[0].mxu0
      %v1475 = vadd.f32 %v1382, %v1474
      %v1476 = vpop.f32.mrb[0].mxu0
      %1477 = vmatprep.mubr.bf16.mxu0 0
      %1478 = vmatmul.mubr.bf16.gmra.mrb[0].mxu0 %v1407
      %v1479 = vpop.f32.mrb[0].mxu0
      %v1480 = vadd.f32 %v1383, %v1479
      %v1481 = vpop.f32.mrb[0].mxu0
      %v1482 = vpop.f32.mrb[0].mxu0
      %v1483 = vadd.f32 %v1384, %v1482
      %v1484 = vpop.f32.mrb[0].mxu0
      %1485 = vdwg.mxu0
      %v1486 = vsel %vm718, %v1456, -inf
      %1487 = vmax.xlane.f32.xlu0 %v1486
      %v1488 = vpop.xlane.xlu0 %1487
      %v1489 = vsel %vm718, %v1459, -inf
      %1490 = vmax.xlane.f32.xlu0 %v1489
      %v1491 = vpop.xlane.xlu0 %1490
      %v1492 = vsel %vm718, %v1464, -inf
      %1493 = vmax.xlane.f32.xlu0 %v1492
      %v1494 = vpop.xlane.xlu0 %1493
      %v1495 = vsel %vm718, %v1467, -inf
      %1496 = vmax.xlane.f32.xlu0 %v1495
      %v1497 = vpop.xlane.xlu0 %1496
      %v1498 = vsel %vm718, %v1472, -inf
      %1499 = vmax.xlane.f32.xlu0 %v1498
      %v1500 = vpop.xlane.xlu0 %1499
      %v1501 = vsel %vm718, %v1475, -inf
      %1502 = vmax.xlane.f32.xlu0 %v1501
      %v1503 = vpop.xlane.xlu0 %1502
      %v1504 = vsel %vm718, %v1480, -inf
      %1505 = vmax.xlane.f32.xlu0 %v1504
      %v1506 = vpop.xlane.xlu0 %1505
      %v1507 = vsel %vm718, %v1483, -inf
      %1508 = vmax.xlane.f32.xlu0 %v1507
      %v1509 = vpop.xlane.xlu0 %1508
      %v1510 = vsub.f32 %v1456, %v1488
      %v1511 = vsub.f32 %v1459, %v1491
      %v1512 = vsub.f32 %v1464, %v1494
      %v1513 = vsub.f32 %v1467, %v1497
      %v1514 = vsub.f32 %v1472, %v1500
      %v1515 = vsub.f32 %v1475, %v1503
      %v1516 = vsub.f32 %v1480, %v1506
      %v1517 = vsub.f32 %v1483, %v1509
      %v1518 = vmul.f32 %v1510, 1.442695
      %v1519 = vpow.pop %v1518
      %v1520 = vmul.f32 %v1511, 1.442695
      %v1521 = vpow.pop %v1520
      %v1522 = vmul.f32 %v1512, 1.442695
      %v1523 = vpow.pop %v1522
      %v1524 = vmul.f32 %v1513, 1.442695
      %v1525 = vpow.pop %v1524
      %v1526 = vmul.f32 %v1514, 1.442695
      %v1527 = vpow.pop %v1526
      %v1528 = vmul.f32 %v1515, 1.442695
      %v1529 = vpow.pop %v1528
      %v1530 = vmul.f32 %v1516, 1.442695
      %v1531 = vpow.pop %v1530
      %v1532 = vmul.f32 %v1517, 1.442695
      %v1533 = vpow.pop %v1532
      %v1534 = vsel %vm718, %v1519, 0.0
      %1535 = vadd.xlane.f32.xlu0 %v1534
      %v1536 = vpop.xlane.xlu0 %1535
      %v1537 = vsel %vm718, %v1521, 0.0
      %1538 = vadd.xlane.f32.xlu0 %v1537
      %v1539 = vpop.xlane.xlu0 %1538
      %v1540 = vsel %vm718, %v1523, 0.0
      %1541 = vadd.xlane.f32.xlu0 %v1540
      %v1542 = vpop.xlane.xlu0 %1541
      %v1543 = vsel %vm718, %v1525, 0.0
      %1544 = vadd.xlane.f32.xlu0 %v1543
      %v1545 = vpop.xlane.xlu0 %1544
      %v1546 = vsel %vm718, %v1527, 0.0
      %1547 = vadd.xlane.f32.xlu0 %v1546
      %v1548 = vpop.xlane.xlu0 %1547
      %v1549 = vsel %vm718, %v1529, 0.0
      %1550 = vadd.xlane.f32.xlu0 %v1549
      %v1551 = vpop.xlane.xlu0 %1550
      %v1552 = vsel %vm718, %v1531, 0.0
      %1553 = vadd.xlane.f32.xlu0 %v1552
      %v1554 = vpop.xlane.xlu0 %1553
      %v1555 = vsel %vm718, %v1533, 0.0
      %1556 = vadd.xlane.f32.xlu0 %v1555
      %v1557 = vpop.xlane.xlu0 %1556
      %v1558 = vrcp.pop %v1536
      %v1559 = vrcp.pop %v1539
      %v1560 = vrcp.pop %v1542
      %v1561 = vrcp.pop %v1545
      %v1562 = vrcp.pop %v1548
      %v1563 = vrcp.pop %v1551
      %v1564 = vrcp.pop %v1554
      %v1565 = vrcp.pop %v1557
      %v1566 = vmul.f32 %v1519, %v1558
      %v1567 = vmul.f32 %v1521, %v1559
      %v1568 = vmul.f32 %v1523, %v1560
      %v1569 = vmul.f32 %v1525, %v1561
      %v1570 = vmul.f32 %v1527, %v1562
      %v1571 = vmul.f32 %v1529, %v1563
      %v1572 = vmul.f32 %v1531, %v1564
      %v1573 = vmul.f32 %v1533, %v1565
      %v1574 = vpack.c.bf16 %v1567, %v1566
      %v1575 = vpack.c.bf16 %v1569, %v1568
      %v1576 = vpack.c.bf16 %v1571, %v1570
      %v1577 = vpack.c.bf16 %v1573, %v1572
      %1578 = vrot.lane.b32.xlu0 %v1373, 64
      %v1579 = vpop.permute.xlu0 %1578
      %1580 = vrot.lane.b32.xlu0 %v1374, 64
      %v1581 = vpop.permute.xlu0 %1580
      %1582 = vrot.lane.b32.xlu0 %v1375, 64
      %v1583 = vpop.permute.xlu0 %1582
      %1584 = vrot.lane.b32.xlu0 %v1376, 64
      %v1585 = vpop.permute.xlu0 %1584
      %v1591 = vsel %vm718, %v1574, 0
      %v1594 = vsel %vm718, %v1575, 0
      %v1597 = vsel %vm718, %v1576, 0
      %v1600 = vsel %vm718, %v1577, 0
      %1602 = vmatprep.subr.bf16.mxu0 0
      %1603 = vmatpush1.bf16.msra.mxu0 %v1579
      %1604 = vmatprep.subr.bf16.mxu0 0
      %1605 = vmatpush1.bf16.msra.mxu0 %v1581
      %1606 = vmatprep.subr.bf16.mxu0 0
      %1607 = vmatpush1.bf16.msra.mxu0 %v1583
      %1608 = vmatprep.subr.bf16.mxu0 0
      %1609 = vmatpush1.bf16.msra.mxu0 %v1585
      %1610 = vmatprep.subr.bf16.mxu0 0
      %1611 = vmatpush1.bf16.msra.mxu0 0
      %1612 = vmatprep.subr.bf16.mxu0 0
      %1613 = vmatpush1.bf16.msra.mxu0 0
      %1614 = vmatprep.subr.bf16.mxu0 0
      %1615 = vmatpush1.bf16.msra.mxu0 0
      %1616 = vmatprep.subr.bf16.mxu0 0
      %1617 = vmatpush1.bf16.msra.mxu0 0
      %1618 = vmatprep.subr.bf16.mxu0 0
      %1619 = vmatpush1.bf16.msra.mxu0 0
      %1620 = vmatprep.subr.bf16.mxu0 0
      %1621 = vmatpush1.bf16.msra.mxu0 0
      %1622 = vmatprep.subr.bf16.mxu0 0
      %1623 = vmatpush1.bf16.msra.mxu0 0
      %1624 = vmatprep.subr.bf16.mxu0 0
      %1625 = vmatpush1.bf16.msra.mxu0 0
      %1626 = vmatprep.subr.bf16.mxu0 0
      %1627 = vmatpush1.bf16.msra.mxu0 0
      %1628 = vmatprep.subr.bf16.mxu0 0
      %1629 = vmatpush1.bf16.msra.mxu0 0
      %1630 = vmatprep.subr.bf16.mxu0 0
      %1631 = vmatpush1.bf16.msra.mxu0 0
      %1632 = vmatprep.subr.bf16.mxu0 0
      %1633 = vmatpush1.bf16.msra.mxu0 0
      %1634 = vmatprep.mubr.bf16.mxu0 0
      %1635 = vmatmul.mubr.bf16.gmra.mrb[0].mxu0 %v1591
      %v1636 = vpop.f32.mrb[0].mxu0
      %v1637 = vadd.f32 0.0, %v1636
      %v1638 = vpop.f32.mrb[0].mxu0
      %v1639 = vpop.f32.mrb[0].mxu0
      %v1640 = vadd.f32 0.0, %v1639
      %v1641 = vpop.f32.mrb[0].mxu0
      %1642 = vmatprep.mubr.bf16.mxu0 0
      %1643 = vmatmul.mubr.bf16.gmra.mrb[0].mxu0 %v1594
      %v1644 = vpop.f32.mrb[0].mxu0
      %v1645 = vadd.f32 0.0, %v1644
      %v1646 = vpop.f32.mrb[0].mxu0
      %v1647 = vpop.f32.mrb[0].mxu0
      %v1648 = vadd.f32 0.0, %v1647
      %v1649 = vpop.f32.mrb[0].mxu0
      %1650 = vmatprep.mubr.bf16.mxu0 0
      %1651 = vmatmul.mubr.bf16.gmra.mrb[0].mxu0 %v1597
      %v1652 = vpop.f32.mrb[0].mxu0
      %v1653 = vadd.f32 0.0, %v1652
      %v1654 = vpop.f32.mrb[0].mxu0
      %v1655 = vpop.f32.mrb[0].mxu0
      %v1656 = vadd.f32 0.0, %v1655
      %v1657 = vpop.f32.mrb[0].mxu0
      %1658 = vmatprep.mubr.bf16.mxu0 0
      %1659 = vmatmul.mubr.bf16.gmra.mrb[0].mxu0 %v1600
      %v1660 = vpop.f32.mrb[0].mxu0
      %v1661 = vadd.f32 0.0, %v1660
      %v1662 = vpop.f32.mrb[0].mxu0
      %v1663 = vpop.f32.mrb[0].mxu0
      %v1664 = vadd.f32 0.0, %v1663
      %v1665 = vpop.f32.mrb[0].mxu0
      %1666 = vdwg.mxu0
      %1667 = vst.msk [vmem:[%s409 + $0x8] sm:$0xff] %vm628, %v1637
      %1668 = vst.msk [vmem:[%s409 + $0x18] sm:$0xff] %vm628, %v1640
      %1669 = vst.msk [vmem:[%s409 + $0x28] sm:$0xff] %vm628, %v1645
      %1670 = vst.msk [vmem:[%s409 + $0x38] sm:$0xff] %vm628, %v1648
      %1671 = vst.msk [vmem:[%s409 + $0x48] sm:$0xff] %vm628, %v1653
      %1672 = vst.msk [vmem:[%s409 + $0x58] sm:$0xff] %vm628, %v1656
      %1673 = vst.msk [vmem:[%s409 + $0x68] sm:$0xff] %vm628, %v1661
      %1674 = vst.msk [vmem:[%s409 + $0x78] sm:$0xff] %vm628, %v1664
      %v1675 = vld [vmem:[%s908] sm:$0xff]
      %v1676 = vld [vmem:[%s908 + $0x8] sm:$0xff]
      %v1677 = vld [vmem:[%s908 + $0x10] sm:$0xff]
      %v1678 = vld [vmem:[%s908 + $0x18] sm:$0xff]
      %v1679 = vld [vmem:[%s908 + $0x20] sm:$0xff]
      %v1680 = vld [vmem:[%s908 + $0x28] sm:$0xff]
      %v1681 = vld [vmem:[%s908 + $0x30] sm:$0xff]
      %v1682 = vld [vmem:[%s908 + $0x38] sm:$0xff]
      %1687 = vrot.lane.b32.xlu0 %v1369, 112
      %v1688 = vpop.permute.xlu0 %1687
      %1689 = vrot.lane.b32.xlu0 %v1370, 112
      %v1690 = vpop.permute.xlu0 %1689
      %1691 = vrot.lane.b32.xlu0 %v1371, 112
      %v1692 = vpop.permute.xlu0 %1691
      %1693 = vrot.lane.b32.xlu0 %v1372, 112
      %v1694 = vpop.permute.xlu0 %1693
      %1695 = vrot.lane.b32.xlu0 %v1373, 80
      %v1696 = vpop.permute.xlu0 %1695
      %1697 = vrot.lane.b32.xlu0 %v1374, 80
      %v1698 = vpop.permute.xlu0 %1697
      %1699 = vrot.lane.b32.xlu0 %v1375, 80
      %v1700 = vpop.permute.xlu0 %1699
      %1701 = vrot.lane.b32.xlu0 %v1376, 80
      %v1702 = vpop.permute.xlu0 %1701
      %v1704 = vsel %vm628, %v1688, 0
      %v1707 = vsel %vm628, %v1690, 0
      %v1710 = vsel %vm628, %v1692, 0
      %v1713 = vsel %vm628, %v1694, 0
      %v1716 = vsel %vm628, %v1696, 0
      %v1719 = vsel %vm628, %v1698, 0
      %v1722 = vsel %vm628, %v1700, 0
      %v1725 = vsel %vm628, %v1702, 0
      %1727 = vmatprep.subr.bf16.mxu0 0
      %1728 = vmatpush1.bf16.xpose.msra.mxu0 %v1716
      %1729 = vmatprep.subr.bf16.mxu0 0
      %1730 = vmatpush1.bf16.xpose.msra.mxu0 %v1719
      %1731 = vmatprep.subr.bf16.mxu0 0
      %1732 = vmatpush1.bf16.xpose.msra.mxu0 %v1722
      %1733 = vmatprep.subr.bf16.mxu0 0
      %1734 = vmatpush1.bf16.xpose.msra.mxu0 %v1725
      %1735 = vmatprep.subr.bf16.mxu0 0
      %1736 = vmatpush1.bf16.xpose.msra.mxu0 0
      %1737 = vmatprep.subr.bf16.mxu0 0
      %1738 = vmatpush1.bf16.xpose.msra.mxu0 0
      %1739 = vmatprep.subr.bf16.mxu0 0
      %1740 = vmatpush1.bf16.xpose.msra.mxu0 0
      %1741 = vmatprep.subr.bf16.mxu0 0
      %1742 = vmatpush1.bf16.xpose.msra.mxu0 0
      %1743 = vmatprep.subr.bf16.mxu0 0
      %1744 = vmatpush1.bf16.xpose.msra.mxu0 0
      %1745 = vmatprep.subr.bf16.mxu0 0
      %1746 = vmatpush1.bf16.xpose.msra.mxu0 0
      %1747 = vmatprep.subr.bf16.mxu0 0
      %1748 = vmatpush1.bf16.xpose.msra.mxu0 0
      %1749 = vmatprep.subr.bf16.mxu0 0
      %1750 = vmatpush1.bf16.xpose.msra.mxu0 0
      %1751 = vmatprep.subr.bf16.mxu0 0
      %1752 = vmatpush1.bf16.xpose.msra.mxu0 0
      %1753 = vmatprep.subr.bf16.mxu0 0
      %1754 = vmatpush1.bf16.xpose.msra.mxu0 0
      %1755 = vmatprep.subr.bf16.mxu0 0
      %1756 = vmatpush1.bf16.xpose.msra.mxu0 0
      %1757 = vmatprep.subr.bf16.mxu0 0
      %1758 = vmatpush1.bf16.xpose.msra.mxu0 0
      %1759 = vmatprep.mubr.bf16.mxu0 0
      %1760 = vmatmul.mubr.bf16.gmra.mrb[0].mxu0 %v1704
      %v1761 = vpop.f32.mrb[0].mxu0
      %v1762 = vadd.f32 %v1675, %v1761
      %v1763 = vpop.f32.mrb[0].mxu0
      %v1764 = vpop.f32.mrb[0].mxu0
      %v1765 = vadd.f32 %v1676, %v1764
      %v1766 = vpop.f32.mrb[0].mxu0
      %1767 = vmatprep.mubr.bf16.mxu0 0
      %1768 = vmatmul.mubr.bf16.gmra.mrb[0].mxu0 %v1707
      %v1769 = vpop.f32.mrb[0].mxu0
      %v1770 = vadd.f32 %v1677, %v1769
      %v1771 = vpop.f32.mrb[0].mxu0
      %v1772 = vpop.f32.mrb[0].mxu0
      %v1773 = vadd.f32 %v1678, %v1772
      %v1774 = vpop.f32.mrb[0].mxu0
      %1775 = vmatprep.mubr.bf16.mxu0 0
      %1776 = vmatmul.mubr.bf16.gmra.mrb[0].mxu0 %v1710
      %v1777 = vpop.f32.mrb[0].mxu0
      %v1778 = vadd.f32 %v1679, %v1777
      %v1779 = vpop.f32.mrb[0].mxu0
      %v1780 = vpop.f32.mrb[0].mxu0
      %v1781 = vadd.f32 %v1680, %v1780
      %v1782 = vpop.f32.mrb[0].mxu0
      %1783 = vmatprep.mubr.bf16.mxu0 0
      %1784 = vmatmul.mubr.bf16.gmra.mrb[0].mxu0 %v1713
      %v1785 = vpop.f32.mrb[0].mxu0
      %v1786 = vadd.f32 %v1681, %v1785
      %v1787 = vpop.f32.mrb[0].mxu0
      %v1788 = vpop.f32.mrb[0].mxu0
      %v1789 = vadd.f32 %v1682, %v1788
      %v1790 = vpop.f32.mrb[0].mxu0
      %1791 = vdwg.mxu0
      %v1792 = vsel %vm718, %v1762, -inf
      %1793 = vmax.xlane.f32.xlu0 %v1792
      %v1794 = vpop.xlane.xlu0 %1793
      %v1795 = vsel %vm718, %v1765, -inf
      %1796 = vmax.xlane.f32.xlu0 %v1795
      %v1797 = vpop.xlane.xlu0 %1796
      %v1798 = vsel %vm718, %v1770, -inf
      %1799 = vmax.xlane.f32.xlu0 %v1798
      %v1800 = vpop.xlane.xlu0 %1799
      %v1801 = vsel %vm718, %v1773, -inf
      %1802 = vmax.xlane.f32.xlu0 %v1801
      %v1803 = vpop.xlane.xlu0 %1802
      %v1804 = vsel %vm718, %v1778, -inf
      %1805 = vmax.xlane.f32.xlu0 %v1804
      %v1806 = vpop.xlane.xlu0 %1805
      %v1807 = vsel %vm718, %v1781, -inf
      %1808 = vmax.xlane.f32.xlu0 %v1807
      %v1809 = vpop.xlane.xlu0 %1808
      %v1810 = vsel %vm718, %v1786, -inf
      %1811 = vmax.xlane.f32.xlu0 %v1810
      %v1812 = vpop.xlane.xlu0 %1811
      %v1813 = vsel %vm718, %v1789, -inf
      %1814 = vmax.xlane.f32.xlu0 %v1813
      %v1815 = vpop.xlane.xlu0 %1814
      %v1816 = vsub.f32 %v1762, %v1794
      %v1817 = vsub.f32 %v1765, %v1797
      %v1818 = vsub.f32 %v1770, %v1800
      %v1819 = vsub.f32 %v1773, %v1803
      %v1820 = vsub.f32 %v1778, %v1806
      %v1821 = vsub.f32 %v1781, %v1809
      %v1822 = vsub.f32 %v1786, %v1812
      %v1823 = vsub.f32 %v1789, %v1815
      %v1824 = vmul.f32 %v1816, 1.442695
      %v1825 = vpow.pop %v1824
      %v1826 = vmul.f32 %v1817, 1.442695
      %v1827 = vpow.pop %v1826
      %v1828 = vmul.f32 %v1818, 1.442695
      %v1829 = vpow.pop %v1828
      %v1830 = vmul.f32 %v1819, 1.442695
      %v1831 = vpow.pop %v1830
      %v1832 = vmul.f32 %v1820, 1.442695
      %v1833 = vpow.pop %v1832
      %v1834 = vmul.f32 %v1821, 1.442695
      %v1835 = vpow.pop %v1834
      %v1836 = vmul.f32 %v1822, 1.442695
      %v1837 = vpow.pop %v1836
      %v1838 = vmul.f32 %v1823, 1.442695
      %v1839 = vpow.pop %v1838
      %v1840 = vsel %vm718, %v1825, 0.0
      %1841 = vadd.xlane.f32.xlu0 %v1840
      %v1842 = vpop.xlane.xlu0 %1841
      %v1843 = vsel %vm718, %v1827, 0.0
      %1844 = vadd.xlane.f32.xlu0 %v1843
      %v1845 = vpop.xlane.xlu0 %1844
      %v1846 = vsel %vm718, %v1829, 0.0
      %1847 = vadd.xlane.f32.xlu0 %v1846
      %v1848 = vpop.xlane.xlu0 %1847
      %v1849 = vsel %vm718, %v1831, 0.0
      %1850 = vadd.xlane.f32.xlu0 %v1849
      %v1851 = vpop.xlane.xlu0 %1850
      %v1852 = vsel %vm718, %v1833, 0.0
      %1853 = vadd.xlane.f32.xlu0 %v1852
      %v1854 = vpop.xlane.xlu0 %1853
      %v1855 = vsel %vm718, %v1835, 0.0
      %1856 = vadd.xlane.f32.xlu0 %v1855
      %v1857 = vpop.xlane.xlu0 %1856
      %v1858 = vsel %vm718, %v1837, 0.0
      %1859 = vadd.xlane.f32.xlu0 %v1858
      %v1860 = vpop.xlane.xlu0 %1859
      %v1861 = vsel %vm718, %v1839, 0.0
      %1862 = vadd.xlane.f32.xlu0 %v1861
      %v1863 = vpop.xlane.xlu0 %1862
      %v1864 = vrcp.pop %v1842
      %v1865 = vrcp.pop %v1845
      %v1866 = vrcp.pop %v1848
      %v1867 = vrcp.pop %v1851
      %v1868 = vrcp.pop %v1854
      %v1869 = vrcp.pop %v1857
      %v1870 = vrcp.pop %v1860
      %v1871 = vrcp.pop %v1863
      %v1872 = vmul.f32 %v1825, %v1864
      %v1873 = vmul.f32 %v1827, %v1865
      %v1874 = vmul.f32 %v1829, %v1866
      %v1875 = vmul.f32 %v1831, %v1867
      %v1876 = vmul.f32 %v1833, %v1868
      %v1877 = vmul.f32 %v1835, %v1869
      %v1878 = vmul.f32 %v1837, %v1870
      %v1879 = vmul.f32 %v1839, %v1871
      %v1880 = vpack.c.bf16 %v1873, %v1872
      %v1881 = vpack.c.bf16 %v1875, %v1874
      %v1882 = vpack.c.bf16 %v1877, %v1876
      %v1883 = vpack.c.bf16 %v1879, %v1878
      %1884 = vrot.lane.b32.xlu0 %v1373, 48
      %v1885 = vpop.permute.xlu0 %1884
      %1886 = vrot.lane.b32.xlu0 %v1374, 48
      %v1887 = vpop.permute.xlu0 %1886
      %1888 = vrot.lane.b32.xlu0 %v1375, 48
      %v1889 = vpop.permute.xlu0 %1888
      %1890 = vrot.lane.b32.xlu0 %v1376, 48
      %v1891 = vpop.permute.xlu0 %1890
      %v1897 = vsel %vm718, %v1880, 0
      %v1900 = vsel %vm718, %v1881, 0
      %v1903 = vsel %vm718, %v1882, 0
      %v1906 = vsel %vm718, %v1883, 0
      %1908 = vmatprep.subr.bf16.mxu0 0
      %1909 = vmatpush1.bf16.msra.mxu0 %v1885
      %1910 = vmatprep.subr.bf16.mxu0 0
      %1911 = vmatpush1.bf16.msra.mxu0 %v1887
      %1912 = vmatprep.subr.bf16.mxu0 0
      %1913 = vmatpush1.bf16.msra.mxu0 %v1889
      %1914 = vmatprep.subr.bf16.mxu0 0
      %1915 = vmatpush1.bf16.msra.mxu0 %v1891
      %1916 = vmatprep.subr.bf16.mxu0 0
      %1917 = vmatpush1.bf16.msra.mxu0 0
      %1918 = vmatprep.subr.bf16.mxu0 0
      %1919 = vmatpush1.bf16.msra.mxu0 0
      %1920 = vmatprep.subr.bf16.mxu0 0
      %1921 = vmatpush1.bf16.msra.mxu0 0
      %1922 = vmatprep.subr.bf16.mxu0 0
      %1923 = vmatpush1.bf16.msra.mxu0 0
      %1924 = vmatprep.subr.bf16.mxu0 0
      %1925 = vmatpush1.bf16.msra.mxu0 0
      %1926 = vmatprep.subr.bf16.mxu0 0
      %1927 = vmatpush1.bf16.msra.mxu0 0
      %1928 = vmatprep.subr.bf16.mxu0 0
      %1929 = vmatpush1.bf16.msra.mxu0 0
      %1930 = vmatprep.subr.bf16.mxu0 0
      %1931 = vmatpush1.bf16.msra.mxu0 0
      %1932 = vmatprep.subr.bf16.mxu0 0
      %1933 = vmatpush1.bf16.msra.mxu0 0
      %1934 = vmatprep.subr.bf16.mxu0 0
      %1935 = vmatpush1.bf16.msra.mxu0 0
      %1936 = vmatprep.subr.bf16.mxu0 0
      %1937 = vmatpush1.bf16.msra.mxu0 0
      %1938 = vmatprep.subr.bf16.mxu0 0
      %1939 = vmatpush1.bf16.msra.mxu0 0
      %1940 = vmatprep.mubr.bf16.mxu0 0
      %1941 = vmatmul.mubr.bf16.gmra.mrb[0].mxu0 %v1897
      %v1942 = vpop.f32.mrb[0].mxu0
      %v1943 = vadd.f32 0.0, %v1942
      %v1944 = vpop.f32.mrb[0].mxu0
      %v1945 = vpop.f32.mrb[0].mxu0
      %v1946 = vadd.f32 0.0, %v1945
      %v1947 = vpop.f32.mrb[0].mxu0
      %1948 = vmatprep.mubr.bf16.mxu0 0
      %1949 = vmatmul.mubr.bf16.gmra.mrb[0].mxu0 %v1900
      %v1950 = vpop.f32.mrb[0].mxu0
      %v1951 = vadd.f32 0.0, %v1950
      %v1952 = vpop.f32.mrb[0].mxu0
      %v1953 = vpop.f32.mrb[0].mxu0
      %v1954 = vadd.f32 0.0, %v1953
      %v1955 = vpop.f32.mrb[0].mxu0
      %1956 = vmatprep.mubr.bf16.mxu0 0
      %1957 = vmatmul.mubr.bf16.gmra.mrb[0].mxu0 %v1903
      %v1958 = vpop.f32.mrb[0].mxu0
      %v1959 = vadd.f32 0.0, %v1958
      %v1960 = vpop.f32.mrb[0].mxu0
      %v1961 = vpop.f32.mrb[0].mxu0
      %v1962 = vadd.f32 0.0, %v1961
      %v1963 = vpop.f32.mrb[0].mxu0
      %1964 = vmatprep.mubr.bf16.mxu0 0
      %1965 = vmatmul.mubr.bf16.gmra.mrb[0].mxu0 %v1906
      %v1966 = vpop.f32.mrb[0].mxu0
      %v1967 = vadd.f32 0.0, %v1966
      %v1968 = vpop.f32.mrb[0].mxu0
      %v1969 = vpop.f32.mrb[0].mxu0
      %v1970 = vadd.f32 0.0, %v1969
      %v1971 = vpop.f32.mrb[0].mxu0
      %1972 = vdwg.mxu0
      %1981 = vrot.lane.b32.xlu0 %v1943, 16
      %v1982 = vpop.permute.xlu0 %1981
      %1983 = vrot.lane.b32.xlu0 %v1946, 16
      %v1984 = vpop.permute.xlu0 %1983
      %1985 = vrot.lane.b32.xlu0 %v1951, 16
      %v1986 = vpop.permute.xlu0 %1985
      %1987 = vrot.lane.b32.xlu0 %v1954, 16
      %v1988 = vpop.permute.xlu0 %1987
      %1989 = vrot.lane.b32.xlu0 %v1959, 16
      %v1990 = vpop.permute.xlu0 %1989
      %1991 = vrot.lane.b32.xlu0 %v1962, 16
      %v1992 = vpop.permute.xlu0 %1991
      %1993 = vrot.lane.b32.xlu0 %v1967, 16
      %v1994 = vpop.permute.xlu0 %1993
      %1995 = vrot.lane.b32.xlu0 %v1970, 16
      %v1996 = vpop.permute.xlu0 %1995
      %2005 = vst.msk [vmem:[%s409 + $0x8] sm:$0xff] %vm1239, %v1982
      %2006 = vst.msk [vmem:[%s409 + $0x18] sm:$0xff] %vm1239, %v1984
      %2007 = vst.msk [vmem:[%s409 + $0x28] sm:$0xff] %vm1239, %v1986
      %2008 = vst.msk [vmem:[%s409 + $0x38] sm:$0xff] %vm1239, %v1988
      %2009 = vst.msk [vmem:[%s409 + $0x48] sm:$0xff] %vm1239, %v1990
      %2010 = vst.msk [vmem:[%s409 + $0x58] sm:$0xff] %vm1239, %v1992
      %2011 = vst.msk [vmem:[%s409 + $0x68] sm:$0xff] %vm1239, %v1994
      %2012 = vst.msk [vmem:[%s409 + $0x78] sm:$0xff] %vm1239, %v1996
      %s2013 = smul.u32 8, %s25
      %s2014 = smul.u32 2, %s26
      %p2015 = scmp.lt.s32.totalorder %s24, 1
      %s2016 = scalar_select %p2015, %s24, 1
      %p2017 = scmp.lt.s32.totalorder %s2013, 15
      %s2018 = scalar_select %p2017, %s2013, 15
      %p2019 = scmp.lt.s32.totalorder %s2014, 1
      %s2020 = scalar_select %p2019, %s2014, 1
      %s2021 = smul.addr %s2018, 2
      %s2022 = sadd.s32 %s2020, %s2021
      %s2023 = smul.addr %s2016, 32
      %s2024 = sadd.s32 %s2022, %s2023
      %s2025 = smul.addr %s2024, 8
      %s2026 = scalar_lea.vmem %s8, %s2025
      // Predicated region
      $region53: #{transformer_block_forward.4} parent=51 // pred_check
        %p2027 = pneg %p247
      $region54: #{transformer_block_forward.4} parent=51 // pred_check_branch
        %2029 = sbr.rel (%p2027) target = $region56
      $region55: #{transformer_block_forward.4} parent=51 // pred_region
        %s2030 = smul.u32 8, %s25
        %s2031 = smul.u32 2, %s26
      $region56: #{transformer_block_forward.4} parent=51 // pred_fallthru
        _
    $region52: #{transformer_block_forward.4} parent=5 // pred_fallthru
      _
    %p2032 = scmp.le.s32.totalorder 2, %s14
    // Predicated region
    $region57: #{transformer_block_forward.4} parent=5 // pred_check
      %p2033 = pneg %p2032
    $region58: #{transformer_block_forward.4} parent=5 // pred_check_branch
      %2035 = sbr.rel (%p2033) target = $region60
    $region59: #{transformer_block_forward.4} parent=5 // pred_region
      %s2036 = ssub.s32 %s14, 2
      // Predicated region
      $region61: #{transformer_block_forward.4} parent=59 // pred_check
        %p2037 = pneg %p253
      $region62: #{transformer_block_forward.4} parent=59 // pred_check_branch
        %2039 = sbr.rel (%p2037) target = $region64
      $region63: #{transformer_block_forward.4} parent=59 // pred_region
        %s2040 = smul.u32 8, %s28
        %s2041 = smul.u32 2, %s29
        %p2042 = scmp.lt.s32.totalorder %s27, 1
        %s2043 = scalar_select %p2042, %s27, 1
        %p2044 = scmp.lt.s32.totalorder %s2040, 15
        %s2045 = scalar_select %p2044, %s2040, 15
        %p2046 = scmp.lt.s32.totalorder %s2041, 1
        %s2047 = scalar_select %p2046, %s2041, 1
        %s2048 = smul.addr %s2045, 2
        %s2049 = sadd.s32 %s2047, %s2048
        %s2050 = smul.addr %s2043, 32
        %s2051 = sadd.s32 %s2049, %s2050
        %s2052 = smul.addr %s2051, 8
        %s2053 = scalar_lea.vmem %s8, %s2052
      $region64: #{transformer_block_forward.4} parent=59 // pred_fallthru
        _
    $region60: #{transformer_block_forward.4} parent=5 // pred_fallthru
      _
  $region6: #{transformer_block_forward.4} parent=0 // loop_footer
    %s18 = sadd.s32 1, %s14
  $region7: #{transformer_block_forward.4} parent=0 // loop_footer_branch
    %13 = sbr.rel target = $region3
  $region8: #{transformer_block_forward.4} parent=0 // loop_exit
    _

</llo_original>
